<compile_context>
chip_gen: v7x
topology: tpu7x:2x2x1
jax: 0.10.0
libtpu: 0.0.40
codegen_flags: <defaults>
</compile_context>

<pallas_src>
import jax
import jax.numpy as jnp
from jax.experimental import pallas as pl
from jax.experimental.pallas import tpu as pltpu


# ----------------------------------------------------------------------------
# Fused Pallas kernel: wavefront over layers, full recurrence + fc head in VMEM.
# ----------------------------------------------------------------------------
def _fused_lstm_kernel(seq_ref, wih0_ref, wpack_ref, bpack_ref, wfc_ref, bfc_ref,
                       out_ref):
    T, B, Din = seq_ref.shape
    H = wfc_ref.shape[0]
    G = 4 * H
    L = wpack_ref.shape[0] // H
    l_win = out_ref.shape[0]
    D = out_ref.shape[2]
    t_dec0 = T - l_win                       # first decoder step in the concat seq

    # Layer-0 input projection hoisted off the recurrence: one batched MXU matmul
    # over the whole sequence (g-gate columns already pre-scaled by 2).
    x2d = seq_ref[...].reshape(T * B, Din).astype(jnp.bfloat16)
    gx0 = jnp.dot(x2d, wih0_ref[...],
                  preferred_element_type=jnp.float32).reshape(T, B, G)

    wpack = wpack_ref[...]                   # (L*H, L*4H) bf16, loop-resident
    bpack = bpack_ref[...]                   # (1,   L*4H) f32 (b_ih + b_hh fused)
    # TODO(synk): wpack could additionally be kept MXU weight-stationary via
    # pltpu.matmul_push_rhs / matmul_acc_lhs if MXU fill latency ever shows up.

    h = [jnp.zeros((B, H), jnp.float32) for _ in range(L)]
    c = [jnp.zeros((B, H), jnp.float32) for _ in range(L)]
    dec_h = []

    # Wavefront: tick k runs layer l at step t = k - l (fully unrolled, T small &
    # static).  One packed matmul per tick provides every layer's h@W_hh term plus
    # every layer>=1 input projection h_{l-1}@W_ih; boundary ticks waste only the
    # inactive layers' lanes.  Inter-layer dropout is eval-mode identity.
    for k in range(T + L - 1):
        lhs = jnp.concatenate(h, axis=1).astype(jnp.bfloat16)        # (B, L*H)
        gates = jnp.dot(lhs, wpack,
                        preferred_element_type=jnp.float32) + bpack  # (B, L*4H)
        for l in range(L):
            t = k - l
            if not (0 <= t < T):
                continue
            blk = gates[:, l * G:(l + 1) * G]
            if l == 0:
                blk = blk + gx0[t]
            # One sigmoid over the full (B, 4H) gate block; tanh(g) recovered as
            # 2*sigmoid(2g) - 1 on VPU slots (g columns were pre-scaled by 2).
            sig = jax.nn.sigmoid(blk)
            i_g = sig[:, 0 * H:1 * H]
            f_g = sig[:, 1 * H:2 * H]
            g_g = 2.0 * sig[:, 2 * H:3 * H] - 1.0
            o_g = sig[:, 3 * H:4 * H]
            c[l] = f_g * c[l] + i_g * g_g
            h[l] = o_g * jnp.tanh(c[l])
            if l == L - 1 and t >= t_dec0:
                dec_h.append(h[l])

    # fc head fused in-kernel on the l_win decoder-step top-layer hidden states.
    # TODO(synk): D=8 < 128 forces masked vst partials on the output; pad/re-layout
    # the last dim only if input_size ever grows.
    hd = jnp.stack(dec_h, axis=0).reshape(l_win * B, H).astype(jnp.bfloat16)
    out2d = jnp.dot(hd, wfc_ref[...],
                    preferred_element_type=jnp.float32) + bfc_ref[...]
    out_ref[...] = out2d.reshape(l_win, B, D)


# ----------------------------------------------------------------------------
# Wrapper
# ----------------------------------------------------------------------------
def _round_up(n, m):
    return ((n + m - 1) // m) * m


def lstm_model_forward(params, x, targets, *, num_batch_blocks=1):
    """Pallas implementation of LSTMModel.forward (teacher-forced decoder).

    num_batch_blocks: set to 2 on v7x (2 TensorCores) once the real batch is large
    enough; keep at 1 on v5e/v6e where a serial grid over batch is pure overhead.
    """
    B = x.shape[0]
    D = params['input_size']
    H = params['hidden']
    L = params['num_layers']
    x = x.reshape(B, -1, D).astype(jnp.float32)            # x.view(B, -1, input_size)
    targets = targets.astype(jnp.float32)
    l_win = targets.shape[1]
    T_enc = x.shape[1]
    T = T_enc + l_win

    # Teacher-forced decoder inputs; run the multi-layer LSTM once over the
    # concatenated sequence (see semantics note above).
    dec_in = jnp.concatenate([x[:, -1:, :], targets[:, :l_win - 1, :]], axis=1)
    seq = jnp.concatenate([x, dec_in], axis=1)             # (B, T, D)
    seq = jnp.transpose(seq, (1, 0, 2))                    # time-major (T, B, D)

    # Pad per-block batch to a multiple of 16 (bf16 LHS sublane tile). Padded rows
    # evolve independent bias-driven states and are sliced off below.
    per_blk = -(-B // num_batch_blocks)
    B_blk = _round_up(max(per_blk, 16), 16)
    B_pad = B_blk * num_batch_blocks
    if B_pad != B:
        seq = jnp.pad(seq, ((0, 0), (0, B_pad - B), (0, 0)))

    out = pl.pallas_call(
        _fused_lstm_kernel,
        out_shape=jax.ShapeDtypeStruct((l_win, B_pad, D), jnp.float32),
        grid_spec=pltpu.PrefetchScalarGridSpec(
            num_scalar_prefetch=0,
            grid=(num_batch_blocks,),
            in_specs=[
                pl.BlockSpec((T, B_blk, D), lambda i: (0, i, 0)),
                pl.BlockSpec((D, 4 * H), lambda i: (0, 0)),
                pl.BlockSpec((L * H, L * 4 * H), lambda i: (0, 0)),
                pl.BlockSpec((1, L * 4 * H), lambda i: (0, 0)),
                pl.BlockSpec((H, D), lambda i: (0, 0)),
                pl.BlockSpec((1, D), lambda i: (0, 0)),
            ],
            out_specs=pl.BlockSpec((l_win, B_blk, D), lambda i: (0, i, 0)),
        ),
        compiler_params=pltpu.CompilerParams(
            dimension_semantics=("parallel",),
            vmem_limit_bytes=32 << 20,   # explicit budget; tiny today, safe on v7x
        ),
    )(seq, params['w_ih0_t'], params['w_pack'], params['b_pack'],
      params['w_fc_t'], params['b_fc_row'])
    return jnp.transpose(out[:, :B, :], (1, 0, 2))         # (B, l_win, D)


# ----------------------------------------------------------------------------
# Parameters (PyTorch layout) + one-time kernel-layout preparation
# ----------------------------------------------------------------------------
def init_params(key, config):
    H = config['num_hidden_units_lstm']
    D = config['input_size']
    L = config['num_layers']
    k = 1.0 / jnp.sqrt(H)
    keys = jax.random.split(key, 4 * L + 2)
    w_ih, w_hh, b_ih, b_hh = [], [], [], []
    for l in range(L):
        din = D if l == 0 else H
        w_ih.append(jax.random.uniform(keys[4 * l + 0], (4 * H, din),
                                       jnp.float32, -k, k))
        w_hh.append(jax.random.uniform(keys[4 * l + 1], (4 * H, H),
                                       jnp.float32, -k, k))
        b_ih.append(jax.random.uniform(keys[4 * l + 2], (4 * H,),
                                       jnp.float32, -k, k))
        b_hh.append(jax.random.uniform(keys[4 * l + 3], (4 * H,),
                                       jnp.float32, -k, k))
    w_fc = jax.random.uniform(keys[-2], (D, H), jnp.float32, -k, k)
    b_fc = jax.random.uniform(keys[-1], (D,), jnp.float32, -k, k)
    return dict(w_ih=w_ih, w_hh=w_hh, b_ih=b_ih, b_hh=b_hh,
                w_fc=w_fc, b_fc=b_fc,
                hidden=H, input_size=D, num_layers=L)


def prepare_params(params):
    """One-time weight prep for the kernel layout.

    * transpose to MXU-friendly (K, 4H) layouts and cast MXU operands to bf16,
    * fuse b_ih + b_hh,
    * pre-scale the g-gate columns by 2 (exact power-of-two scale, also exact in
      bf16) so the kernel can recover tanh(g) = 2*sigmoid(2g) - 1 without a
      separate tanh EUP push,
    * pack all layers' W_hh^T (diagonal blocks) and layer>=1 W_ih^T (super-diagonal
      blocks) into one (L*H, L*4H) RHS used by the per-tick wavefront matmul.
    """
    L = params['num_layers']
    H = params['hidden']
    out = dict(params)

    gate_scale = jnp.concatenate([jnp.ones(2 * H, jnp.float32),
                                  2.0 * jnp.ones(H, jnp.float32),
                                  jnp.ones(H, jnp.float32)])          # i|f|g|o

    def prescale(w_t):                       # w_t: (K, 4H)
        return w_t * gate_scale[None, :]

    out['w_ih0_t'] = prescale(params['w_ih'][0].T).astype(jnp.bfloat16)

    wpack = jnp.zeros((L * H, L * 4 * H), jnp.float32)
    for l in range(L):
        whh_t = prescale(params['w_hh'][l].T)                         # (H, 4H)
        wpack = wpack.at[l * H:(l + 1) * H, l * 4 * H:(l + 1) * 4 * H].set(whh_t)
        if l >= 1:
            wih_t = prescale(params['w_ih'][l].T)                     # (H, 4H)
            wpack = wpack.at[(l - 1) * H:l * H,
                             l * 4 * H:(l + 1) * 4 * H].set(wih_t)
    out['w_pack'] = wpack.astype(jnp.bfloat16)

    out['b_pack'] = jnp.concatenate(
        [(params['b_ih'][l] + params['b_hh'][l]) * gate_scale for l in range(L)]
    ).reshape(1, L * 4 * H)

    out['w_fc_t'] = params['w_fc'].T.astype(jnp.bfloat16)
    out['b_fc_row'] = params['b_fc'].reshape(1, -1)
    return out


# ----------------------------------------------------------------------------
# Pure-JAX reference (mirrors the PyTorch forward step by step).
# Matmul inputs are cast to bf16 (f32 accumulation) to match the kernel's MXU feed.
# ----------------------------------------------------------------------------
def _mm(a, b):
    return jnp.dot(a.astype(jnp.bfloat16), b.astype(jnp.bfloat16),
                   preferred_element_type=jnp.float32)


def ref_forward(params, x, targets):
    B = x.shape[0]
    D = params['input_size']
    H = params['hidden']
    L = params['num_layers']
    x = x.reshape(B, -1, D).astype(jnp.float32)
    targets = targets.astype(jnp.float32)

    def cell(h, c, inp, l):
        g = (_mm(inp, params['w_ih'][l].T) + params['b_ih'][l]
             + _mm(h, params['w_hh'][l].T) + params['b_hh'][l])
        i, f, gg, o = jnp.split(g, 4, axis=-1)
        i, f, o = jax.nn.sigmoid(i), jax.nn.sigmoid(f), jax.nn.sigmoid(o)
        gg = jnp.tanh(gg)
        c = f * c + i * gg
        h = o * jnp.tanh(c)
        return h, c

    def run_lstm(seq, h, c):
        outs = []
        for t in range(seq.shape[1]):
            inp = seq[:, t, :]
            for l in range(L):
                h[l], c[l] = cell(h[l], c[l], inp, l)
                inp = h[l]
            outs.append(inp)
        return jnp.stack(outs, axis=1), h, c

    h = [jnp.zeros((B, H), jnp.float32) for _ in range(L)]
    c = [jnp.zeros((B, H), jnp.float32) for _ in range(L)]
    _, h, c = run_lstm(x, h, c)

    dec_in = x[:, -1:, :]
    outs = []
    for t in range(targets.shape[1]):
        o_seq, h, c = run_lstm(dec_in, h, c)
        nxt = _mm(o_seq[:, 0, :], params['w_fc'].T) + params['b_fc']
        outs.append(nxt)
        dec_in = targets[:, t:t + 1, :]
    return jnp.stack(outs, axis=1)


# ----------------------------------------------------------------------------
if __name__ == "__main__":
    config = dict(
        l_win=4,                      # decoder steps
        num_hidden_units_lstm=32,
        input_size=8,
        l_seq=4,
        lstm_batch_size=2,
        num_layers=2,
        device="tpu",
        look_back_num=2,
        lstm_dropout=0.0,             # eval-mode identity in the kernel
    )

    key = jax.random.PRNGKey(0)
    kp, kx, kt, kx2, kt2 = jax.random.split(key, 5)
    params = prepare_params(init_params(kp, config))

    B, T_enc, D = 2, 8, config['input_size']
    x = jax.random.normal(kx, (B, T_enc, D), jnp.float32)
    targets = jax.random.normal(kt, (B, config['l_win'], D), jnp.float32)

    out = jax.block_until_ready(lstm_model_forward(params, x, targets))
    ref = jax.block_until_ready(ref_forward(params, x, targets))
    assert out.shape == (B, config['l_win'], D), out.shape
    assert jnp.allclose(out, ref, atol=2e-3, rtol=2e-3), \
        float(jnp.max(jnp.abs(out - ref)))

    # Also exercise the v7x dual-TensorCore path (parallel batch-grid axis).
    B2 = 16
    x2 = jax.random.normal(kx2, (B2, T_enc, D), jnp.float32)
    t2 = jax.random.normal(kt2, (B2, config['l_win'], D), jnp.float32)
    out2 = jax.block_until_ready(
        lstm_model_forward(params, x2, t2, num_batch_blocks=2))
    ref2 = jax.block_until_ready(ref_forward(params, x2, t2))
    assert out2.shape == (B2, config['l_win'], D), out2.shape
    assert jnp.allclose(out2, ref2, atol=2e-3, rtol=2e-3), \
        float(jnp.max(jnp.abs(out2 - ref2)))

    print("KERNEL_OK")
</pallas_src>

<mosaic_0001>
module attributes {stable_mosaic.version = 11 : i64} {
  func.func @_fused_lstm_kernel(%arg0: i32, %arg1: memref<12x16x8xf32, #tpu.memory_space<vmem>>, %arg2: memref<8x128xbf16, #tpu.memory_space<vmem>>, %arg3: memref<64x256xbf16, #tpu.memory_space<vmem>>, %arg4: memref<1x256xf32, #tpu.memory_space<vmem>>, %arg5: memref<32x8xbf16, #tpu.memory_space<vmem>>, %arg6: memref<1x8xf32, #tpu.memory_space<vmem>>, %arg7: memref<4x16x8xf32, #tpu.memory_space<vmem>>) attributes {dimension_semantics = [#tpu.dimension_semantics<parallel>], iteration_bounds = array<i64: 1>, scalar_prefetch = 0 : i64, scratch_operands = 0 : i64, tpu.core_type = #tpu.core_type<tc>, window_params = [{transform_indices = @transform_0, window_bounds = array<i64: 12, 16, 8>}, {pipeline_mode = #tpu.pipeline_mode<synchronous>, transform_indices = @transform_1, window_bounds = array<i64: 8, 128>}, {pipeline_mode = #tpu.pipeline_mode<synchronous>, transform_indices = @transform_2, window_bounds = array<i64: 64, 256>}, {pipeline_mode = #tpu.pipeline_mode<synchronous>, transform_indices = @transform_3, window_bounds = array<i64: 1, 256>}, {pipeline_mode = #tpu.pipeline_mode<synchronous>, transform_indices = @transform_4, window_bounds = array<i64: 32, 8>}, {pipeline_mode = #tpu.pipeline_mode<synchronous>, transform_indices = @transform_5, window_bounds = array<i64: 1, 8>}, {transform_indices = @transform_6, window_bounds = array<i64: 4, 16, 8>}]} {
    %c0 = arith.constant 0 : index
    %c0_0 = arith.constant 0 : index
    %c0_1 = arith.constant 0 : index
    %0 = vector.load %arg1[%c0, %c0_0, %c0_1] : memref<12x16x8xf32, #tpu.memory_space<vmem>>, vector<12x16x8xf32>
    %1 = vector.shape_cast %0 : vector<12x16x8xf32> to vector<192x8xf32>
    %2 = arith.truncf %1 : vector<192x8xf32> to vector<192x8xbf16>
    %c0_2 = arith.constant 0 : index
    %c0_3 = arith.constant 0 : index
    %3 = vector.load %arg2[%c0_2, %c0_3] : memref<8x128xbf16, #tpu.memory_space<vmem>>, vector<8x128xbf16>
    %cst = arith.constant dense<0.000000e+00> : vector<192x128xf32>
    %4 = tpu.matmul %2, %3, %cst {dimension_numbers = #tpu.dot_dimension_numbers<[1], [0], [0], [1], [0, 0, 1, 1], [], []>} : vector<192x8xbf16>, vector<8x128xbf16>, vector<192x128xf32> -> vector<192x128xf32>
    %5 = vector.shape_cast %4 : vector<192x128xf32> to vector<12x16x128xf32>
    %c0_4 = arith.constant 0 : index
    %c0_5 = arith.constant 0 : index
    %6 = vector.load %arg3[%c0_4, %c0_5] : memref<64x256xbf16, #tpu.memory_space<vmem>>, vector<64x256xbf16>
    %c0_6 = arith.constant 0 : index
    %c0_7 = arith.constant 0 : index
    %7 = vector.load %arg4[%c0_6, %c0_7] : memref<1x256xf32, #tpu.memory_space<vmem>>, vector<1x256xf32>
    %cst_8 = arith.constant 0.000000e+00 : f32
    %8 = vector.broadcast %cst_8 : f32 to vector<16x32xf32>
    %cst_9 = arith.constant 0.000000e+00 : f32
    %9 = vector.broadcast %cst_9 : f32 to vector<16x32xf32>
    %cst_10 = arith.constant 0.000000e+00 : f32
    %10 = vector.broadcast %cst_10 : f32 to vector<16x32xf32>
    %cst_11 = arith.constant 0.000000e+00 : f32
    %11 = vector.broadcast %cst_11 : f32 to vector<16x32xf32>
    %12 = tpu.concatenate %8, %9 in 1 : vector<16x32xf32>, vector<16x32xf32> -> vector<16x64xf32>
    %13 = arith.truncf %12 : vector<16x64xf32> to vector<16x64xbf16>
    %cst_12 = arith.constant dense<0.000000e+00> : vector<16x256xf32>
    %14 = tpu.matmul %13, %6, %cst_12 {dimension_numbers = #tpu.dot_dimension_numbers<[1], [0], [0], [1], [0, 0, 1, 1], [], []>} : vector<16x64xbf16>, vector<64x256xbf16>, vector<16x256xf32> -> vector<16x256xf32>
    %15 = vector.broadcast %7 : vector<1x256xf32> to vector<16x256xf32>
    %16 = arith.addf %14, %15 : vector<16x256xf32>
    %17 = vector.extract_strided_slice %16 {offsets = [0, 0], sizes = [16, 128], strides = [1, 1]} : vector<16x256xf32> to vector<16x128xf32>
    %18 = vector.extract_strided_slice %5 {offsets = [0, 0, 0], sizes = [1, 16, 128], strides = [1, 1, 1]} : vector<12x16x128xf32> to vector<1x16x128xf32>
    %19 = vector.shape_cast %18 : vector<1x16x128xf32> to vector<16x128xf32>
    %20 = arith.addf %17, %19 : vector<16x128xf32>
    %21 = arith.negf %20 : vector<16x128xf32>
    %22 = math.exp %21 : vector<16x128xf32>
    %cst_13 = arith.constant 1.000000e+00 : f32
    %23 = vector.broadcast %cst_13 : f32 to vector<16x128xf32>
    %24 = arith.addf %23, %22 : vector<16x128xf32>
    %25 = arith.divf %23, %24 : vector<16x128xf32>
    %26 = vector.extract_strided_slice %25 {offsets = [0, 0], sizes = [16, 32], strides = [1, 1]} : vector<16x128xf32> to vector<16x32xf32>
    %27 = vector.extract_strided_slice %25 {offsets = [0, 32], sizes = [16, 32], strides = [1, 1]} : vector<16x128xf32> to vector<16x32xf32>
    %28 = vector.extract_strided_slice %25 {offsets = [0, 64], sizes = [16, 32], strides = [1, 1]} : vector<16x128xf32> to vector<16x32xf32>
    %cst_14 = arith.constant 2.000000e+00 : f32
    %29 = vector.broadcast %cst_14 : f32 to vector<16x32xf32>
    %30 = arith.mulf %29, %28 : vector<16x32xf32>
    %cst_15 = arith.constant 1.000000e+00 : f32
    %31 = vector.broadcast %cst_15 : f32 to vector<16x32xf32>
    %32 = arith.subf %30, %31 : vector<16x32xf32>
    %33 = vector.extract_strided_slice %25 {offsets = [0, 96], sizes = [16, 32], strides = [1, 1]} : vector<16x128xf32> to vector<16x32xf32>
    %34 = arith.mulf %27, %10 : vector<16x32xf32>
    %35 = arith.mulf %26, %32 : vector<16x32xf32>
    %36 = arith.addf %34, %35 : vector<16x32xf32>
    %37 = math.tanh %36 : vector<16x32xf32>
    %38 = arith.mulf %33, %37 : vector<16x32xf32>
    %39 = tpu.concatenate %38, %9 in 1 : vector<16x32xf32>, vector<16x32xf32> -> vector<16x64xf32>
    %40 = arith.truncf %39 : vector<16x64xf32> to vector<16x64xbf16>
    %cst_16 = arith.constant dense<0.000000e+00> : vector<16x256xf32>
    %41 = tpu.matmul %40, %6, %cst_16 {dimension_numbers = #tpu.dot_dimension_numbers<[1], [0], [0], [1], [0, 0, 1, 1], [], []>} : vector<16x64xbf16>, vector<64x256xbf16>, vector<16x256xf32> -> vector<16x256xf32>
    %42 = vector.broadcast %7 : vector<1x256xf32> to vector<16x256xf32>
    %43 = arith.addf %41, %42 : vector<16x256xf32>
    %44 = vector.extract_strided_slice %43 {offsets = [0, 0], sizes = [16, 128], strides = [1, 1]} : vector<16x256xf32> to vector<16x128xf32>
    %45 = vector.extract_strided_slice %5 {offsets = [1, 0, 0], sizes = [1, 16, 128], strides = [1, 1, 1]} : vector<12x16x128xf32> to vector<1x16x128xf32>
    %46 = vector.shape_cast %45 : vector<1x16x128xf32> to vector<16x128xf32>
    %47 = arith.addf %44, %46 : vector<16x128xf32>
    %48 = arith.negf %47 : vector<16x128xf32>
    %49 = math.exp %48 : vector<16x128xf32>
    %cst_17 = arith.constant 1.000000e+00 : f32
    %50 = vector.broadcast %cst_17 : f32 to vector<16x128xf32>
    %51 = arith.addf %50, %49 : vector<16x128xf32>
    %52 = arith.divf %50, %51 : vector<16x128xf32>
    %53 = vector.extract_strided_slice %52 {offsets = [0, 0], sizes = [16, 32], strides = [1, 1]} : vector<16x128xf32> to vector<16x32xf32>
    %54 = vector.extract_strided_slice %52 {offsets = [0, 32], sizes = [16, 32], strides = [1, 1]} : vector<16x128xf32> to vector<16x32xf32>
    %55 = vector.extract_strided_slice %52 {offsets = [0, 64], sizes = [16, 32], strides = [1, 1]} : vector<16x128xf32> to vector<16x32xf32>
    %cst_18 = arith.constant 2.000000e+00 : f32
    %56 = vector.broadcast %cst_18 : f32 to vector<16x32xf32>
    %57 = arith.mulf %56, %55 : vector<16x32xf32>
    %cst_19 = arith.constant 1.000000e+00 : f32
    %58 = vector.broadcast %cst_19 : f32 to vector<16x32xf32>
    %59 = arith.subf %57, %58 : vector<16x32xf32>
    %60 = vector.extract_strided_slice %52 {offsets = [0, 96], sizes = [16, 32], strides = [1, 1]} : vector<16x128xf32> to vector<16x32xf32>
    %61 = arith.mulf %54, %36 : vector<16x32xf32>
    %62 = arith.mulf %53, %59 : vector<16x32xf32>
    %63 = arith.addf %61, %62 : vector<16x32xf32>
    %64 = math.tanh %63 : vector<16x32xf32>
    %65 = arith.mulf %60, %64 : vector<16x32xf32>
    %66 = vector.extract_strided_slice %43 {offsets = [0, 128], sizes = [16, 128], strides = [1, 1]} : vector<16x256xf32> to vector<16x128xf32>
    %67 = arith.negf %66 : vector<16x128xf32>
    %68 = math.exp %67 : vector<16x128xf32>
    %cst_20 = arith.constant 1.000000e+00 : f32
    %69 = vector.broadcast %cst_20 : f32 to vector<16x128xf32>
    %70 = arith.addf %69, %68 : vector<16x128xf32>
    %71 = arith.divf %69, %70 : vector<16x128xf32>
    %72 = vector.extract_strided_slice %71 {offsets = [0, 0], sizes = [16, 32], strides = [1, 1]} : vector<16x128xf32> to vector<16x32xf32>
    %73 = vector.extract_strided_slice %71 {offsets = [0, 32], sizes = [16, 32], strides = [1, 1]} : vector<16x128xf32> to vector<16x32xf32>
    %74 = vector.extract_strided_slice %71 {offsets = [0, 64], sizes = [16, 32], strides = [1, 1]} : vector<16x128xf32> to vector<16x32xf32>
    %cst_21 = arith.constant 2.000000e+00 : f32
    %75 = vector.broadcast %cst_21 : f32 to vector<16x32xf32>
    %76 = arith.mulf %75, %74 : vector<16x32xf32>
    %cst_22 = arith.constant 1.000000e+00 : f32
    %77 = vector.broadcast %cst_22 : f32 to vector<16x32xf32>
    %78 = arith.subf %76, %77 : vector<16x32xf32>
    %79 = vector.extract_strided_slice %71 {offsets = [0, 96], sizes = [16, 32], strides = [1, 1]} : vector<16x128xf32> to vector<16x32xf32>
    %80 = arith.mulf %73, %11 : vector<16x32xf32>
    %81 = arith.mulf %72, %78 : vector<16x32xf32>
    %82 = arith.addf %80, %81 : vector<16x32xf32>
    %83 = math.tanh %82 : vector<16x32xf32>
    %84 = arith.mulf %79, %83 : vector<16x32xf32>
    %85 = tpu.concatenate %65, %84 in 1 : vector<16x32xf32>, vector<16x32xf32> -> vector<16x64xf32>
    %86 = arith.truncf %85 : vector<16x64xf32> to vector<16x64xbf16>
    %cst_23 = arith.constant dense<0.000000e+00> : vector<16x256xf32>
    %87 = tpu.matmul %86, %6, %cst_23 {dimension_numbers = #tpu.dot_dimension_numbers<[1], [0], [0], [1], [0, 0, 1, 1], [], []>} : vector<16x64xbf16>, vector<64x256xbf16>, vector<16x256xf32> -> vector<16x256xf32>
    %88 = vector.broadcast %7 : vector<1x256xf32> to vector<16x256xf32>
    %89 = arith.addf %87, %88 : vector<16x256xf32>
    %90 = vector.extract_strided_slice %89 {offsets = [0, 0], sizes = [16, 128], strides = [1, 1]} : vector<16x256xf32> to vector<16x128xf32>
    %91 = vector.extract_strided_slice %5 {offsets = [2, 0, 0], sizes = [1, 16, 128], strides = [1, 1, 1]} : vector<12x16x128xf32> to vector<1x16x128xf32>
    %92 = vector.shape_cast %91 : vector<1x16x128xf32> to vector<16x128xf32>
    %93 = arith.addf %90, %92 : vector<16x128xf32>
    %94 = arith.negf %93 : vector<16x128xf32>
    %95 = math.exp %94 : vector<16x128xf32>
    %cst_24 = arith.constant 1.000000e+00 : f32
    %96 = vector.broadcast %cst_24 : f32 to vector<16x128xf32>
    %97 = arith.addf %96, %95 : vector<16x128xf32>
    %98 = arith.divf %96, %97 : vector<16x128xf32>
    %99 = vector.extract_strided_slice %98 {offsets = [0, 0], sizes = [16, 32], strides = [1, 1]} : vector<16x128xf32> to vector<16x32xf32>
    %100 = vector.extract_strided_slice %98 {offsets = [0, 32], sizes = [16, 32], strides = [1, 1]} : vector<16x128xf32> to vector<16x32xf32>
    %101 = vector.extract_strided_slice %98 {offsets = [0, 64], sizes = [16, 32], strides = [1, 1]} : vector<16x128xf32> to vector<16x32xf32>
    %cst_25 = arith.constant 2.000000e+00 : f32
    %102 = vector.broadcast %cst_25 : f32 to vector<16x32xf32>
    %103 = arith.mulf %102, %101 : vector<16x32xf32>
    %cst_26 = arith.constant 1.000000e+00 : f32
    %104 = vector.broadcast %cst_26 : f32 to vector<16x32xf32>
    %105 = arith.subf %103, %104 : vector<16x32xf32>
    %106 = vector.extract_strided_slice %98 {offsets = [0, 96], sizes = [16, 32], strides = [1, 1]} : vector<16x128xf32> to vector<16x32xf32>
    %107 = arith.mulf %100, %63 : vector<16x32xf32>
    %108 = arith.mulf %99, %105 : vector<16x32xf32>
    %109 = arith.addf %107, %108 : vector<16x32xf32>
    %110 = math.tanh %109 : vector<16x32xf32>
    %111 = arith.mulf %106, %110 : vector<16x32xf32>
    %112 = vector.extract_strided_slice %89 {offsets = [0, 128], sizes = [16, 128], strides = [1, 1]} : vector<16x256xf32> to vector<16x128xf32>
    %113 = arith.negf %112 : vector<16x128xf32>
    %114 = math.exp %113 : vector<16x128xf32>
    %cst_27 = arith.constant 1.000000e+00 : f32
    %115 = vector.broadcast %cst_27 : f32 to vector<16x128xf32>
    %116 = arith.addf %115, %114 : vector<16x128xf32>
    %117 = arith.divf %115, %116 : vector<16x128xf32>
    %118 = vector.extract_strided_slice %117 {offsets = [0, 0], sizes = [16, 32], strides = [1, 1]} : vector<16x128xf32> to vector<16x32xf32>
    %119 = vector.extract_strided_slice %117 {offsets = [0, 32], sizes = [16, 32], strides = [1, 1]} : vector<16x128xf32> to vector<16x32xf32>
    %120 = vector.extract_strided_slice %117 {offsets = [0, 64], sizes = [16, 32], strides = [1, 1]} : vector<16x128xf32> to vector<16x32xf32>
    %cst_28 = arith.constant 2.000000e+00 : f32
    %121 = vector.broadcast %cst_28 : f32 to vector<16x32xf32>
    %122 = arith.mulf %121, %120 : vector<16x32xf32>
    %cst_29 = arith.constant 1.000000e+00 : f32
    %123 = vector.broadcast %cst_29 : f32 to vector<16x32xf32>
    %124 = arith.subf %122, %123 : vector<16x32xf32>
    %125 = vector.extract_strided_slice %117 {offsets = [0, 96], sizes = [16, 32], strides = [1, 1]} : vector<16x128xf32> to vector<16x32xf32>
    %126 = arith.mulf %119, %82 : vector<16x32xf32>
    %127 = arith.mulf %118, %124 : vector<16x32xf32>
    %128 = arith.addf %126, %127 : vector<16x32xf32>
    %129 = math.tanh %128 : vector<16x32xf32>
    %130 = arith.mulf %125, %129 : vector<16x32xf32>
    %131 = tpu.concatenate %111, %130 in 1 : vector<16x32xf32>, vector<16x32xf32> -> vector<16x64xf32>
    %132 = arith.truncf %131 : vector<16x64xf32> to vector<16x64xbf16>
    %cst_30 = arith.constant dense<0.000000e+00> : vector<16x256xf32>
    %133 = tpu.matmul %132, %6, %cst_30 {dimension_numbers = #tpu.dot_dimension_numbers<[1], [0], [0], [1], [0, 0, 1, 1], [], []>} : vector<16x64xbf16>, vector<64x256xbf16>, vector<16x256xf32> -> vector<16x256xf32>
    %134 = vector.broadcast %7 : vector<1x256xf32> to vector<16x256xf32>
    %135 = arith.addf %133, %134 : vector<16x256xf32>
    %136 = vector.extract_strided_slice %135 {offsets = [0, 0], sizes = [16, 128], strides = [1, 1]} : vector<16x256xf32> to vector<16x128xf32>
    %137 = vector.extract_strided_slice %5 {offsets = [3, 0, 0], sizes = [1, 16, 128], strides = [1, 1, 1]} : vector<12x16x128xf32> to vector<1x16x128xf32>
    %138 = vector.shape_cast %137 : vector<1x16x128xf32> to vector<16x128xf32>
    %139 = arith.addf %136, %138 : vector<16x128xf32>
    %140 = arith.negf %139 : vector<16x128xf32>
    %141 = math.exp %140 : vector<16x128xf32>
    %cst_31 = arith.constant 1.000000e+00 : f32
    %142 = vector.broadcast %cst_31 : f32 to vector<16x128xf32>
    %143 = arith.addf %142, %141 : vector<16x128xf32>
    %144 = arith.divf %142, %143 : vector<16x128xf32>
    %145 = vector.extract_strided_slice %144 {offsets = [0, 0], sizes = [16, 32], strides = [1, 1]} : vector<16x128xf32> to vector<16x32xf32>
    %146 = vector.extract_strided_slice %144 {offsets = [0, 32], sizes = [16, 32], strides = [1, 1]} : vector<16x128xf32> to vector<16x32xf32>
    %147 = vector.extract_strided_slice %144 {offsets = [0, 64], sizes = [16, 32], strides = [1, 1]} : vector<16x128xf32> to vector<16x32xf32>
    %cst_32 = arith.constant 2.000000e+00 : f32
    %148 = vector.broadcast %cst_32 : f32 to vector<16x32xf32>
    %149 = arith.mulf %148, %147 : vector<16x32xf32>
    %cst_33 = arith.constant 1.000000e+00 : f32
    %150 = vector.broadcast %cst_33 : f32 to vector<16x32xf32>
    %151 = arith.subf %149, %150 : vector<16x32xf32>
    %152 = vector.extract_strided_slice %144 {offsets = [0, 96], sizes = [16, 32], strides = [1, 1]} : vector<16x128xf32> to vector<16x32xf32>
    %153 = arith.mulf %146, %109 : vector<16x32xf32>
    %154 = arith.mulf %145, %151 : vector<16x32xf32>
    %155 = arith.addf %153, %154 : vector<16x32xf32>
    %156 = math.tanh %155 : vector<16x32xf32>
    %157 = arith.mulf %152, %156 : vector<16x32xf32>
    %158 = vector.extract_strided_slice %135 {offsets = [0, 128], sizes = [16, 128], strides = [1, 1]} : vector<16x256xf32> to vector<16x128xf32>
    %159 = arith.negf %158 : vector<16x128xf32>
    %160 = math.exp %159 : vector<16x128xf32>
    %cst_34 = arith.constant 1.000000e+00 : f32
    %161 = vector.broadcast %cst_34 : f32 to vector<16x128xf32>
    %162 = arith.addf %161, %160 : vector<16x128xf32>
    %163 = arith.divf %161, %162 : vector<16x128xf32>
    %164 = vector.extract_strided_slice %163 {offsets = [0, 0], sizes = [16, 32], strides = [1, 1]} : vector<16x128xf32> to vector<16x32xf32>
    %165 = vector.extract_strided_slice %163 {offsets = [0, 32], sizes = [16, 32], strides = [1, 1]} : vector<16x128xf32> to vector<16x32xf32>
    %166 = vector.extract_strided_slice %163 {offsets = [0, 64], sizes = [16, 32], strides = [1, 1]} : vector<16x128xf32> to vector<16x32xf32>
    %cst_35 = arith.constant 2.000000e+00 : f32
    %167 = vector.broadcast %cst_35 : f32 to vector<16x32xf32>
    %168 = arith.mulf %167, %166 : vector<16x32xf32>
    %cst_36 = arith.constant 1.000000e+00 : f32
    %169 = vector.broadcast %cst_36 : f32 to vector<16x32xf32>
    %170 = arith.subf %168, %169 : vector<16x32xf32>
    %171 = vector.extract_strided_slice %163 {offsets = [0, 96], sizes = [16, 32], strides = [1, 1]} : vector<16x128xf32> to vector<16x32xf32>
    %172 = arith.mulf %165, %128 : vector<16x32xf32>
    %173 = arith.mulf %164, %170 : vector<16x32xf32>
    %174 = arith.addf %172, %173 : vector<16x32xf32>
    %175 = math.tanh %174 : vector<16x32xf32>
    %176 = arith.mulf %171, %175 : vector<16x32xf32>
    %177 = tpu.concatenate %157, %176 in 1 : vector<16x32xf32>, vector<16x32xf32> -> vector<16x64xf32>
    %178 = arith.truncf %177 : vector<16x64xf32> to vector<16x64xbf16>
    %cst_37 = arith.constant dense<0.000000e+00> : vector<16x256xf32>
    %179 = tpu.matmul %178, %6, %cst_37 {dimension_numbers = #tpu.dot_dimension_numbers<[1], [0], [0], [1], [0, 0, 1, 1], [], []>} : vector<16x64xbf16>, vector<64x256xbf16>, vector<16x256xf32> -> vector<16x256xf32>
    %180 = vector.broadcast %7 : vector<1x256xf32> to vector<16x256xf32>
    %181 = arith.addf %179, %180 : vector<16x256xf32>
    %182 = vector.extract_strided_slice %181 {offsets = [0, 0], sizes = [16, 128], strides = [1, 1]} : vector<16x256xf32> to vector<16x128xf32>
    %183 = vector.extract_strided_slice %5 {offsets = [4, 0, 0], sizes = [1, 16, 128], strides = [1, 1, 1]} : vector<12x16x128xf32> to vector<1x16x128xf32>
    %184 = vector.shape_cast %183 : vector<1x16x128xf32> to vector<16x128xf32>
    %185 = arith.addf %182, %184 : vector<16x128xf32>
    %186 = arith.negf %185 : vector<16x128xf32>
    %187 = math.exp %186 : vector<16x128xf32>
    %cst_38 = arith.constant 1.000000e+00 : f32
    %188 = vector.broadcast %cst_38 : f32 to vector<16x128xf32>
    %189 = arith.addf %188, %187 : vector<16x128xf32>
    %190 = arith.divf %188, %189 : vector<16x128xf32>
    %191 = vector.extract_strided_slice %190 {offsets = [0, 0], sizes = [16, 32], strides = [1, 1]} : vector<16x128xf32> to vector<16x32xf32>
    %192 = vector.extract_strided_slice %190 {offsets = [0, 32], sizes = [16, 32], strides = [1, 1]} : vector<16x128xf32> to vector<16x32xf32>
    %193 = vector.extract_strided_slice %190 {offsets = [0, 64], sizes = [16, 32], strides = [1, 1]} : vector<16x128xf32> to vector<16x32xf32>
    %cst_39 = arith.constant 2.000000e+00 : f32
    %194 = vector.broadcast %cst_39 : f32 to vector<16x32xf32>
    %195 = arith.mulf %194, %193 : vector<16x32xf32>
    %cst_40 = arith.constant 1.000000e+00 : f32
    %196 = vector.broadcast %cst_40 : f32 to vector<16x32xf32>
    %197 = arith.subf %195, %196 : vector<16x32xf32>
    %198 = vector.extract_strided_slice %190 {offsets = [0, 96], sizes = [16, 32], strides = [1, 1]} : vector<16x128xf32> to vector<16x32xf32>
    %199 = arith.mulf %192, %155 : vector<16x32xf32>
    %200 = arith.mulf %191, %197 : vector<16x32xf32>
    %201 = arith.addf %199, %200 : vector<16x32xf32>
    %202 = math.tanh %201 : vector<16x32xf32>
    %203 = arith.mulf %198, %202 : vector<16x32xf32>
    %204 = vector.extract_strided_slice %181 {offsets = [0, 128], sizes = [16, 128], strides = [1, 1]} : vector<16x256xf32> to vector<16x128xf32>
    %205 = arith.negf %204 : vector<16x128xf32>
    %206 = math.exp %205 : vector<16x128xf32>
    %cst_41 = arith.constant 1.000000e+00 : f32
    %207 = vector.broadcast %cst_41 : f32 to vector<16x128xf32>
    %208 = arith.addf %207, %206 : vector<16x128xf32>
    %209 = arith.divf %207, %208 : vector<16x128xf32>
    %210 = vector.extract_strided_slice %209 {offsets = [0, 0], sizes = [16, 32], strides = [1, 1]} : vector<16x128xf32> to vector<16x32xf32>
    %211 = vector.extract_strided_slice %209 {offsets = [0, 32], sizes = [16, 32], strides = [1, 1]} : vector<16x128xf32> to vector<16x32xf32>
    %212 = vector.extract_strided_slice %209 {offsets = [0, 64], sizes = [16, 32], strides = [1, 1]} : vector<16x128xf32> to vector<16x32xf32>
    %cst_42 = arith.constant 2.000000e+00 : f32
    %213 = vector.broadcast %cst_42 : f32 to vector<16x32xf32>
    %214 = arith.mulf %213, %212 : vector<16x32xf32>
    %cst_43 = arith.constant 1.000000e+00 : f32
    %215 = vector.broadcast %cst_43 : f32 to vector<16x32xf32>
    %216 = arith.subf %214, %215 : vector<16x32xf32>
    %217 = vector.extract_strided_slice %209 {offsets = [0, 96], sizes = [16, 32], strides = [1, 1]} : vector<16x128xf32> to vector<16x32xf32>
    %218 = arith.mulf %211, %174 : vector<16x32xf32>
    %219 = arith.mulf %210, %216 : vector<16x32xf32>
    %220 = arith.addf %218, %219 : vector<16x32xf32>
    %221 = math.tanh %220 : vector<16x32xf32>
    %222 = arith.mulf %217, %221 : vector<16x32xf32>
    %223 = tpu.concatenate %203, %222 in 1 : vector<16x32xf32>, vector<16x32xf32> -> vector<16x64xf32>
    %224 = arith.truncf %223 : vector<16x64xf32> to vector<16x64xbf16>
    %cst_44 = arith.constant dense<0.000000e+00> : vector<16x256xf32>
    %225 = tpu.matmul %224, %6, %cst_44 {dimension_numbers = #tpu.dot_dimension_numbers<[1], [0], [0], [1], [0, 0, 1, 1], [], []>} : vector<16x64xbf16>, vector<64x256xbf16>, vector<16x256xf32> -> vector<16x256xf32>
    %226 = vector.broadcast %7 : vector<1x256xf32> to vector<16x256xf32>
    %227 = arith.addf %225, %226 : vector<16x256xf32>
    %228 = vector.extract_strided_slice %227 {offsets = [0, 0], sizes = [16, 128], strides = [1, 1]} : vector<16x256xf32> to vector<16x128xf32>
    %229 = vector.extract_strided_slice %5 {offsets = [5, 0, 0], sizes = [1, 16, 128], strides = [1, 1, 1]} : vector<12x16x128xf32> to vector<1x16x128xf32>
    %230 = vector.shape_cast %229 : vector<1x16x128xf32> to vector<16x128xf32>
    %231 = arith.addf %228, %230 : vector<16x128xf32>
    %232 = arith.negf %231 : vector<16x128xf32>
    %233 = math.exp %232 : vector<16x128xf32>
    %cst_45 = arith.constant 1.000000e+00 : f32
    %234 = vector.broadcast %cst_45 : f32 to vector<16x128xf32>
    %235 = arith.addf %234, %233 : vector<16x128xf32>
    %236 = arith.divf %234, %235 : vector<16x128xf32>
    %237 = vector.extract_strided_slice %236 {offsets = [0, 0], sizes = [16, 32], strides = [1, 1]} : vector<16x128xf32> to vector<16x32xf32>
    %238 = vector.extract_strided_slice %236 {offsets = [0, 32], sizes = [16, 32], strides = [1, 1]} : vector<16x128xf32> to vector<16x32xf32>
    %239 = vector.extract_strided_slice %236 {offsets = [0, 64], sizes = [16, 32], strides = [1, 1]} : vector<16x128xf32> to vector<16x32xf32>
    %cst_46 = arith.constant 2.000000e+00 : f32
    %240 = vector.broadcast %cst_46 : f32 to vector<16x32xf32>
    %241 = arith.mulf %240, %239 : vector<16x32xf32>
    %cst_47 = arith.constant 1.000000e+00 : f32
    %242 = vector.broadcast %cst_47 : f32 to vector<16x32xf32>
    %243 = arith.subf %241, %242 : vector<16x32xf32>
    %244 = vector.extract_strided_slice %236 {offsets = [0, 96], sizes = [16, 32], strides = [1, 1]} : vector<16x128xf32> to vector<16x32xf32>
    %245 = arith.mulf %238, %201 : vector<16x32xf32>
    %246 = arith.mulf %237, %243 : vector<16x32xf32>
    %247 = arith.addf %245, %246 : vector<16x32xf32>
    %248 = math.tanh %247 : vector<16x32xf32>
    %249 = arith.mulf %244, %248 : vector<16x32xf32>
    %250 = vector.extract_strided_slice %227 {offsets = [0, 128], sizes = [16, 128], strides = [1, 1]} : vector<16x256xf32> to vector<16x128xf32>
    %251 = arith.negf %250 : vector<16x128xf32>
    %252 = math.exp %251 : vector<16x128xf32>
    %cst_48 = arith.constant 1.000000e+00 : f32
    %253 = vector.broadcast %cst_48 : f32 to vector<16x128xf32>
    %254 = arith.addf %253, %252 : vector<16x128xf32>
    %255 = arith.divf %253, %254 : vector<16x128xf32>
    %256 = vector.extract_strided_slice %255 {offsets = [0, 0], sizes = [16, 32], strides = [1, 1]} : vector<16x128xf32> to vector<16x32xf32>
    %257 = vector.extract_strided_slice %255 {offsets = [0, 32], sizes = [16, 32], strides = [1, 1]} : vector<16x128xf32> to vector<16x32xf32>
    %258 = vector.extract_strided_slice %255 {offsets = [0, 64], sizes = [16, 32], strides = [1, 1]} : vector<16x128xf32> to vector<16x32xf32>
    %cst_49 = arith.constant 2.000000e+00 : f32
    %259 = vector.broadcast %cst_49 : f32 to vector<16x32xf32>
    %260 = arith.mulf %259, %258 : vector<16x32xf32>
    %cst_50 = arith.constant 1.000000e+00 : f32
    %261 = vector.broadcast %cst_50 : f32 to vector<16x32xf32>
    %262 = arith.subf %260, %261 : vector<16x32xf32>
    %263 = vector.extract_strided_slice %255 {offsets = [0, 96], sizes = [16, 32], strides = [1, 1]} : vector<16x128xf32> to vector<16x32xf32>
    %264 = arith.mulf %257, %220 : vector<16x32xf32>
    %265 = arith.mulf %256, %262 : vector<16x32xf32>
    %266 = arith.addf %264, %265 : vector<16x32xf32>
    %267 = math.tanh %266 : vector<16x32xf32>
    %268 = arith.mulf %263, %267 : vector<16x32xf32>
    %269 = tpu.concatenate %249, %268 in 1 : vector<16x32xf32>, vector<16x32xf32> -> vector<16x64xf32>
    %270 = arith.truncf %269 : vector<16x64xf32> to vector<16x64xbf16>
    %cst_51 = arith.constant dense<0.000000e+00> : vector<16x256xf32>
    %271 = tpu.matmul %270, %6, %cst_51 {dimension_numbers = #tpu.dot_dimension_numbers<[1], [0], [0], [1], [0, 0, 1, 1], [], []>} : vector<16x64xbf16>, vector<64x256xbf16>, vector<16x256xf32> -> vector<16x256xf32>
    %272 = vector.broadcast %7 : vector<1x256xf32> to vector<16x256xf32>
    %273 = arith.addf %271, %272 : vector<16x256xf32>
    %274 = vector.extract_strided_slice %273 {offsets = [0, 0], sizes = [16, 128], strides = [1, 1]} : vector<16x256xf32> to vector<16x128xf32>
    %275 = vector.extract_strided_slice %5 {offsets = [6, 0, 0], sizes = [1, 16, 128], strides = [1, 1, 1]} : vector<12x16x128xf32> to vector<1x16x128xf32>
    %276 = vector.shape_cast %275 : vector<1x16x128xf32> to vector<16x128xf32>
    %277 = arith.addf %274, %276 : vector<16x128xf32>
    %278 = arith.negf %277 : vector<16x128xf32>
    %279 = math.exp %278 : vector<16x128xf32>
    %cst_52 = arith.constant 1.000000e+00 : f32
    %280 = vector.broadcast %cst_52 : f32 to vector<16x128xf32>
    %281 = arith.addf %280, %279 : vector<16x128xf32>
    %282 = arith.divf %280, %281 : vector<16x128xf32>
    %283 = vector.extract_strided_slice %282 {offsets = [0, 0], sizes = [16, 32], strides = [1, 1]} : vector<16x128xf32> to vector<16x32xf32>
    %284 = vector.extract_strided_slice %282 {offsets = [0, 32], sizes = [16, 32], strides = [1, 1]} : vector<16x128xf32> to vector<16x32xf32>
    %285 = vector.extract_strided_slice %282 {offsets = [0, 64], sizes = [16, 32], strides = [1, 1]} : vector<16x128xf32> to vector<16x32xf32>
    %cst_53 = arith.constant 2.000000e+00 : f32
    %286 = vector.broadcast %cst_53 : f32 to vector<16x32xf32>
    %287 = arith.mulf %286, %285 : vector<16x32xf32>
    %cst_54 = arith.constant 1.000000e+00 : f32
    %288 = vector.broadcast %cst_54 : f32 to vector<16x32xf32>
    %289 = arith.subf %287, %288 : vector<16x32xf32>
    %290 = vector.extract_strided_slice %282 {offsets = [0, 96], sizes = [16, 32], strides = [1, 1]} : vector<16x128xf32> to vector<16x32xf32>
    %291 = arith.mulf %284, %247 : vector<16x32xf32>
    %292 = arith.mulf %283, %289 : vector<16x32xf32>
    %293 = arith.addf %291, %292 : vector<16x32xf32>
    %294 = math.tanh %293 : vector<16x32xf32>
    %295 = arith.mulf %290, %294 : vector<16x32xf32>
    %296 = vector.extract_strided_slice %273 {offsets = [0, 128], sizes = [16, 128], strides = [1, 1]} : vector<16x256xf32> to vector<16x128xf32>
    %297 = arith.negf %296 : vector<16x128xf32>
    %298 = math.exp %297 : vector<16x128xf32>
    %cst_55 = arith.constant 1.000000e+00 : f32
    %299 = vector.broadcast %cst_55 : f32 to vector<16x128xf32>
    %300 = arith.addf %299, %298 : vector<16x128xf32>
    %301 = arith.divf %299, %300 : vector<16x128xf32>
    %302 = vector.extract_strided_slice %301 {offsets = [0, 0], sizes = [16, 32], strides = [1, 1]} : vector<16x128xf32> to vector<16x32xf32>
    %303 = vector.extract_strided_slice %301 {offsets = [0, 32], sizes = [16, 32], strides = [1, 1]} : vector<16x128xf32> to vector<16x32xf32>
    %304 = vector.extract_strided_slice %301 {offsets = [0, 64], sizes = [16, 32], strides = [1, 1]} : vector<16x128xf32> to vector<16x32xf32>
    %cst_56 = arith.constant 2.000000e+00 : f32
    %305 = vector.broadcast %cst_56 : f32 to vector<16x32xf32>
    %306 = arith.mulf %305, %304 : vector<16x32xf32>
    %cst_57 = arith.constant 1.000000e+00 : f32
    %307 = vector.broadcast %cst_57 : f32 to vector<16x32xf32>
    %308 = arith.subf %306, %307 : vector<16x32xf32>
    %309 = vector.extract_strided_slice %301 {offsets = [0, 96], sizes = [16, 32], strides = [1, 1]} : vector<16x128xf32> to vector<16x32xf32>
    %310 = arith.mulf %303, %266 : vector<16x32xf32>
    %311 = arith.mulf %302, %308 : vector<16x32xf32>
    %312 = arith.addf %310, %311 : vector<16x32xf32>
    %313 = math.tanh %312 : vector<16x32xf32>
    %314 = arith.mulf %309, %313 : vector<16x32xf32>
    %315 = tpu.concatenate %295, %314 in 1 : vector<16x32xf32>, vector<16x32xf32> -> vector<16x64xf32>
    %316 = arith.truncf %315 : vector<16x64xf32> to vector<16x64xbf16>
    %cst_58 = arith.constant dense<0.000000e+00> : vector<16x256xf32>
    %317 = tpu.matmul %316, %6, %cst_58 {dimension_numbers = #tpu.dot_dimension_numbers<[1], [0], [0], [1], [0, 0, 1, 1], [], []>} : vector<16x64xbf16>, vector<64x256xbf16>, vector<16x256xf32> -> vector<16x256xf32>
    %318 = vector.broadcast %7 : vector<1x256xf32> to vector<16x256xf32>
    %319 = arith.addf %317, %318 : vector<16x256xf32>
    %320 = vector.extract_strided_slice %319 {offsets = [0, 0], sizes = [16, 128], strides = [1, 1]} : vector<16x256xf32> to vector<16x128xf32>
    %321 = vector.extract_strided_slice %5 {offsets = [7, 0, 0], sizes = [1, 16, 128], strides = [1, 1, 1]} : vector<12x16x128xf32> to vector<1x16x128xf32>
    %322 = vector.shape_cast %321 : vector<1x16x128xf32> to vector<16x128xf32>
    %323 = arith.addf %320, %322 : vector<16x128xf32>
    %324 = arith.negf %323 : vector<16x128xf32>
    %325 = math.exp %324 : vector<16x128xf32>
    %cst_59 = arith.constant 1.000000e+00 : f32
    %326 = vector.broadcast %cst_59 : f32 to vector<16x128xf32>
    %327 = arith.addf %326, %325 : vector<16x128xf32>
    %328 = arith.divf %326, %327 : vector<16x128xf32>
    %329 = vector.extract_strided_slice %328 {offsets = [0, 0], sizes = [16, 32], strides = [1, 1]} : vector<16x128xf32> to vector<16x32xf32>
    %330 = vector.extract_strided_slice %328 {offsets = [0, 32], sizes = [16, 32], strides = [1, 1]} : vector<16x128xf32> to vector<16x32xf32>
    %331 = vector.extract_strided_slice %328 {offsets = [0, 64], sizes = [16, 32], strides = [1, 1]} : vector<16x128xf32> to vector<16x32xf32>
    %cst_60 = arith.constant 2.000000e+00 : f32
    %332 = vector.broadcast %cst_60 : f32 to vector<16x32xf32>
    %333 = arith.mulf %332, %331 : vector<16x32xf32>
    %cst_61 = arith.constant 1.000000e+00 : f32
    %334 = vector.broadcast %cst_61 : f32 to vector<16x32xf32>
    %335 = arith.subf %333, %334 : vector<16x32xf32>
    %336 = vector.extract_strided_slice %328 {offsets = [0, 96], sizes = [16, 32], strides = [1, 1]} : vector<16x128xf32> to vector<16x32xf32>
    %337 = arith.mulf %330, %293 : vector<16x32xf32>
    %338 = arith.mulf %329, %335 : vector<16x32xf32>
    %339 = arith.addf %337, %338 : vector<16x32xf32>
    %340 = math.tanh %339 : vector<16x32xf32>
    %341 = arith.mulf %336, %340 : vector<16x32xf32>
    %342 = vector.extract_strided_slice %319 {offsets = [0, 128], sizes = [16, 128], strides = [1, 1]} : vector<16x256xf32> to vector<16x128xf32>
    %343 = arith.negf %342 : vector<16x128xf32>
    %344 = math.exp %343 : vector<16x128xf32>
    %cst_62 = arith.constant 1.000000e+00 : f32
    %345 = vector.broadcast %cst_62 : f32 to vector<16x128xf32>
    %346 = arith.addf %345, %344 : vector<16x128xf32>
    %347 = arith.divf %345, %346 : vector<16x128xf32>
    %348 = vector.extract_strided_slice %347 {offsets = [0, 0], sizes = [16, 32], strides = [1, 1]} : vector<16x128xf32> to vector<16x32xf32>
    %349 = vector.extract_strided_slice %347 {offsets = [0, 32], sizes = [16, 32], strides = [1, 1]} : vector<16x128xf32> to vector<16x32xf32>
    %350 = vector.extract_strided_slice %347 {offsets = [0, 64], sizes = [16, 32], strides = [1, 1]} : vector<16x128xf32> to vector<16x32xf32>
    %cst_63 = arith.constant 2.000000e+00 : f32
    %351 = vector.broadcast %cst_63 : f32 to vector<16x32xf32>
    %352 = arith.mulf %351, %350 : vector<16x32xf32>
    %cst_64 = arith.constant 1.000000e+00 : f32
    %353 = vector.broadcast %cst_64 : f32 to vector<16x32xf32>
    %354 = arith.subf %352, %353 : vector<16x32xf32>
    %355 = vector.extract_strided_slice %347 {offsets = [0, 96], sizes = [16, 32], strides = [1, 1]} : vector<16x128xf32> to vector<16x32xf32>
    %356 = arith.mulf %349, %312 : vector<16x32xf32>
    %357 = arith.mulf %348, %354 : vector<16x32xf32>
    %358 = arith.addf %356, %357 : vector<16x32xf32>
    %359 = math.tanh %358 : vector<16x32xf32>
    %360 = arith.mulf %355, %359 : vector<16x32xf32>
    %361 = tpu.concatenate %341, %360 in 1 : vector<16x32xf32>, vector<16x32xf32> -> vector<16x64xf32>
    %362 = arith.truncf %361 : vector<16x64xf32> to vector<16x64xbf16>
    %cst_65 = arith.constant dense<0.000000e+00> : vector<16x256xf32>
    %363 = tpu.matmul %362, %6, %cst_65 {dimension_numbers = #tpu.dot_dimension_numbers<[1], [0], [0], [1], [0, 0, 1, 1], [], []>} : vector<16x64xbf16>, vector<64x256xbf16>, vector<16x256xf32> -> vector<16x256xf32>
    %364 = vector.broadcast %7 : vector<1x256xf32> to vector<16x256xf32>
    %365 = arith.addf %363, %364 : vector<16x256xf32>
    %366 = vector.extract_strided_slice %365 {offsets = [0, 0], sizes = [16, 128], strides = [1, 1]} : vector<16x256xf32> to vector<16x128xf32>
    %367 = vector.extract_strided_slice %5 {offsets = [8, 0, 0], sizes = [1, 16, 128], strides = [1, 1, 1]} : vector<12x16x128xf32> to vector<1x16x128xf32>
    %368 = vector.shape_cast %367 : vector<1x16x128xf32> to vector<16x128xf32>
    %369 = arith.addf %366, %368 : vector<16x128xf32>
    %370 = arith.negf %369 : vector<16x128xf32>
    %371 = math.exp %370 : vector<16x128xf32>
    %cst_66 = arith.constant 1.000000e+00 : f32
    %372 = vector.broadcast %cst_66 : f32 to vector<16x128xf32>
    %373 = arith.addf %372, %371 : vector<16x128xf32>
    %374 = arith.divf %372, %373 : vector<16x128xf32>
    %375 = vector.extract_strided_slice %374 {offsets = [0, 0], sizes = [16, 32], strides = [1, 1]} : vector<16x128xf32> to vector<16x32xf32>
    %376 = vector.extract_strided_slice %374 {offsets = [0, 32], sizes = [16, 32], strides = [1, 1]} : vector<16x128xf32> to vector<16x32xf32>
    %377 = vector.extract_strided_slice %374 {offsets = [0, 64], sizes = [16, 32], strides = [1, 1]} : vector<16x128xf32> to vector<16x32xf32>
    %cst_67 = arith.constant 2.000000e+00 : f32
    %378 = vector.broadcast %cst_67 : f32 to vector<16x32xf32>
    %379 = arith.mulf %378, %377 : vector<16x32xf32>
    %cst_68 = arith.constant 1.000000e+00 : f32
    %380 = vector.broadcast %cst_68 : f32 to vector<16x32xf32>
    %381 = arith.subf %379, %380 : vector<16x32xf32>
    %382 = vector.extract_strided_slice %374 {offsets = [0, 96], sizes = [16, 32], strides = [1, 1]} : vector<16x128xf32> to vector<16x32xf32>
    %383 = arith.mulf %376, %339 : vector<16x32xf32>
    %384 = arith.mulf %375, %381 : vector<16x32xf32>
    %385 = arith.addf %383, %384 : vector<16x32xf32>
    %386 = math.tanh %385 : vector<16x32xf32>
    %387 = arith.mulf %382, %386 : vector<16x32xf32>
    %388 = vector.extract_strided_slice %365 {offsets = [0, 128], sizes = [16, 128], strides = [1, 1]} : vector<16x256xf32> to vector<16x128xf32>
    %389 = arith.negf %388 : vector<16x128xf32>
    %390 = math.exp %389 : vector<16x128xf32>
    %cst_69 = arith.constant 1.000000e+00 : f32
    %391 = vector.broadcast %cst_69 : f32 to vector<16x128xf32>
    %392 = arith.addf %391, %390 : vector<16x128xf32>
    %393 = arith.divf %391, %392 : vector<16x128xf32>
    %394 = vector.extract_strided_slice %393 {offsets = [0, 0], sizes = [16, 32], strides = [1, 1]} : vector<16x128xf32> to vector<16x32xf32>
    %395 = vector.extract_strided_slice %393 {offsets = [0, 32], sizes = [16, 32], strides = [1, 1]} : vector<16x128xf32> to vector<16x32xf32>
    %396 = vector.extract_strided_slice %393 {offsets = [0, 64], sizes = [16, 32], strides = [1, 1]} : vector<16x128xf32> to vector<16x32xf32>
    %cst_70 = arith.constant 2.000000e+00 : f32
    %397 = vector.broadcast %cst_70 : f32 to vector<16x32xf32>
    %398 = arith.mulf %397, %396 : vector<16x32xf32>
    %cst_71 = arith.constant 1.000000e+00 : f32
    %399 = vector.broadcast %cst_71 : f32 to vector<16x32xf32>
    %400 = arith.subf %398, %399 : vector<16x32xf32>
    %401 = vector.extract_strided_slice %393 {offsets = [0, 96], sizes = [16, 32], strides = [1, 1]} : vector<16x128xf32> to vector<16x32xf32>
    %402 = arith.mulf %395, %358 : vector<16x32xf32>
    %403 = arith.mulf %394, %400 : vector<16x32xf32>
    %404 = arith.addf %402, %403 : vector<16x32xf32>
    %405 = math.tanh %404 : vector<16x32xf32>
    %406 = arith.mulf %401, %405 : vector<16x32xf32>
    %407 = tpu.concatenate %387, %406 in 1 : vector<16x32xf32>, vector<16x32xf32> -> vector<16x64xf32>
    %408 = arith.truncf %407 : vector<16x64xf32> to vector<16x64xbf16>
    %cst_72 = arith.constant dense<0.000000e+00> : vector<16x256xf32>
    %409 = tpu.matmul %408, %6, %cst_72 {dimension_numbers = #tpu.dot_dimension_numbers<[1], [0], [0], [1], [0, 0, 1, 1], [], []>} : vector<16x64xbf16>, vector<64x256xbf16>, vector<16x256xf32> -> vector<16x256xf32>
    %410 = vector.broadcast %7 : vector<1x256xf32> to vector<16x256xf32>
    %411 = arith.addf %409, %410 : vector<16x256xf32>
    %412 = vector.extract_strided_slice %411 {offsets = [0, 0], sizes = [16, 128], strides = [1, 1]} : vector<16x256xf32> to vector<16x128xf32>
    %413 = vector.extract_strided_slice %5 {offsets = [9, 0, 0], sizes = [1, 16, 128], strides = [1, 1, 1]} : vector<12x16x128xf32> to vector<1x16x128xf32>
    %414 = vector.shape_cast %413 : vector<1x16x128xf32> to vector<16x128xf32>
    %415 = arith.addf %412, %414 : vector<16x128xf32>
    %416 = arith.negf %415 : vector<16x128xf32>
    %417 = math.exp %416 : vector<16x128xf32>
    %cst_73 = arith.constant 1.000000e+00 : f32
    %418 = vector.broadcast %cst_73 : f32 to vector<16x128xf32>
    %419 = arith.addf %418, %417 : vector<16x128xf32>
    %420 = arith.divf %418, %419 : vector<16x128xf32>
    %421 = vector.extract_strided_slice %420 {offsets = [0, 0], sizes = [16, 32], strides = [1, 1]} : vector<16x128xf32> to vector<16x32xf32>
    %422 = vector.extract_strided_slice %420 {offsets = [0, 32], sizes = [16, 32], strides = [1, 1]} : vector<16x128xf32> to vector<16x32xf32>
    %423 = vector.extract_strided_slice %420 {offsets = [0, 64], sizes = [16, 32], strides = [1, 1]} : vector<16x128xf32> to vector<16x32xf32>
    %cst_74 = arith.constant 2.000000e+00 : f32
    %424 = vector.broadcast %cst_74 : f32 to vector<16x32xf32>
    %425 = arith.mulf %424, %423 : vector<16x32xf32>
    %cst_75 = arith.constant 1.000000e+00 : f32
    %426 = vector.broadcast %cst_75 : f32 to vector<16x32xf32>
    %427 = arith.subf %425, %426 : vector<16x32xf32>
    %428 = vector.extract_strided_slice %420 {offsets = [0, 96], sizes = [16, 32], strides = [1, 1]} : vector<16x128xf32> to vector<16x32xf32>
    %429 = arith.mulf %422, %385 : vector<16x32xf32>
    %430 = arith.mulf %421, %427 : vector<16x32xf32>
    %431 = arith.addf %429, %430 : vector<16x32xf32>
    %432 = math.tanh %431 : vector<16x32xf32>
    %433 = arith.mulf %428, %432 : vector<16x32xf32>
    %434 = vector.extract_strided_slice %411 {offsets = [0, 128], sizes = [16, 128], strides = [1, 1]} : vector<16x256xf32> to vector<16x128xf32>
    %435 = arith.negf %434 : vector<16x128xf32>
    %436 = math.exp %435 : vector<16x128xf32>
    %cst_76 = arith.constant 1.000000e+00 : f32
    %437 = vector.broadcast %cst_76 : f32 to vector<16x128xf32>
    %438 = arith.addf %437, %436 : vector<16x128xf32>
    %439 = arith.divf %437, %438 : vector<16x128xf32>
    %440 = vector.extract_strided_slice %439 {offsets = [0, 0], sizes = [16, 32], strides = [1, 1]} : vector<16x128xf32> to vector<16x32xf32>
    %441 = vector.extract_strided_slice %439 {offsets = [0, 32], sizes = [16, 32], strides = [1, 1]} : vector<16x128xf32> to vector<16x32xf32>
    %442 = vector.extract_strided_slice %439 {offsets = [0, 64], sizes = [16, 32], strides = [1, 1]} : vector<16x128xf32> to vector<16x32xf32>
    %cst_77 = arith.constant 2.000000e+00 : f32
    %443 = vector.broadcast %cst_77 : f32 to vector<16x32xf32>
    %444 = arith.mulf %443, %442 : vector<16x32xf32>
    %cst_78 = arith.constant 1.000000e+00 : f32
    %445 = vector.broadcast %cst_78 : f32 to vector<16x32xf32>
    %446 = arith.subf %444, %445 : vector<16x32xf32>
    %447 = vector.extract_strided_slice %439 {offsets = [0, 96], sizes = [16, 32], strides = [1, 1]} : vector<16x128xf32> to vector<16x32xf32>
    %448 = arith.mulf %441, %404 : vector<16x32xf32>
    %449 = arith.mulf %440, %446 : vector<16x32xf32>
    %450 = arith.addf %448, %449 : vector<16x32xf32>
    %451 = math.tanh %450 : vector<16x32xf32>
    %452 = arith.mulf %447, %451 : vector<16x32xf32>
    %453 = tpu.concatenate %433, %452 in 1 : vector<16x32xf32>, vector<16x32xf32> -> vector<16x64xf32>
    %454 = arith.truncf %453 : vector<16x64xf32> to vector<16x64xbf16>
    %cst_79 = arith.constant dense<0.000000e+00> : vector<16x256xf32>
    %455 = tpu.matmul %454, %6, %cst_79 {dimension_numbers = #tpu.dot_dimension_numbers<[1], [0], [0], [1], [0, 0, 1, 1], [], []>} : vector<16x64xbf16>, vector<64x256xbf16>, vector<16x256xf32> -> vector<16x256xf32>
    %456 = vector.broadcast %7 : vector<1x256xf32> to vector<16x256xf32>
    %457 = arith.addf %455, %456 : vector<16x256xf32>
    %458 = vector.extract_strided_slice %457 {offsets = [0, 0], sizes = [16, 128], strides = [1, 1]} : vector<16x256xf32> to vector<16x128xf32>
    %459 = vector.extract_strided_slice %5 {offsets = [10, 0, 0], sizes = [1, 16, 128], strides = [1, 1, 1]} : vector<12x16x128xf32> to vector<1x16x128xf32>
    %460 = vector.shape_cast %459 : vector<1x16x128xf32> to vector<16x128xf32>
    %461 = arith.addf %458, %460 : vector<16x128xf32>
    %462 = arith.negf %461 : vector<16x128xf32>
    %463 = math.exp %462 : vector<16x128xf32>
    %cst_80 = arith.constant 1.000000e+00 : f32
    %464 = vector.broadcast %cst_80 : f32 to vector<16x128xf32>
    %465 = arith.addf %464, %463 : vector<16x128xf32>
    %466 = arith.divf %464, %465 : vector<16x128xf32>
    %467 = vector.extract_strided_slice %466 {offsets = [0, 0], sizes = [16, 32], strides = [1, 1]} : vector<16x128xf32> to vector<16x32xf32>
    %468 = vector.extract_strided_slice %466 {offsets = [0, 32], sizes = [16, 32], strides = [1, 1]} : vector<16x128xf32> to vector<16x32xf32>
    %469 = vector.extract_strided_slice %466 {offsets = [0, 64], sizes = [16, 32], strides = [1, 1]} : vector<16x128xf32> to vector<16x32xf32>
    %cst_81 = arith.constant 2.000000e+00 : f32
    %470 = vector.broadcast %cst_81 : f32 to vector<16x32xf32>
    %471 = arith.mulf %470, %469 : vector<16x32xf32>
    %cst_82 = arith.constant 1.000000e+00 : f32
    %472 = vector.broadcast %cst_82 : f32 to vector<16x32xf32>
    %473 = arith.subf %471, %472 : vector<16x32xf32>
    %474 = vector.extract_strided_slice %466 {offsets = [0, 96], sizes = [16, 32], strides = [1, 1]} : vector<16x128xf32> to vector<16x32xf32>
    %475 = arith.mulf %468, %431 : vector<16x32xf32>
    %476 = arith.mulf %467, %473 : vector<16x32xf32>
    %477 = arith.addf %475, %476 : vector<16x32xf32>
    %478 = math.tanh %477 : vector<16x32xf32>
    %479 = arith.mulf %474, %478 : vector<16x32xf32>
    %480 = vector.extract_strided_slice %457 {offsets = [0, 128], sizes = [16, 128], strides = [1, 1]} : vector<16x256xf32> to vector<16x128xf32>
    %481 = arith.negf %480 : vector<16x128xf32>
    %482 = math.exp %481 : vector<16x128xf32>
    %cst_83 = arith.constant 1.000000e+00 : f32
    %483 = vector.broadcast %cst_83 : f32 to vector<16x128xf32>
    %484 = arith.addf %483, %482 : vector<16x128xf32>
    %485 = arith.divf %483, %484 : vector<16x128xf32>
    %486 = vector.extract_strided_slice %485 {offsets = [0, 0], sizes = [16, 32], strides = [1, 1]} : vector<16x128xf32> to vector<16x32xf32>
    %487 = vector.extract_strided_slice %485 {offsets = [0, 32], sizes = [16, 32], strides = [1, 1]} : vector<16x128xf32> to vector<16x32xf32>
    %488 = vector.extract_strided_slice %485 {offsets = [0, 64], sizes = [16, 32], strides = [1, 1]} : vector<16x128xf32> to vector<16x32xf32>
    %cst_84 = arith.constant 2.000000e+00 : f32
    %489 = vector.broadcast %cst_84 : f32 to vector<16x32xf32>
    %490 = arith.mulf %489, %488 : vector<16x32xf32>
    %cst_85 = arith.constant 1.000000e+00 : f32
    %491 = vector.broadcast %cst_85 : f32 to vector<16x32xf32>
    %492 = arith.subf %490, %491 : vector<16x32xf32>
    %493 = vector.extract_strided_slice %485 {offsets = [0, 96], sizes = [16, 32], strides = [1, 1]} : vector<16x128xf32> to vector<16x32xf32>
    %494 = arith.mulf %487, %450 : vector<16x32xf32>
    %495 = arith.mulf %486, %492 : vector<16x32xf32>
    %496 = arith.addf %494, %495 : vector<16x32xf32>
    %497 = math.tanh %496 : vector<16x32xf32>
    %498 = arith.mulf %493, %497 : vector<16x32xf32>
    %499 = tpu.concatenate %479, %498 in 1 : vector<16x32xf32>, vector<16x32xf32> -> vector<16x64xf32>
    %500 = arith.truncf %499 : vector<16x64xf32> to vector<16x64xbf16>
    %cst_86 = arith.constant dense<0.000000e+00> : vector<16x256xf32>
    %501 = tpu.matmul %500, %6, %cst_86 {dimension_numbers = #tpu.dot_dimension_numbers<[1], [0], [0], [1], [0, 0, 1, 1], [], []>} : vector<16x64xbf16>, vector<64x256xbf16>, vector<16x256xf32> -> vector<16x256xf32>
    %502 = vector.broadcast %7 : vector<1x256xf32> to vector<16x256xf32>
    %503 = arith.addf %501, %502 : vector<16x256xf32>
    %504 = vector.extract_strided_slice %503 {offsets = [0, 0], sizes = [16, 128], strides = [1, 1]} : vector<16x256xf32> to vector<16x128xf32>
    %505 = vector.extract_strided_slice %5 {offsets = [11, 0, 0], sizes = [1, 16, 128], strides = [1, 1, 1]} : vector<12x16x128xf32> to vector<1x16x128xf32>
    %506 = vector.shape_cast %505 : vector<1x16x128xf32> to vector<16x128xf32>
    %507 = arith.addf %504, %506 : vector<16x128xf32>
    %508 = arith.negf %507 : vector<16x128xf32>
    %509 = math.exp %508 : vector<16x128xf32>
    %cst_87 = arith.constant 1.000000e+00 : f32
    %510 = vector.broadcast %cst_87 : f32 to vector<16x128xf32>
    %511 = arith.addf %510, %509 : vector<16x128xf32>
    %512 = arith.divf %510, %511 : vector<16x128xf32>
    %513 = vector.extract_strided_slice %512 {offsets = [0, 0], sizes = [16, 32], strides = [1, 1]} : vector<16x128xf32> to vector<16x32xf32>
    %514 = vector.extract_strided_slice %512 {offsets = [0, 32], sizes = [16, 32], strides = [1, 1]} : vector<16x128xf32> to vector<16x32xf32>
    %515 = vector.extract_strided_slice %512 {offsets = [0, 64], sizes = [16, 32], strides = [1, 1]} : vector<16x128xf32> to vector<16x32xf32>
    %cst_88 = arith.constant 2.000000e+00 : f32
    %516 = vector.broadcast %cst_88 : f32 to vector<16x32xf32>
    %517 = arith.mulf %516, %515 : vector<16x32xf32>
    %cst_89 = arith.constant 1.000000e+00 : f32
    %518 = vector.broadcast %cst_89 : f32 to vector<16x32xf32>
    %519 = arith.subf %517, %518 : vector<16x32xf32>
    %520 = vector.extract_strided_slice %512 {offsets = [0, 96], sizes = [16, 32], strides = [1, 1]} : vector<16x128xf32> to vector<16x32xf32>
    %521 = arith.mulf %514, %477 : vector<16x32xf32>
    %522 = arith.mulf %513, %519 : vector<16x32xf32>
    %523 = arith.addf %521, %522 : vector<16x32xf32>
    %524 = math.tanh %523 : vector<16x32xf32>
    %525 = arith.mulf %520, %524 : vector<16x32xf32>
    %526 = vector.extract_strided_slice %503 {offsets = [0, 128], sizes = [16, 128], strides = [1, 1]} : vector<16x256xf32> to vector<16x128xf32>
    %527 = arith.negf %526 : vector<16x128xf32>
    %528 = math.exp %527 : vector<16x128xf32>
    %cst_90 = arith.constant 1.000000e+00 : f32
    %529 = vector.broadcast %cst_90 : f32 to vector<16x128xf32>
    %530 = arith.addf %529, %528 : vector<16x128xf32>
    %531 = arith.divf %529, %530 : vector<16x128xf32>
    %532 = vector.extract_strided_slice %531 {offsets = [0, 0], sizes = [16, 32], strides = [1, 1]} : vector<16x128xf32> to vector<16x32xf32>
    %533 = vector.extract_strided_slice %531 {offsets = [0, 32], sizes = [16, 32], strides = [1, 1]} : vector<16x128xf32> to vector<16x32xf32>
    %534 = vector.extract_strided_slice %531 {offsets = [0, 64], sizes = [16, 32], strides = [1, 1]} : vector<16x128xf32> to vector<16x32xf32>
    %cst_91 = arith.constant 2.000000e+00 : f32
    %535 = vector.broadcast %cst_91 : f32 to vector<16x32xf32>
    %536 = arith.mulf %535, %534 : vector<16x32xf32>
    %cst_92 = arith.constant 1.000000e+00 : f32
    %537 = vector.broadcast %cst_92 : f32 to vector<16x32xf32>
    %538 = arith.subf %536, %537 : vector<16x32xf32>
    %539 = vector.extract_strided_slice %531 {offsets = [0, 96], sizes = [16, 32], strides = [1, 1]} : vector<16x128xf32> to vector<16x32xf32>
    %540 = arith.mulf %533, %496 : vector<16x32xf32>
    %541 = arith.mulf %532, %538 : vector<16x32xf32>
    %542 = arith.addf %540, %541 : vector<16x32xf32>
    %543 = math.tanh %542 : vector<16x32xf32>
    %544 = arith.mulf %539, %543 : vector<16x32xf32>
    %545 = tpu.concatenate %525, %544 in 1 : vector<16x32xf32>, vector<16x32xf32> -> vector<16x64xf32>
    %546 = arith.truncf %545 : vector<16x64xf32> to vector<16x64xbf16>
    %cst_93 = arith.constant dense<0.000000e+00> : vector<16x256xf32>
    %547 = tpu.matmul %546, %6, %cst_93 {dimension_numbers = #tpu.dot_dimension_numbers<[1], [0], [0], [1], [0, 0, 1, 1], [], []>} : vector<16x64xbf16>, vector<64x256xbf16>, vector<16x256xf32> -> vector<16x256xf32>
    %548 = vector.broadcast %7 : vector<1x256xf32> to vector<16x256xf32>
    %549 = arith.addf %547, %548 : vector<16x256xf32>
    %550 = vector.extract_strided_slice %549 {offsets = [0, 128], sizes = [16, 128], strides = [1, 1]} : vector<16x256xf32> to vector<16x128xf32>
    %551 = arith.negf %550 : vector<16x128xf32>
    %552 = math.exp %551 : vector<16x128xf32>
    %cst_94 = arith.constant 1.000000e+00 : f32
    %553 = vector.broadcast %cst_94 : f32 to vector<16x128xf32>
    %554 = arith.addf %553, %552 : vector<16x128xf32>
    %555 = arith.divf %553, %554 : vector<16x128xf32>
    %556 = vector.extract_strided_slice %555 {offsets = [0, 0], sizes = [16, 32], strides = [1, 1]} : vector<16x128xf32> to vector<16x32xf32>
    %557 = vector.extract_strided_slice %555 {offsets = [0, 32], sizes = [16, 32], strides = [1, 1]} : vector<16x128xf32> to vector<16x32xf32>
    %558 = vector.extract_strided_slice %555 {offsets = [0, 64], sizes = [16, 32], strides = [1, 1]} : vector<16x128xf32> to vector<16x32xf32>
    %cst_95 = arith.constant 2.000000e+00 : f32
    %559 = vector.broadcast %cst_95 : f32 to vector<16x32xf32>
    %560 = arith.mulf %559, %558 : vector<16x32xf32>
    %cst_96 = arith.constant 1.000000e+00 : f32
    %561 = vector.broadcast %cst_96 : f32 to vector<16x32xf32>
    %562 = arith.subf %560, %561 : vector<16x32xf32>
    %563 = vector.extract_strided_slice %555 {offsets = [0, 96], sizes = [16, 32], strides = [1, 1]} : vector<16x128xf32> to vector<16x32xf32>
    %564 = arith.mulf %557, %542 : vector<16x32xf32>
    %565 = arith.mulf %556, %562 : vector<16x32xf32>
    %566 = arith.addf %564, %565 : vector<16x32xf32>
    %567 = math.tanh %566 : vector<16x32xf32>
    %568 = arith.mulf %563, %567 : vector<16x32xf32>
    %569 = vector.shape_cast %452 : vector<16x32xf32> to vector<1x16x32xf32>
    %570 = vector.shape_cast %498 : vector<16x32xf32> to vector<1x16x32xf32>
    %571 = vector.shape_cast %544 : vector<16x32xf32> to vector<1x16x32xf32>
    %572 = vector.shape_cast %568 : vector<16x32xf32> to vector<1x16x32xf32>
    %573 = tpu.concatenate %569, %570, %571, %572 in 0 : vector<1x16x32xf32>, vector<1x16x32xf32>, vector<1x16x32xf32>, vector<1x16x32xf32> -> vector<4x16x32xf32>
    %574 = vector.shape_cast %573 : vector<4x16x32xf32> to vector<64x32xf32>
    %575 = arith.truncf %574 : vector<64x32xf32> to vector<64x32xbf16>
    %c0_97 = arith.constant 0 : index
    %c0_98 = arith.constant 0 : index
    %576 = vector.load %arg5[%c0_97, %c0_98] : memref<32x8xbf16, #tpu.memory_space<vmem>>, vector<32x8xbf16>
    %cst_99 = arith.constant dense<0.000000e+00> : vector<64x8xf32>
    %577 = tpu.matmul %575, %576, %cst_99 {dimension_numbers = #tpu.dot_dimension_numbers<[1], [0], [0], [1], [0, 0, 1, 1], [], []>} : vector<64x32xbf16>, vector<32x8xbf16>, vector<64x8xf32> -> vector<64x8xf32>
    %c0_100 = arith.constant 0 : index
    %c0_101 = arith.constant 0 : index
    %578 = vector.load %arg6[%c0_100, %c0_101] : memref<1x8xf32, #tpu.memory_space<vmem>>, vector<1x8xf32>
    %579 = vector.broadcast %578 : vector<1x8xf32> to vector<64x8xf32>
    %580 = arith.addf %577, %579 : vector<64x8xf32>
    %581 = vector.shape_cast %580 : vector<64x8xf32> to vector<4x16x8xf32>
    %c0_102 = arith.constant 0 : index
    %c0_103 = arith.constant 0 : index
    %c0_104 = arith.constant 0 : index
    %582 = vector.load %arg7[%c0_102, %c0_103, %c0_104] : memref<4x16x8xf32, #tpu.memory_space<vmem>>, vector<4x16x8xf32>
    tpu.vector_store %arg7[%c0_102, %c0_103, %c0_104], %581 {strides = array<i32>} : memref<4x16x8xf32, #tpu.memory_space<vmem>>, vector<4x16x8xf32>,
    return
  }
  func.func @transform_0(%arg0: i32) -> (i32, i32, i32) {
    %c0_i32 = arith.constant 0 : i32
    %c0_i32_0 = arith.constant 0 : i32
    %c0_i32_1 = arith.constant 0 : i32
    return %c0_i32, %arg0, %c0_i32_0 : i32, i32, i32
  }
  func.func @transform_1(%arg0: i32) -> (i32, i32) {
    %c0_i32 = arith.constant 0 : i32
    %c0_i32_0 = arith.constant 0 : i32
    %c0_i32_1 = arith.constant 0 : i32
    return %c0_i32, %c0_i32_0 : i32, i32
  }
  func.func @transform_2(%arg0: i32) -> (i32, i32) {
    %c0_i32 = arith.constant 0 : i32
    %c0_i32_0 = arith.constant 0 : i32
    %c0_i32_1 = arith.constant 0 : i32
    return %c0_i32, %c0_i32_0 : i32, i32
  }
  func.func @transform_3(%arg0: i32) -> (i32, i32) {
    %c0_i32 = arith.constant 0 : i32
    %c0_i32_0 = arith.constant 0 : i32
    %c0_i32_1 = arith.constant 0 : i32
    return %c0_i32, %c0_i32_0 : i32, i32
  }
  func.func @transform_4(%arg0: i32) -> (i32, i32) {
    %c0_i32 = arith.constant 0 : i32
    %c0_i32_0 = arith.constant 0 : i32
    %c0_i32_1 = arith.constant 0 : i32
    return %c0_i32, %c0_i32_0 : i32, i32
  }
  func.func @transform_5(%arg0: i32) -> (i32, i32) {
    %c0_i32 = arith.constant 0 : i32
    %c0_i32_0 = arith.constant 0 : i32
    %c0_i32_1 = arith.constant 0 : i32
    return %c0_i32, %c0_i32_0 : i32, i32
  }
  func.func @transform_6(%arg0: i32) -> (i32, i32, i32) {
    %c0_i32 = arith.constant 0 : i32
    %c0_i32_0 = arith.constant 0 : i32
    %c0_i32_1 = arith.constant 0 : i32
    return %c0_i32, %arg0, %c0_i32_0 : i32, i32, i32
  }
}

</mosaic_0001>

<llo_original>
// kernel: tpu_custom_call.1
$region0: #{tpu_custom_call.1}
  #allocation0 [shape = 'u32[]', space=smem, size = 0x4, offset = 0x4, fixed_abs, tag = 'smem constant byte address 0x4 - core index']
  #allocation1 [shape = 'u32[144,128]{1,0:T(1,128)}', space=vmem, size = 0x12000, scoped, tag = 'internal scratch']
  %s0 = inlined_call_operand.vmem [shape: f32[12,16,8], index: 0, kind: input, shape index: {}]
  %s1 = inlined_call_operand.vmem [shape: bf16[8,128], index: 1, kind: input, shape index: {}]
  %s2 = inlined_call_operand.vmem [shape: bf16[64,256], index: 2, kind: input, shape index: {}]
  %s3 = inlined_call_operand.vmem [shape: f32[1,256], index: 3, kind: input, shape index: {}]
  %s4 = inlined_call_operand.vmem [shape: bf16[32,8], index: 4, kind: input, shape index: {}]
  %s5 = inlined_call_operand.vmem [shape: f32[1,8], index: 5, kind: input, shape index: {}]
  %s6 = inlined_call_operand.vmem [shape: f32[4,16,8], index: 6, kind: output, shape index: {}]
  %s7 = sld [smem:[#allocation0]]
  $region34: #{tpu_custom_call.1} parent=0
    _
  %s9 = ssub.s32 1, %s7
  %s10 = scalar_select 0, %s9, %s7
  // Predicated region
  $region2: #{tpu_custom_call.1} parent=0 // pred_check
    _
  $region3: #{tpu_custom_call.1} parent=0 // pred_check_branch
    %12 = sbr.rel (0) target = $region5
  $region4: #{tpu_custom_call.1} parent=0 // pred_region
    _
  $region5: #{tpu_custom_call.1} parent=0 // pred_fallthru
    _
  // Predicated region
  $region6: #{tpu_custom_call.1} parent=0 // pred_check
    _
  $region7: #{tpu_custom_call.1} parent=0 // pred_check_branch
    %14 = sbr.rel (0) target = $region9
  $region8: #{tpu_custom_call.1} parent=0 // pred_region
    _
  $region9: #{tpu_custom_call.1} parent=0 // pred_fallthru
    _
  // Predicated region
  $region10: #{tpu_custom_call.1} parent=0 // pred_check
    _
  $region11: #{tpu_custom_call.1} parent=0 // pred_check_branch
    %16 = sbr.rel (0) target = $region13
  $region12: #{tpu_custom_call.1} parent=0 // pred_region
    _
  $region13: #{tpu_custom_call.1} parent=0 // pred_fallthru
    _
  // Predicated region
  $region14: #{tpu_custom_call.1} parent=0 // pred_check
    _
  $region15: #{tpu_custom_call.1} parent=0 // pred_check_branch
    %18 = sbr.rel (0) target = $region17
  $region16: #{tpu_custom_call.1} parent=0 // pred_region
    _
  $region17: #{tpu_custom_call.1} parent=0 // pred_fallthru
    _
  // Predicated region
  $region18: #{tpu_custom_call.1} parent=0 // pred_check
    _
  $region19: #{tpu_custom_call.1} parent=0 // pred_check_branch
    %20 = sbr.rel (0) target = $region21
  $region20: #{tpu_custom_call.1} parent=0 // pred_region
    _
  $region21: #{tpu_custom_call.1} parent=0 // pred_fallthru
    _
  // Predicated region
  $region22: #{tpu_custom_call.1} parent=0 // pred_check
    _
  $region23: #{tpu_custom_call.1} parent=0 // pred_check_branch
    %22 = sbr.rel (0) target = $region25
  $region24: #{tpu_custom_call.1} parent=0 // pred_region
    _
  $region25: #{tpu_custom_call.1} parent=0 // pred_fallthru
    _
  %v24 = vld [vmem:[%s0] sm:$0xff]
  %v25 = vld [vmem:[%s0 + $0x8] sm:$0xff]
  %v26 = vld [vmem:[%s0 + $0x10] sm:$0xff]
  %v27 = vld [vmem:[%s0 + $0x18] sm:$0xff]
  %v28 = vld [vmem:[%s0 + $0x20] sm:$0xff]
  %v29 = vld [vmem:[%s0 + $0x28] sm:$0xff]
  %v30 = vld [vmem:[%s0 + $0x30] sm:$0xff]
  %v31 = vld [vmem:[%s0 + $0x38] sm:$0xff]
  %v32 = vld [vmem:[%s0 + $0x40] sm:$0xff]
  %v33 = vld [vmem:[%s0 + $0x48] sm:$0xff]
  %v34 = vld [vmem:[%s0 + $0x50] sm:$0xff]
  %v35 = vld [vmem:[%s0 + $0x58] sm:$0xff]
  %v36 = vld [vmem:[%s0 + $0x60] sm:$0xff]
  %v37 = vld [vmem:[%s0 + $0x68] sm:$0xff]
  %v38 = vld [vmem:[%s0 + $0x70] sm:$0xff]
  %v39 = vld [vmem:[%s0 + $0x78] sm:$0xff]
  %v40 = vld [vmem:[%s0 + $0x80] sm:$0xff]
  %v41 = vld [vmem:[%s0 + $0x88] sm:$0xff]
  %v42 = vld [vmem:[%s0 + $0x90] sm:$0xff]
  %v43 = vld [vmem:[%s0 + $0x98] sm:$0xff]
  %v44 = vld [vmem:[%s0 + $0xa0] sm:$0xff]
  %v45 = vld [vmem:[%s0 + $0xa8] sm:$0xff]
  %v46 = vld [vmem:[%s0 + $0xb0] sm:$0xff]
  %v47 = vld [vmem:[%s0 + $0xb8] sm:$0xff]
  %v48 = vpack.c.bf16 %v25, %v24
  %v49 = vpack.c.bf16 %v27, %v26
  %v50 = vpack.c.bf16 %v29, %v28
  %v51 = vpack.c.bf16 %v31, %v30
  %v52 = vpack.c.bf16 %v33, %v32
  %v53 = vpack.c.bf16 %v35, %v34
  %v54 = vpack.c.bf16 %v37, %v36
  %v55 = vpack.c.bf16 %v39, %v38
  %v56 = vpack.c.bf16 %v41, %v40
  %v57 = vpack.c.bf16 %v43, %v42
  %v58 = vpack.c.bf16 %v45, %v44
  %v59 = vpack.c.bf16 %v47, %v46
  %v60 = vld [vmem:[%s1] sm:$0xf]
  %vm61 = vcmask 64512
  %v63 = vsel %vm61, %v48, 0
  %v66 = vsel %vm61, %v49, 0
  %v69 = vsel %vm61, %v50, 0
  %v72 = vsel %vm61, %v51, 0
  %v75 = vsel %vm61, %v52, 0
  %v78 = vsel %vm61, %v53, 0
  %v81 = vsel %vm61, %v54, 0
  %v84 = vsel %vm61, %v55, 0
  %v87 = vsel %vm61, %v56, 0
  %v90 = vsel %vm61, %v57, 0
  %v93 = vsel %vm61, %v58, 0
  %v96 = vsel %vm61, %v59, 0
  %vm98 = vcmask 1043456
  %v100 = vsel %vm98, %v60, 0
  %102 = vmatprep.subr.bf16.mxu0 0
  %103 = vmatpush1.bf16.msra.mxu0 %v100
  %104 = vmatprep.subr.bf16.mxu0 0
  %105 = vmatpush1.bf16.msra.mxu0 0
  %106 = vmatprep.subr.bf16.mxu0 0
  %107 = vmatpush1.bf16.msra.mxu0 0
  %108 = vmatprep.subr.bf16.mxu0 0
  %109 = vmatpush1.bf16.msra.mxu0 0
  %110 = vmatprep.subr.bf16.mxu0 0
  %111 = vmatpush1.bf16.msra.mxu0 0
  %112 = vmatprep.subr.bf16.mxu0 0
  %113 = vmatpush1.bf16.msra.mxu0 0
  %114 = vmatprep.subr.bf16.mxu0 0
  %115 = vmatpush1.bf16.msra.mxu0 0
  %116 = vmatprep.subr.bf16.mxu0 0
  %117 = vmatpush1.bf16.msra.mxu0 0
  %118 = vmatprep.subr.bf16.mxu0 0
  %119 = vmatpush1.bf16.msra.mxu0 0
  %120 = vmatprep.subr.bf16.mxu0 0
  %121 = vmatpush1.bf16.msra.mxu0 0
  %122 = vmatprep.subr.bf16.mxu0 0
  %123 = vmatpush1.bf16.msra.mxu0 0
  %124 = vmatprep.subr.bf16.mxu0 0
  %125 = vmatpush1.bf16.msra.mxu0 0
  %126 = vmatprep.subr.bf16.mxu0 0
  %127 = vmatpush1.bf16.msra.mxu0 0
  %128 = vmatprep.subr.bf16.mxu0 0
  %129 = vmatpush1.bf16.msra.mxu0 0
  %130 = vmatprep.subr.bf16.mxu0 0
  %131 = vmatpush1.bf16.msra.mxu0 0
  %132 = vmatprep.subr.bf16.mxu0 0
  %133 = vmatpush1.bf16.msra.mxu0 0
  %134 = vmatprep.mubr.bf16.mxu0 0
  %135 = vmatmul.mubr.bf16.gmra.mrb[0].mxu0 %v63
  %v136 = vpop.f32.mrb[0].mxu0
  %v137 = vadd.f32 0.0, %v136
  %v138 = vpop.f32.mrb[0].mxu0
  %v139 = vpop.f32.mrb[0].mxu0
  %v140 = vadd.f32 0.0, %v139
  %v141 = vpop.f32.mrb[0].mxu0
  %142 = vmatprep.mubr.bf16.mxu0 0
  %143 = vmatmul.mubr.bf16.gmra.mrb[0].mxu0 %v66
  %v144 = vpop.f32.mrb[0].mxu0
  %v145 = vadd.f32 0.0, %v144
  %v146 = vpop.f32.mrb[0].mxu0
  %v147 = vpop.f32.mrb[0].mxu0
  %v148 = vadd.f32 0.0, %v147
  %v149 = vpop.f32.mrb[0].mxu0
  %150 = vmatprep.mubr.bf16.mxu0 0
  %151 = vmatmul.mubr.bf16.gmra.mrb[0].mxu0 %v69
  %v152 = vpop.f32.mrb[0].mxu0
  %v153 = vadd.f32 0.0, %v152
  %v154 = vpop.f32.mrb[0].mxu0
  %v155 = vpop.f32.mrb[0].mxu0
  %v156 = vadd.f32 0.0, %v155
  %v157 = vpop.f32.mrb[0].mxu0
  %158 = vmatprep.mubr.bf16.mxu0 0
  %159 = vmatmul.mubr.bf16.gmra.mrb[0].mxu0 %v72
  %v160 = vpop.f32.mrb[0].mxu0
  %v161 = vadd.f32 0.0, %v160
  %v162 = vpop.f32.mrb[0].mxu0
  %v163 = vpop.f32.mrb[0].mxu0
  %v164 = vadd.f32 0.0, %v163
  %v165 = vpop.f32.mrb[0].mxu0
  %166 = vmatprep.mubr.bf16.mxu0 0
  %167 = vmatmul.mubr.bf16.gmra.mrb[0].mxu0 %v75
  %v168 = vpop.f32.mrb[0].mxu0
  %v169 = vadd.f32 0.0, %v168
  %v170 = vpop.f32.mrb[0].mxu0
  %v171 = vpop.f32.mrb[0].mxu0
  %v172 = vadd.f32 0.0, %v171
  %v173 = vpop.f32.mrb[0].mxu0
  %174 = vmatprep.mubr.bf16.mxu0 0
  %175 = vmatmul.mubr.bf16.gmra.mrb[0].mxu0 %v78
  %v176 = vpop.f32.mrb[0].mxu0
  %v177 = vadd.f32 0.0, %v176
  %v178 = vpop.f32.mrb[0].mxu0
  %v179 = vpop.f32.mrb[0].mxu0
  %v180 = vadd.f32 0.0, %v179
  %v181 = vpop.f32.mrb[0].mxu0
  %182 = vmatprep.mubr.bf16.mxu0 0
  %183 = vmatmul.mubr.bf16.gmra.mrb[0].mxu0 %v81
  %v184 = vpop.f32.mrb[0].mxu0
  %v185 = vadd.f32 0.0, %v184
  %v186 = vpop.f32.mrb[0].mxu0
  %v187 = vpop.f32.mrb[0].mxu0
  %v188 = vadd.f32 0.0, %v187
  %v189 = vpop.f32.mrb[0].mxu0
  %190 = vmatprep.mubr.bf16.mxu0 0
  %191 = vmatmul.mubr.bf16.gmra.mrb[0].mxu0 %v84
  %v192 = vpop.f32.mrb[0].mxu0
  %v193 = vadd.f32 0.0, %v192
  %v194 = vpop.f32.mrb[0].mxu0
  %v195 = vpop.f32.mrb[0].mxu0
  %v196 = vadd.f32 0.0, %v195
  %v197 = vpop.f32.mrb[0].mxu0
  %198 = vmatprep.mubr.bf16.mxu0 0
  %199 = vmatmul.mubr.bf16.gmra.mrb[0].mxu0 %v87
  %v200 = vpop.f32.mrb[0].mxu0
  %v201 = vadd.f32 0.0, %v200
  %v202 = vpop.f32.mrb[0].mxu0
  %v203 = vpop.f32.mrb[0].mxu0
  %v204 = vadd.f32 0.0, %v203
  %v205 = vpop.f32.mrb[0].mxu0
  %206 = vmatprep.mubr.bf16.mxu0 0
  %207 = vmatmul.mubr.bf16.gmra.mrb[0].mxu0 %v90
  %v208 = vpop.f32.mrb[0].mxu0
  %v209 = vadd.f32 0.0, %v208
  %v210 = vpop.f32.mrb[0].mxu0
  %v211 = vpop.f32.mrb[0].mxu0
  %v212 = vadd.f32 0.0, %v211
  %v213 = vpop.f32.mrb[0].mxu0
  %214 = vmatprep.mubr.bf16.mxu0 0
  %215 = vmatmul.mubr.bf16.gmra.mrb[0].mxu0 %v93
  %v216 = vpop.f32.mrb[0].mxu0
  %v217 = vadd.f32 0.0, %v216
  %v218 = vpop.f32.mrb[0].mxu0
  %v219 = vpop.f32.mrb[0].mxu0
  %v220 = vadd.f32 0.0, %v219
  %v221 = vpop.f32.mrb[0].mxu0
  %222 = vmatprep.mubr.bf16.mxu0 0
  %223 = vmatmul.mubr.bf16.gmra.mrb[0].mxu0 %v96
  %v224 = vpop.f32.mrb[0].mxu0
  %v225 = vadd.f32 0.0, %v224
  %v226 = vpop.f32.mrb[0].mxu0
  %v227 = vpop.f32.mrb[0].mxu0
  %v228 = vadd.f32 0.0, %v227
  %v229 = vpop.f32.mrb[0].mxu0
  %230 = vdwg.mxu0
  %v231 = vld [vmem:[%s2] sm:$0xff]
  %v232 = vld [vmem:[%s2 + $0x8] sm:$0xff]
  %v233 = vld [vmem:[%s2 + $0x10] sm:$0xff]
  %v234 = vld [vmem:[%s2 + $0x18] sm:$0xff]
  %v235 = vld [vmem:[%s2 + $0x20] sm:$0xff]
  %v236 = vld [vmem:[%s2 + $0x28] sm:$0xff]
  %v237 = vld [vmem:[%s2 + $0x30] sm:$0xff]
  %v238 = vld [vmem:[%s2 + $0x38] sm:$0xff]
  %v239 = vld [vmem:[%s3] sm:$0x3]
  %v240 = vpack.c.bf16 0.0, 0.0
  %v242 = vlaneseq
  %v243 = vshrl.u32 %v242, 7
  %v244 = vsub.s32 0, %v243
  %v245 = vrot.slane %v239, %v244
  %v246 = vlaneseq
  %v247 = vshrl.u32 %v246, 7
  %v248 = vsub.s32 1, %v247
  %v249 = vrot.slane %v239, %v248
  %v260 = vunpack.c.l.b16 %v231
  %v261 = vunpack.c.h.b16 %v231
  %v262 = vunpack.c.l.b16 %v232
  %v263 = vunpack.c.h.b16 %v232
  %v264 = vunpack.c.l.b16 %v233
  %v265 = vunpack.c.h.b16 %v233
  %v266 = vunpack.c.l.b16 %v234
  %v267 = vunpack.c.h.b16 %v234
  %v268 = vunpack.c.l.b16 %v235
  %v269 = vunpack.c.h.b16 %v235
  %v270 = vunpack.c.l.b16 %v236
  %v271 = vunpack.c.h.b16 %v236
  %v272 = vunpack.c.l.b16 %v237
  %v273 = vunpack.c.h.b16 %v237
  %v274 = vunpack.c.l.b16 %v238
  %v275 = vunpack.c.h.b16 %v238
  %v276 = vpack.c.b16 %v262, %v260
  %v277 = vpack.c.b16 %v263, %v261
  %v278 = vpack.c.b16 %v266, %v264
  %v279 = vpack.c.b16 %v267, %v265
  %v280 = vpack.c.b16 %v270, %v268
  %v281 = vpack.c.b16 %v271, %v269
  %v282 = vpack.c.b16 %v274, %v272
  %v283 = vpack.c.b16 %v275, %v273
  %vm292 = vcmask 523264
  %v294 = vsel %vm292, %v240, 0
  %296 = vmatprep.subr.bf16.mxu0 %v277
  %297 = vmatpush1.bf16.msra.mxu0 %v276
  %298 = vmatprep.subr.bf16.mxu0 %v279
  %299 = vmatpush1.bf16.msra.mxu0 %v278
  %300 = vmatprep.subr.bf16.mxu0 %v281
  %301 = vmatpush1.bf16.msra.mxu0 %v280
  %302 = vmatprep.subr.bf16.mxu0 %v283
  %303 = vmatpush1.bf16.msra.mxu0 %v282
  %304 = vmatprep.subr.bf16.mxu0 0
  %305 = vmatpush1.bf16.msra.mxu0 0
  %306 = vmatprep.subr.bf16.mxu0 0
  %307 = vmatpush1.bf16.msra.mxu0 0
  %308 = vmatprep.subr.bf16.mxu0 0
  %309 = vmatpush1.bf16.msra.mxu0 0
  %310 = vmatprep.subr.bf16.mxu0 0
  %311 = vmatpush1.bf16.msra.mxu0 0
  %312 = vmatprep.subr.bf16.mxu0 0
  %313 = vmatpush1.bf16.msra.mxu0 0
  %314 = vmatprep.subr.bf16.mxu0 0
  %315 = vmatpush1.bf16.msra.mxu0 0
  %316 = vmatprep.subr.bf16.mxu0 0
  %317 = vmatpush1.bf16.msra.mxu0 0
  %318 = vmatprep.subr.bf16.mxu0 0
  %319 = vmatpush1.bf16.msra.mxu0 0
  %320 = vmatprep.subr.bf16.mxu0 0
  %321 = vmatpush1.bf16.msra.mxu0 0
  %322 = vmatprep.subr.bf16.mxu0 0
  %323 = vmatpush1.bf16.msra.mxu0 0
  %324 = vmatprep.subr.bf16.mxu0 0
  %325 = vmatpush1.bf16.msra.mxu0 0
  %326 = vmatprep.subr.bf16.mxu0 0
  %327 = vmatpush1.bf16.msra.mxu0 0
  %328 = vmatprep.mubr.bf16.mxu0 0
  %329 = vmatmul.mubr.bf16.gmra.mrb[0].mxu0 %v294
  %v330 = vpop.f32.mrb[0].mxu0
  %v331 = vadd.f32 %v245, %v330
  %v332 = vpop.f32.mrb[0].mxu0
  %v333 = vpop.f32.mrb[0].mxu0
  %v334 = vadd.f32 %v245, %v333
  %v335 = vpop.f32.mrb[0].mxu0
  %336 = vdwg.mxu0
  %v337 = vadd.f32 %v331, %v137
  %v338 = vadd.f32 %v334, %v140
  %v339 = vxor.u32 %v337, 2147483648
  %v340 = vxor.u32 %v338, 2147483648
  %v341 = vmul.f32 %v339, 1.442695
  %v342 = vpow.pop %v341
  %v343 = vmul.f32 %v340, 1.442695
  %v344 = vpow.pop %v343
  %v345 = vadd.f32 %v342, 1.0
  %v346 = vadd.f32 %v344, 1.0
  %v347 = vrcp.pop %v345
  %v348 = vmul.f32 1.0, %v347
  %v349 = vrcp.pop %v346
  %v350 = vmul.f32 1.0, %v349
  %v351 = vmul.f32 %v348, 2.0
  %v352 = vmul.f32 %v350, 2.0
  %v353 = vsub.f32 %v351, 1.0
  %v354 = vsub.f32 %v352, 1.0
  %v355 = vmul.f32 %v348, 0.0
  %v356 = vmul.f32 %v350, 0.0
  %359 = vrot.lane.b32.xlu0 %v353, 64
  %v360 = vpop.permute.xlu0 %359
  %361 = vrot.lane.b32.xlu0 %v354, 64
  %v362 = vpop.permute.xlu0 %361
  %v365 = vmul.f32 %v348, %v360
  %v366 = vmul.f32 %v350, %v362
  %369 = vrot.lane.b32.xlu0 %v365, 32
  %v370 = vpop.permute.xlu0 %369
  %371 = vrot.lane.b32.xlu0 %v366, 32
  %v372 = vpop.permute.xlu0 %371
  %v375 = vadd.f32 %v355, %v370
  %v376 = vadd.f32 %v356, %v372
  %v377 = vtanh.pop %v375
  %v378 = vtanh.pop %v376
  %381 = vrot.lane.b32.xlu0 %v377, 64
  %v382 = vpop.permute.xlu0 %381
  %383 = vrot.lane.b32.xlu0 %v378, 64
  %v384 = vpop.permute.xlu0 %383
  %v387 = vmul.f32 %v348, %v382
  %v388 = vmul.f32 %v350, %v384
  %391 = vrot.lane.b32.xlu0 %v387, 32
  %v392 = vpop.permute.xlu0 %391
  %393 = vrot.lane.b32.xlu0 %v388, 32
  %v394 = vpop.permute.xlu0 %393
  %vm397 = vcmask 261120
  %v398 = vsel %vm397, %v392, 0.0
  %v399 = vsel %vm397, %v394, 0.0
  %v400 = vpack.c.bf16 %v399, %v398
  %v402 = vsel %vm292, %v400, 0
  %404 = vmatprep.subr.bf16.mxu0 %v277
  %405 = vmatpush1.bf16.msra.mxu0 %v276
  %406 = vmatprep.subr.bf16.mxu0 %v279
  %407 = vmatpush1.bf16.msra.mxu0 %v278
  %408 = vmatprep.subr.bf16.mxu0 %v281
  %409 = vmatpush1.bf16.msra.mxu0 %v280
  %410 = vmatprep.subr.bf16.mxu0 %v283
  %411 = vmatpush1.bf16.msra.mxu0 %v282
  %412 = vmatprep.subr.bf16.mxu0 0
  %413 = vmatpush1.bf16.msra.mxu0 0
  %414 = vmatprep.subr.bf16.mxu0 0
  %415 = vmatpush1.bf16.msra.mxu0 0
  %416 = vmatprep.subr.bf16.mxu0 0
  %417 = vmatpush1.bf16.msra.mxu0 0
  %418 = vmatprep.subr.bf16.mxu0 0
  %419 = vmatpush1.bf16.msra.mxu0 0
  %420 = vmatprep.subr.bf16.mxu0 0
  %421 = vmatpush1.bf16.msra.mxu0 0
  %422 = vmatprep.subr.bf16.mxu0 0
  %423 = vmatpush1.bf16.msra.mxu0 0
  %424 = vmatprep.subr.bf16.mxu0 0
  %425 = vmatpush1.bf16.msra.mxu0 0
  %426 = vmatprep.subr.bf16.mxu0 0
  %427 = vmatpush1.bf16.msra.mxu0 0
  %428 = vmatprep.subr.bf16.mxu0 0
  %429 = vmatpush1.bf16.msra.mxu0 0
  %430 = vmatprep.subr.bf16.mxu0 0
  %431 = vmatpush1.bf16.msra.mxu0 0
  %432 = vmatprep.subr.bf16.mxu0 0
  %433 = vmatpush1.bf16.msra.mxu0 0
  %434 = vmatprep.subr.bf16.mxu0 0
  %435 = vmatpush1.bf16.msra.mxu0 0
  %436 = vmatprep.mubr.bf16.mxu0 0
  %437 = vmatmul.mubr.bf16.gmra.mrb[0].mxu0 %v402
  %v438 = vpop.f32.mrb[0].mxu0
  %v439 = vadd.f32 %v245, %v438
  %v440 = vpop.f32.mrb[0].mxu0
  %v441 = vadd.f32 %v249, %v440
  %v442 = vpop.f32.mrb[0].mxu0
  %v443 = vadd.f32 %v245, %v442
  %v444 = vpop.f32.mrb[0].mxu0
  %v445 = vadd.f32 %v249, %v444
  %446 = vdwg.mxu0
  %v447 = vadd.f32 %v439, %v145
  %v448 = vadd.f32 %v443, %v148
  %v449 = vxor.u32 %v447, 2147483648
  %v450 = vxor.u32 %v448, 2147483648
  %v451 = vmul.f32 %v449, 1.442695
  %v452 = vpow.pop %v451
  %v453 = vmul.f32 %v450, 1.442695
  %v454 = vpow.pop %v453
  %v455 = vadd.f32 %v452, 1.0
  %v456 = vadd.f32 %v454, 1.0
  %v457 = vrcp.pop %v455
  %v458 = vmul.f32 1.0, %v457
  %v459 = vrcp.pop %v456
  %v460 = vmul.f32 1.0, %v459
  %v461 = vmul.f32 %v458, 2.0
  %v462 = vmul.f32 %v460, 2.0
  %v463 = vsub.f32 %v461, 1.0
  %v464 = vsub.f32 %v462, 1.0
  %v465 = vmul.f32 %v458, %v375
  %v466 = vmul.f32 %v460, %v376
  %469 = vrot.lane.b32.xlu0 %v463, 64
  %v470 = vpop.permute.xlu0 %469
  %471 = vrot.lane.b32.xlu0 %v464, 64
  %v472 = vpop.permute.xlu0 %471
  %v475 = vmul.f32 %v458, %v470
  %v476 = vmul.f32 %v460, %v472
  %479 = vrot.lane.b32.xlu0 %v475, 32
  %v480 = vpop.permute.xlu0 %479
  %481 = vrot.lane.b32.xlu0 %v476, 32
  %v482 = vpop.permute.xlu0 %481
  %v485 = vadd.f32 %v465, %v480
  %v486 = vadd.f32 %v466, %v482
  %v487 = vtanh.pop %v485
  %v488 = vtanh.pop %v486
  %491 = vrot.lane.b32.xlu0 %v487, 64
  %v492 = vpop.permute.xlu0 %491
  %493 = vrot.lane.b32.xlu0 %v488, 64
  %v494 = vpop.permute.xlu0 %493
  %v497 = vmul.f32 %v458, %v492
  %v498 = vmul.f32 %v460, %v494
  %v499 = vxor.u32 %v441, 2147483648
  %v500 = vxor.u32 %v445, 2147483648
  %v501 = vmul.f32 %v499, 1.442695
  %v502 = vpow.pop %v501
  %v503 = vmul.f32 %v500, 1.442695
  %v504 = vpow.pop %v503
  %v505 = vadd.f32 %v502, 1.0
  %v506 = vadd.f32 %v504, 1.0
  %v507 = vrcp.pop %v505
  %v508 = vmul.f32 1.0, %v507
  %v509 = vrcp.pop %v506
  %v510 = vmul.f32 1.0, %v509
  %v511 = vmul.f32 %v508, 2.0
  %v512 = vmul.f32 %v510, 2.0
  %v513 = vsub.f32 %v511, 1.0
  %v514 = vsub.f32 %v512, 1.0
  %v515 = vmul.f32 %v508, 0.0
  %v516 = vmul.f32 %v510, 0.0
  %519 = vrot.lane.b32.xlu0 %v513, 64
  %v520 = vpop.permute.xlu0 %519
  %521 = vrot.lane.b32.xlu0 %v514, 64
  %v522 = vpop.permute.xlu0 %521
  %v525 = vmul.f32 %v508, %v520
  %v526 = vmul.f32 %v510, %v522
  %529 = vrot.lane.b32.xlu0 %v525, 32
  %v530 = vpop.permute.xlu0 %529
  %531 = vrot.lane.b32.xlu0 %v526, 32
  %v532 = vpop.permute.xlu0 %531
  %v535 = vadd.f32 %v515, %v530
  %v536 = vadd.f32 %v516, %v532
  %v537 = vtanh.pop %v535
  %v538 = vtanh.pop %v536
  %541 = vrot.lane.b32.xlu0 %v537, 64
  %v542 = vpop.permute.xlu0 %541
  %543 = vrot.lane.b32.xlu0 %v538, 64
  %v544 = vpop.permute.xlu0 %543
  %v547 = vmul.f32 %v508, %v542
  %v548 = vmul.f32 %v510, %v544
  %551 = vrot.lane.b32.xlu0 %v497, 32
  %v552 = vpop.permute.xlu0 %551
  %553 = vrot.lane.b32.xlu0 %v498, 32
  %v554 = vpop.permute.xlu0 %553
  %559 = vrot.lane.b32.xlu0 %v547, 64
  %v560 = vpop.permute.xlu0 %559
  %561 = vrot.lane.b32.xlu0 %v548, 64
  %v562 = vpop.permute.xlu0 %561
  %v565 = vsel %vm397, %v552, %v560
  %v566 = vsel %vm397, %v554, %v562
  %v567 = vpack.c.bf16 %v566, %v565
  %v569 = vsel %vm292, %v567, 0
  %571 = vmatprep.subr.bf16.mxu0 %v277
  %572 = vmatpush1.bf16.msra.mxu0 %v276
  %573 = vmatprep.subr.bf16.mxu0 %v279
  %574 = vmatpush1.bf16.msra.mxu0 %v278
  %575 = vmatprep.subr.bf16.mxu0 %v281
  %576 = vmatpush1.bf16.msra.mxu0 %v280
  %577 = vmatprep.subr.bf16.mxu0 %v283
  %578 = vmatpush1.bf16.msra.mxu0 %v282
  %579 = vmatprep.subr.bf16.mxu0 0
  %580 = vmatpush1.bf16.msra.mxu0 0
  %581 = vmatprep.subr.bf16.mxu0 0
  %582 = vmatpush1.bf16.msra.mxu0 0
  %583 = vmatprep.subr.bf16.mxu0 0
  %584 = vmatpush1.bf16.msra.mxu0 0
  %585 = vmatprep.subr.bf16.mxu0 0
  %586 = vmatpush1.bf16.msra.mxu0 0
  %587 = vmatprep.subr.bf16.mxu0 0
  %588 = vmatpush1.bf16.msra.mxu0 0
  %589 = vmatprep.subr.bf16.mxu0 0
  %590 = vmatpush1.bf16.msra.mxu0 0
  %591 = vmatprep.subr.bf16.mxu0 0
  %592 = vmatpush1.bf16.msra.mxu0 0
  %593 = vmatprep.subr.bf16.mxu0 0
  %594 = vmatpush1.bf16.msra.mxu0 0
  %595 = vmatprep.subr.bf16.mxu0 0
  %596 = vmatpush1.bf16.msra.mxu0 0
  %597 = vmatprep.subr.bf16.mxu0 0
  %598 = vmatpush1.bf16.msra.mxu0 0
  %599 = vmatprep.subr.bf16.mxu0 0
  %600 = vmatpush1.bf16.msra.mxu0 0
  %601 = vmatprep.subr.bf16.mxu0 0
  %602 = vmatpush1.bf16.msra.mxu0 0
  %603 = vmatprep.mubr.bf16.mxu0 0
  %604 = vmatmul.mubr.bf16.gmra.mrb[0].mxu0 %v569
  %v605 = vpop.f32.mrb[0].mxu0
  %v606 = vadd.f32 %v245, %v605
  %v607 = vpop.f32.mrb[0].mxu0
  %v608 = vadd.f32 %v249, %v607
  %v609 = vpop.f32.mrb[0].mxu0
  %v610 = vadd.f32 %v245, %v609
  %v611 = vpop.f32.mrb[0].mxu0
  %v612 = vadd.f32 %v249, %v611
  %613 = vdwg.mxu0
  %v614 = vadd.f32 %v606, %v153
  %v615 = vadd.f32 %v610, %v156
  %v616 = vxor.u32 %v614, 2147483648
  %v617 = vxor.u32 %v615, 2147483648
  %v618 = vmul.f32 %v616, 1.442695
  %v619 = vpow.pop %v618
  %v620 = vmul.f32 %v617, 1.442695
  %v621 = vpow.pop %v620
  %v622 = vadd.f32 %v619, 1.0
  %v623 = vadd.f32 %v621, 1.0
  %v624 = vrcp.pop %v622
  %v625 = vmul.f32 1.0, %v624
  %v626 = vrcp.pop %v623
  %v627 = vmul.f32 1.0, %v626
  %v628 = vmul.f32 %v625, 2.0
  %v629 = vmul.f32 %v627, 2.0
  %v630 = vsub.f32 %v628, 1.0
  %v631 = vsub.f32 %v629, 1.0
  %v632 = vmul.f32 %v625, %v485
  %v633 = vmul.f32 %v627, %v486
  %636 = vrot.lane.b32.xlu0 %v630, 64
  %v637 = vpop.permute.xlu0 %636
  %638 = vrot.lane.b32.xlu0 %v631, 64
  %v639 = vpop.permute.xlu0 %638
  %v642 = vmul.f32 %v625, %v637
  %v643 = vmul.f32 %v627, %v639
  %646 = vrot.lane.b32.xlu0 %v642, 32
  %v647 = vpop.permute.xlu0 %646
  %648 = vrot.lane.b32.xlu0 %v643, 32
  %v649 = vpop.permute.xlu0 %648
  %v652 = vadd.f32 %v632, %v647
  %v653 = vadd.f32 %v633, %v649
  %v654 = vtanh.pop %v652
  %v655 = vtanh.pop %v653
  %658 = vrot.lane.b32.xlu0 %v654, 64
  %v659 = vpop.permute.xlu0 %658
  %660 = vrot.lane.b32.xlu0 %v655, 64
  %v661 = vpop.permute.xlu0 %660
  %v664 = vmul.f32 %v625, %v659
  %v665 = vmul.f32 %v627, %v661
  %v666 = vxor.u32 %v608, 2147483648
  %v667 = vxor.u32 %v612, 2147483648
  %v668 = vmul.f32 %v666, 1.442695
  %v669 = vpow.pop %v668
  %v670 = vmul.f32 %v667, 1.442695
  %v671 = vpow.pop %v670
  %v672 = vadd.f32 %v669, 1.0
  %v673 = vadd.f32 %v671, 1.0
  %v674 = vrcp.pop %v672
  %v675 = vmul.f32 1.0, %v674
  %v676 = vrcp.pop %v673
  %v677 = vmul.f32 1.0, %v676
  %v678 = vmul.f32 %v675, 2.0
  %v679 = vmul.f32 %v677, 2.0
  %v680 = vsub.f32 %v678, 1.0
  %v681 = vsub.f32 %v679, 1.0
  %v682 = vmul.f32 %v675, %v535
  %v683 = vmul.f32 %v677, %v536
  %686 = vrot.lane.b32.xlu0 %v680, 64
  %v687 = vpop.permute.xlu0 %686
  %688 = vrot.lane.b32.xlu0 %v681, 64
  %v689 = vpop.permute.xlu0 %688
  %v692 = vmul.f32 %v675, %v687
  %v693 = vmul.f32 %v677, %v689
  %696 = vrot.lane.b32.xlu0 %v692, 32
  %v697 = vpop.permute.xlu0 %696
  %698 = vrot.lane.b32.xlu0 %v693, 32
  %v699 = vpop.permute.xlu0 %698
  %v702 = vadd.f32 %v682, %v697
  %v703 = vadd.f32 %v683, %v699
  %v704 = vtanh.pop %v702
  %v705 = vtanh.pop %v703
  %708 = vrot.lane.b32.xlu0 %v704, 64
  %v709 = vpop.permute.xlu0 %708
  %710 = vrot.lane.b32.xlu0 %v705, 64
  %v711 = vpop.permute.xlu0 %710
  %v714 = vmul.f32 %v675, %v709
  %v715 = vmul.f32 %v677, %v711
  %718 = vrot.lane.b32.xlu0 %v664, 32
  %v719 = vpop.permute.xlu0 %718
  %720 = vrot.lane.b32.xlu0 %v665, 32
  %v721 = vpop.permute.xlu0 %720
  %726 = vrot.lane.b32.xlu0 %v714, 64
  %v727 = vpop.permute.xlu0 %726
  %728 = vrot.lane.b32.xlu0 %v715, 64
  %v729 = vpop.permute.xlu0 %728
  %v732 = vsel %vm397, %v719, %v727
  %v733 = vsel %vm397, %v721, %v729
  %v734 = vpack.c.bf16 %v733, %v732
  %v736 = vsel %vm292, %v734, 0
  %738 = vmatprep.subr.bf16.mxu0 %v277
  %739 = vmatpush1.bf16.msra.mxu0 %v276
  %740 = vmatprep.subr.bf16.mxu0 %v279
  %741 = vmatpush1.bf16.msra.mxu0 %v278
  %742 = vmatprep.subr.bf16.mxu0 %v281
  %743 = vmatpush1.bf16.msra.mxu0 %v280
  %744 = vmatprep.subr.bf16.mxu0 %v283
  %745 = vmatpush1.bf16.msra.mxu0 %v282
  %746 = vmatprep.subr.bf16.mxu0 0
  %747 = vmatpush1.bf16.msra.mxu0 0
  %748 = vmatprep.subr.bf16.mxu0 0
  %749 = vmatpush1.bf16.msra.mxu0 0
  %750 = vmatprep.subr.bf16.mxu0 0
  %751 = vmatpush1.bf16.msra.mxu0 0
  %752 = vmatprep.subr.bf16.mxu0 0
  %753 = vmatpush1.bf16.msra.mxu0 0
  %754 = vmatprep.subr.bf16.mxu0 0
  %755 = vmatpush1.bf16.msra.mxu0 0
  %756 = vmatprep.subr.bf16.mxu0 0
  %757 = vmatpush1.bf16.msra.mxu0 0
  %758 = vmatprep.subr.bf16.mxu0 0
  %759 = vmatpush1.bf16.msra.mxu0 0
  %760 = vmatprep.subr.bf16.mxu0 0
  %761 = vmatpush1.bf16.msra.mxu0 0
  %762 = vmatprep.subr.bf16.mxu0 0
  %763 = vmatpush1.bf16.msra.mxu0 0
  %764 = vmatprep.subr.bf16.mxu0 0
  %765 = vmatpush1.bf16.msra.mxu0 0
  %766 = vmatprep.subr.bf16.mxu0 0
  %767 = vmatpush1.bf16.msra.mxu0 0
  %768 = vmatprep.subr.bf16.mxu0 0
  %769 = vmatpush1.bf16.msra.mxu0 0
  %770 = vmatprep.mubr.bf16.mxu0 0
  %771 = vmatmul.mubr.bf16.gmra.mrb[0].mxu0 %v736
  %v772 = vpop.f32.mrb[0].mxu0
  %v773 = vadd.f32 %v245, %v772
  %v774 = vpop.f32.mrb[0].mxu0
  %v775 = vadd.f32 %v249, %v774
  %v776 = vpop.f32.mrb[0].mxu0
  %v777 = vadd.f32 %v245, %v776
  %v778 = vpop.f32.mrb[0].mxu0
  %v779 = vadd.f32 %v249, %v778
  %780 = vdwg.mxu0
  %v781 = vadd.f32 %v773, %v161
  %v782 = vadd.f32 %v777, %v164
  %v783 = vxor.u32 %v781, 2147483648
  %v784 = vxor.u32 %v782, 2147483648
  %v785 = vmul.f32 %v783, 1.442695
  %v786 = vpow.pop %v785
  %v787 = vmul.f32 %v784, 1.442695
  %v788 = vpow.pop %v787
  %v789 = vadd.f32 %v786, 1.0
  %v790 = vadd.f32 %v788, 1.0
  %v791 = vrcp.pop %v789
  %v792 = vmul.f32 1.0, %v791
  %v793 = vrcp.pop %v790
  %v794 = vmul.f32 1.0, %v793
  %v795 = vmul.f32 %v792, 2.0
  %v796 = vmul.f32 %v794, 2.0
  %v797 = vsub.f32 %v795, 1.0
  %v798 = vsub.f32 %v796, 1.0
  %v799 = vmul.f32 %v792, %v652
  %v800 = vmul.f32 %v794, %v653
  %803 = vrot.lane.b32.xlu0 %v797, 64
  %v804 = vpop.permute.xlu0 %803
  %805 = vrot.lane.b32.xlu0 %v798, 64
  %v806 = vpop.permute.xlu0 %805
  %v809 = vmul.f32 %v792, %v804
  %v810 = vmul.f32 %v794, %v806
  %813 = vrot.lane.b32.xlu0 %v809, 32
  %v814 = vpop.permute.xlu0 %813
  %815 = vrot.lane.b32.xlu0 %v810, 32
  %v816 = vpop.permute.xlu0 %815
  %v819 = vadd.f32 %v799, %v814
  %v820 = vadd.f32 %v800, %v816
  %v821 = vtanh.pop %v819
  %v822 = vtanh.pop %v820
  %825 = vrot.lane.b32.xlu0 %v821, 64
  %v826 = vpop.permute.xlu0 %825
  %827 = vrot.lane.b32.xlu0 %v822, 64
  %v828 = vpop.permute.xlu0 %827
  %v831 = vmul.f32 %v792, %v826
  %v832 = vmul.f32 %v794, %v828
  %v833 = vxor.u32 %v775, 2147483648
  %v834 = vxor.u32 %v779, 2147483648
  %v835 = vmul.f32 %v833, 1.442695
  %v836 = vpow.pop %v835
  %v837 = vmul.f32 %v834, 1.442695
  %v838 = vpow.pop %v837
  %v839 = vadd.f32 %v836, 1.0
  %v840 = vadd.f32 %v838, 1.0
  %v841 = vrcp.pop %v839
  %v842 = vmul.f32 1.0, %v841
  %v843 = vrcp.pop %v840
  %v844 = vmul.f32 1.0, %v843
  %v845 = vmul.f32 %v842, 2.0
  %v846 = vmul.f32 %v844, 2.0
  %v847 = vsub.f32 %v845, 1.0
  %v848 = vsub.f32 %v846, 1.0
  %v849 = vmul.f32 %v842, %v702
  %v850 = vmul.f32 %v844, %v703
  %853 = vrot.lane.b32.xlu0 %v847, 64
  %v854 = vpop.permute.xlu0 %853
  %855 = vrot.lane.b32.xlu0 %v848, 64
  %v856 = vpop.permute.xlu0 %855
  %v859 = vmul.f32 %v842, %v854
  %v860 = vmul.f32 %v844, %v856
  %863 = vrot.lane.b32.xlu0 %v859, 32
  %v864 = vpop.permute.xlu0 %863
  %865 = vrot.lane.b32.xlu0 %v860, 32
  %v866 = vpop.permute.xlu0 %865
  %v869 = vadd.f32 %v849, %v864
  %v870 = vadd.f32 %v850, %v866
  %v871 = vtanh.pop %v869
  %v872 = vtanh.pop %v870
  %875 = vrot.lane.b32.xlu0 %v871, 64
  %v876 = vpop.permute.xlu0 %875
  %877 = vrot.lane.b32.xlu0 %v872, 64
  %v878 = vpop.permute.xlu0 %877
  %v881 = vmul.f32 %v842, %v876
  %v882 = vmul.f32 %v844, %v878
  %885 = vrot.lane.b32.xlu0 %v831, 32
  %v886 = vpop.permute.xlu0 %885
  %887 = vrot.lane.b32.xlu0 %v832, 32
  %v888 = vpop.permute.xlu0 %887
  %893 = vrot.lane.b32.xlu0 %v881, 64
  %v894 = vpop.permute.xlu0 %893
  %895 = vrot.lane.b32.xlu0 %v882, 64
  %v896 = vpop.permute.xlu0 %895
  %v899 = vsel %vm397, %v886, %v894
  %v900 = vsel %vm397, %v888, %v896
  %v901 = vpack.c.bf16 %v900, %v899
  %v903 = vsel %vm292, %v901, 0
  %905 = vmatprep.subr.bf16.mxu0 %v277
  %906 = vmatpush1.bf16.msra.mxu0 %v276
  %907 = vmatprep.subr.bf16.mxu0 %v279
  %908 = vmatpush1.bf16.msra.mxu0 %v278
  %909 = vmatprep.subr.bf16.mxu0 %v281
  %910 = vmatpush1.bf16.msra.mxu0 %v280
  %911 = vmatprep.subr.bf16.mxu0 %v283
  %912 = vmatpush1.bf16.msra.mxu0 %v282
  %913 = vmatprep.subr.bf16.mxu0 0
  %914 = vmatpush1.bf16.msra.mxu0 0
  %915 = vmatprep.subr.bf16.mxu0 0
  %916 = vmatpush1.bf16.msra.mxu0 0
  %917 = vmatprep.subr.bf16.mxu0 0
  %918 = vmatpush1.bf16.msra.mxu0 0
  %919 = vmatprep.subr.bf16.mxu0 0
  %920 = vmatpush1.bf16.msra.mxu0 0
  %921 = vmatprep.subr.bf16.mxu0 0
  %922 = vmatpush1.bf16.msra.mxu0 0
  %923 = vmatprep.subr.bf16.mxu0 0
  %924 = vmatpush1.bf16.msra.mxu0 0
  %925 = vmatprep.subr.bf16.mxu0 0
  %926 = vmatpush1.bf16.msra.mxu0 0
  %927 = vmatprep.subr.bf16.mxu0 0
  %928 = vmatpush1.bf16.msra.mxu0 0
  %929 = vmatprep.subr.bf16.mxu0 0
  %930 = vmatpush1.bf16.msra.mxu0 0
  %931 = vmatprep.subr.bf16.mxu0 0
  %932 = vmatpush1.bf16.msra.mxu0 0
  %933 = vmatprep.subr.bf16.mxu0 0
  %934 = vmatpush1.bf16.msra.mxu0 0
  %935 = vmatprep.subr.bf16.mxu0 0
  %936 = vmatpush1.bf16.msra.mxu0 0
  %937 = vmatprep.mubr.bf16.mxu0 0
  %938 = vmatmul.mubr.bf16.gmra.mrb[0].mxu0 %v903
  %v939 = vpop.f32.mrb[0].mxu0
  %v940 = vadd.f32 %v245, %v939
  %v941 = vpop.f32.mrb[0].mxu0
  %v942 = vadd.f32 %v249, %v941
  %v943 = vpop.f32.mrb[0].mxu0
  %v944 = vadd.f32 %v245, %v943
  %v945 = vpop.f32.mrb[0].mxu0
  %v946 = vadd.f32 %v249, %v945
  %947 = vdwg.mxu0
  %v948 = vadd.f32 %v940, %v169
  %v949 = vadd.f32 %v944, %v172
  %v950 = vxor.u32 %v948, 2147483648
  %v951 = vxor.u32 %v949, 2147483648
  %v952 = vmul.f32 %v950, 1.442695
  %v953 = vpow.pop %v952
  %v954 = vmul.f32 %v951, 1.442695
  %v955 = vpow.pop %v954
  %v956 = vadd.f32 %v953, 1.0
  %v957 = vadd.f32 %v955, 1.0
  %v958 = vrcp.pop %v956
  %v959 = vmul.f32 1.0, %v958
  %v960 = vrcp.pop %v957
  %v961 = vmul.f32 1.0, %v960
  %v962 = vmul.f32 %v959, 2.0
  %v963 = vmul.f32 %v961, 2.0
  %v964 = vsub.f32 %v962, 1.0
  %v965 = vsub.f32 %v963, 1.0
  %v966 = vmul.f32 %v959, %v819
  %v967 = vmul.f32 %v961, %v820
  %970 = vrot.lane.b32.xlu0 %v964, 64
  %v971 = vpop.permute.xlu0 %970
  %972 = vrot.lane.b32.xlu0 %v965, 64
  %v973 = vpop.permute.xlu0 %972
  %v976 = vmul.f32 %v959, %v971
  %v977 = vmul.f32 %v961, %v973
  %980 = vrot.lane.b32.xlu0 %v976, 32
  %v981 = vpop.permute.xlu0 %980
  %982 = vrot.lane.b32.xlu0 %v977, 32
  %v983 = vpop.permute.xlu0 %982
  %v986 = vadd.f32 %v966, %v981
  %v987 = vadd.f32 %v967, %v983
  %v988 = vtanh.pop %v986
  %v989 = vtanh.pop %v987
  %992 = vrot.lane.b32.xlu0 %v988, 64
  %v993 = vpop.permute.xlu0 %992
  %994 = vrot.lane.b32.xlu0 %v989, 64
  %v995 = vpop.permute.xlu0 %994
  %v998 = vmul.f32 %v959, %v993
  %v999 = vmul.f32 %v961, %v995
  %v1000 = vxor.u32 %v942, 2147483648
  %v1001 = vxor.u32 %v946, 2147483648
  %v1002 = vmul.f32 %v1000, 1.442695
  %v1003 = vpow.pop %v1002
  %v1004 = vmul.f32 %v1001, 1.442695
  %v1005 = vpow.pop %v1004
  %v1006 = vadd.f32 %v1003, 1.0
  %v1007 = vadd.f32 %v1005, 1.0
  %v1008 = vrcp.pop %v1006
  %v1009 = vmul.f32 1.0, %v1008
  %v1010 = vrcp.pop %v1007
  %v1011 = vmul.f32 1.0, %v1010
  %v1012 = vmul.f32 %v1009, 2.0
  %v1013 = vmul.f32 %v1011, 2.0
  %v1014 = vsub.f32 %v1012, 1.0
  %v1015 = vsub.f32 %v1013, 1.0
  %v1016 = vmul.f32 %v1009, %v869
  %v1017 = vmul.f32 %v1011, %v870
  %1020 = vrot.lane.b32.xlu0 %v1014, 64
  %v1021 = vpop.permute.xlu0 %1020
  %1022 = vrot.lane.b32.xlu0 %v1015, 64
  %v1023 = vpop.permute.xlu0 %1022
  %v1026 = vmul.f32 %v1009, %v1021
  %v1027 = vmul.f32 %v1011, %v1023
  %1030 = vrot.lane.b32.xlu0 %v1026, 32
  %v1031 = vpop.permute.xlu0 %1030
  %1032 = vrot.lane.b32.xlu0 %v1027, 32
  %v1033 = vpop.permute.xlu0 %1032
  %v1036 = vadd.f32 %v1016, %v1031
  %v1037 = vadd.f32 %v1017, %v1033
  %v1038 = vtanh.pop %v1036
  %v1039 = vtanh.pop %v1037
  %1042 = vrot.lane.b32.xlu0 %v1038, 64
  %v1043 = vpop.permute.xlu0 %1042
  %1044 = vrot.lane.b32.xlu0 %v1039, 64
  %v1045 = vpop.permute.xlu0 %1044
  %v1048 = vmul.f32 %v1009, %v1043
  %v1049 = vmul.f32 %v1011, %v1045
  %1052 = vrot.lane.b32.xlu0 %v998, 32
  %v1053 = vpop.permute.xlu0 %1052
  %1054 = vrot.lane.b32.xlu0 %v999, 32
  %v1055 = vpop.permute.xlu0 %1054
  %1060 = vrot.lane.b32.xlu0 %v1048, 64
  %v1061 = vpop.permute.xlu0 %1060
  %1062 = vrot.lane.b32.xlu0 %v1049, 64
  %v1063 = vpop.permute.xlu0 %1062
  %v1066 = vsel %vm397, %v1053, %v1061
  %v1067 = vsel %vm397, %v1055, %v1063
  %v1068 = vpack.c.bf16 %v1067, %v1066
  %v1070 = vsel %vm292, %v1068, 0
  %1072 = vmatprep.subr.bf16.mxu0 %v277
  %1073 = vmatpush1.bf16.msra.mxu0 %v276
  %1074 = vmatprep.subr.bf16.mxu0 %v279
  %1075 = vmatpush1.bf16.msra.mxu0 %v278
  %1076 = vmatprep.subr.bf16.mxu0 %v281
  %1077 = vmatpush1.bf16.msra.mxu0 %v280
  %1078 = vmatprep.subr.bf16.mxu0 %v283
  %1079 = vmatpush1.bf16.msra.mxu0 %v282
  %1080 = vmatprep.subr.bf16.mxu0 0
  %1081 = vmatpush1.bf16.msra.mxu0 0
  %1082 = vmatprep.subr.bf16.mxu0 0
  %1083 = vmatpush1.bf16.msra.mxu0 0
  %1084 = vmatprep.subr.bf16.mxu0 0
  %1085 = vmatpush1.bf16.msra.mxu0 0
  %1086 = vmatprep.subr.bf16.mxu0 0
  %1087 = vmatpush1.bf16.msra.mxu0 0
  %1088 = vmatprep.subr.bf16.mxu0 0
  %1089 = vmatpush1.bf16.msra.mxu0 0
  %1090 = vmatprep.subr.bf16.mxu0 0
  %1091 = vmatpush1.bf16.msra.mxu0 0
  %1092 = vmatprep.subr.bf16.mxu0 0
  %1093 = vmatpush1.bf16.msra.mxu0 0
  %1094 = vmatprep.subr.bf16.mxu0 0
  %1095 = vmatpush1.bf16.msra.mxu0 0
  %1096 = vmatprep.subr.bf16.mxu0 0
  %1097 = vmatpush1.bf16.msra.mxu0 0
  %1098 = vmatprep.subr.bf16.mxu0 0
  %1099 = vmatpush1.bf16.msra.mxu0 0
  %1100 = vmatprep.subr.bf16.mxu0 0
  %1101 = vmatpush1.bf16.msra.mxu0 0
  %1102 = vmatprep.subr.bf16.mxu0 0
  %1103 = vmatpush1.bf16.msra.mxu0 0
  %1104 = vmatprep.mubr.bf16.mxu0 0
  %1105 = vmatmul.mubr.bf16.gmra.mrb[0].mxu0 %v1070
  %v1106 = vpop.f32.mrb[0].mxu0
  %v1107 = vadd.f32 %v245, %v1106
  %v1108 = vpop.f32.mrb[0].mxu0
  %v1109 = vadd.f32 %v249, %v1108
  %v1110 = vpop.f32.mrb[0].mxu0
  %v1111 = vadd.f32 %v245, %v1110
  %v1112 = vpop.f32.mrb[0].mxu0
  %v1113 = vadd.f32 %v249, %v1112
  %1114 = vdwg.mxu0
  %v1115 = vadd.f32 %v1107, %v177
  %v1116 = vadd.f32 %v1111, %v180
  %v1117 = vxor.u32 %v1115, 2147483648
  %v1118 = vxor.u32 %v1116, 2147483648
  %v1119 = vmul.f32 %v1117, 1.442695
  %v1120 = vpow.pop %v1119
  %v1121 = vmul.f32 %v1118, 1.442695
  %v1122 = vpow.pop %v1121
  %v1123 = vadd.f32 %v1120, 1.0
  %v1124 = vadd.f32 %v1122, 1.0
  %v1125 = vrcp.pop %v1123
  %v1126 = vmul.f32 1.0, %v1125
  %v1127 = vrcp.pop %v1124
  %v1128 = vmul.f32 1.0, %v1127
  %v1129 = vmul.f32 %v1126, 2.0
  %v1130 = vmul.f32 %v1128, 2.0
  %v1131 = vsub.f32 %v1129, 1.0
  %v1132 = vsub.f32 %v1130, 1.0
  %v1133 = vmul.f32 %v1126, %v986
  %v1134 = vmul.f32 %v1128, %v987
  %1137 = vrot.lane.b32.xlu0 %v1131, 64
  %v1138 = vpop.permute.xlu0 %1137
  %1139 = vrot.lane.b32.xlu0 %v1132, 64
  %v1140 = vpop.permute.xlu0 %1139
  %v1143 = vmul.f32 %v1126, %v1138
  %v1144 = vmul.f32 %v1128, %v1140
  %1147 = vrot.lane.b32.xlu0 %v1143, 32
  %v1148 = vpop.permute.xlu0 %1147
  %1149 = vrot.lane.b32.xlu0 %v1144, 32
  %v1150 = vpop.permute.xlu0 %1149
  %v1153 = vadd.f32 %v1133, %v1148
  %v1154 = vadd.f32 %v1134, %v1150
  %v1155 = vtanh.pop %v1153
  %v1156 = vtanh.pop %v1154
  %1159 = vrot.lane.b32.xlu0 %v1155, 64
  %v1160 = vpop.permute.xlu0 %1159
  %1161 = vrot.lane.b32.xlu0 %v1156, 64
  %v1162 = vpop.permute.xlu0 %1161
  %v1165 = vmul.f32 %v1126, %v1160
  %v1166 = vmul.f32 %v1128, %v1162
  %v1167 = vxor.u32 %v1109, 2147483648
  %v1168 = vxor.u32 %v1113, 2147483648
  %v1169 = vmul.f32 %v1167, 1.442695
  %v1170 = vpow.pop %v1169
  %v1171 = vmul.f32 %v1168, 1.442695
  %v1172 = vpow.pop %v1171
  %v1173 = vadd.f32 %v1170, 1.0
  %v1174 = vadd.f32 %v1172, 1.0
  %v1175 = vrcp.pop %v1173
  %v1176 = vmul.f32 1.0, %v1175
  %v1177 = vrcp.pop %v1174
  %v1178 = vmul.f32 1.0, %v1177
  %v1179 = vmul.f32 %v1176, 2.0
  %v1180 = vmul.f32 %v1178, 2.0
  %v1181 = vsub.f32 %v1179, 1.0
  %v1182 = vsub.f32 %v1180, 1.0
  %v1183 = vmul.f32 %v1176, %v1036
  %v1184 = vmul.f32 %v1178, %v1037
  %1187 = vrot.lane.b32.xlu0 %v1181, 64
  %v1188 = vpop.permute.xlu0 %1187
  %1189 = vrot.lane.b32.xlu0 %v1182, 64
  %v1190 = vpop.permute.xlu0 %1189
  %v1193 = vmul.f32 %v1176, %v1188
  %v1194 = vmul.f32 %v1178, %v1190
  %1197 = vrot.lane.b32.xlu0 %v1193, 32
  %v1198 = vpop.permute.xlu0 %1197
  %1199 = vrot.lane.b32.xlu0 %v1194, 32
  %v1200 = vpop.permute.xlu0 %1199
  %v1203 = vadd.f32 %v1183, %v1198
  %v1204 = vadd.f32 %v1184, %v1200
  %v1205 = vtanh.pop %v1203
  %v1206 = vtanh.pop %v1204
  %1209 = vrot.lane.b32.xlu0 %v1205, 64
  %v1210 = vpop.permute.xlu0 %1209
  %1211 = vrot.lane.b32.xlu0 %v1206, 64
  %v1212 = vpop.permute.xlu0 %1211
  %v1215 = vmul.f32 %v1176, %v1210
  %v1216 = vmul.f32 %v1178, %v1212
  %1219 = vrot.lane.b32.xlu0 %v1165, 32
  %v1220 = vpop.permute.xlu0 %1219
  %1221 = vrot.lane.b32.xlu0 %v1166, 32
  %v1222 = vpop.permute.xlu0 %1221
  %1227 = vrot.lane.b32.xlu0 %v1215, 64
  %v1228 = vpop.permute.xlu0 %1227
  %1229 = vrot.lane.b32.xlu0 %v1216, 64
  %v1230 = vpop.permute.xlu0 %1229
  %v1233 = vsel %vm397, %v1220, %v1228
  %v1234 = vsel %vm397, %v1222, %v1230
  %v1235 = vpack.c.bf16 %v1234, %v1233
  %v1237 = vsel %vm292, %v1235, 0
  %1239 = vmatprep.subr.bf16.mxu0 %v277
  %1240 = vmatpush1.bf16.msra.mxu0 %v276
  %1241 = vmatprep.subr.bf16.mxu0 %v279
  %1242 = vmatpush1.bf16.msra.mxu0 %v278
  %1243 = vmatprep.subr.bf16.mxu0 %v281
  %1244 = vmatpush1.bf16.msra.mxu0 %v280
  %1245 = vmatprep.subr.bf16.mxu0 %v283
  %1246 = vmatpush1.bf16.msra.mxu0 %v282
  %1247 = vmatprep.subr.bf16.mxu0 0
  %1248 = vmatpush1.bf16.msra.mxu0 0
  %1249 = vmatprep.subr.bf16.mxu0 0
  %1250 = vmatpush1.bf16.msra.mxu0 0
  %1251 = vmatprep.subr.bf16.mxu0 0
  %1252 = vmatpush1.bf16.msra.mxu0 0
  %1253 = vmatprep.subr.bf16.mxu0 0
  %1254 = vmatpush1.bf16.msra.mxu0 0
  %1255 = vmatprep.subr.bf16.mxu0 0
  %1256 = vmatpush1.bf16.msra.mxu0 0
  %1257 = vmatprep.subr.bf16.mxu0 0
  %1258 = vmatpush1.bf16.msra.mxu0 0
  %1259 = vmatprep.subr.bf16.mxu0 0
  %1260 = vmatpush1.bf16.msra.mxu0 0
  %1261 = vmatprep.subr.bf16.mxu0 0
  %1262 = vmatpush1.bf16.msra.mxu0 0
  %1263 = vmatprep.subr.bf16.mxu0 0
  %1264 = vmatpush1.bf16.msra.mxu0 0
  %1265 = vmatprep.subr.bf16.mxu0 0
  %1266 = vmatpush1.bf16.msra.mxu0 0
  %1267 = vmatprep.subr.bf16.mxu0 0
  %1268 = vmatpush1.bf16.msra.mxu0 0
  %1269 = vmatprep.subr.bf16.mxu0 0
  %1270 = vmatpush1.bf16.msra.mxu0 0
  %1271 = vmatprep.mubr.bf16.mxu0 0
  %1272 = vmatmul.mubr.bf16.gmra.mrb[0].mxu0 %v1237
  %v1273 = vpop.f32.mrb[0].mxu0
  %v1274 = vadd.f32 %v245, %v1273
  %v1275 = vpop.f32.mrb[0].mxu0
  %v1276 = vadd.f32 %v249, %v1275
  %v1277 = vpop.f32.mrb[0].mxu0
  %v1278 = vadd.f32 %v245, %v1277
  %v1279 = vpop.f32.mrb[0].mxu0
  %v1280 = vadd.f32 %v249, %v1279
  %1281 = vdwg.mxu0
  %v1282 = vadd.f32 %v1274, %v185
  %v1283 = vadd.f32 %v1278, %v188
  %v1284 = vxor.u32 %v1282, 2147483648
  %v1285 = vxor.u32 %v1283, 2147483648
  %v1286 = vmul.f32 %v1284, 1.442695
  %v1287 = vpow.pop %v1286
  %v1288 = vmul.f32 %v1285, 1.442695
  %v1289 = vpow.pop %v1288
  %v1290 = vadd.f32 %v1287, 1.0
  %v1291 = vadd.f32 %v1289, 1.0
  %v1292 = vrcp.pop %v1290
  %v1293 = vmul.f32 1.0, %v1292
  %v1294 = vrcp.pop %v1291
  %v1295 = vmul.f32 1.0, %v1294
  %v1296 = vmul.f32 %v1293, 2.0
  %v1297 = vmul.f32 %v1295, 2.0
  %v1298 = vsub.f32 %v1296, 1.0
  %v1299 = vsub.f32 %v1297, 1.0
  %v1300 = vmul.f32 %v1293, %v1153
  %v1301 = vmul.f32 %v1295, %v1154
  %1304 = vrot.lane.b32.xlu0 %v1298, 64
  %v1305 = vpop.permute.xlu0 %1304
  %1306 = vrot.lane.b32.xlu0 %v1299, 64
  %v1307 = vpop.permute.xlu0 %1306
  %v1310 = vmul.f32 %v1293, %v1305
  %v1311 = vmul.f32 %v1295, %v1307
  %1314 = vrot.lane.b32.xlu0 %v1310, 32
  %v1315 = vpop.permute.xlu0 %1314
  %1316 = vrot.lane.b32.xlu0 %v1311, 32
  %v1317 = vpop.permute.xlu0 %1316
  %v1320 = vadd.f32 %v1300, %v1315
  %v1321 = vadd.f32 %v1301, %v1317
  %v1322 = vtanh.pop %v1320
  %v1323 = vtanh.pop %v1321
  %1326 = vrot.lane.b32.xlu0 %v1322, 64
  %v1327 = vpop.permute.xlu0 %1326
  %1328 = vrot.lane.b32.xlu0 %v1323, 64
  %v1329 = vpop.permute.xlu0 %1328
  %v1332 = vmul.f32 %v1293, %v1327
  %v1333 = vmul.f32 %v1295, %v1329
  %v1334 = vxor.u32 %v1276, 2147483648
  %v1335 = vxor.u32 %v1280, 2147483648
  %v1336 = vmul.f32 %v1334, 1.442695
  %v1337 = vpow.pop %v1336
  %v1338 = vmul.f32 %v1335, 1.442695
  %v1339 = vpow.pop %v1338
  %v1340 = vadd.f32 %v1337, 1.0
  %v1341 = vadd.f32 %v1339, 1.0
  %v1342 = vrcp.pop %v1340
  %v1343 = vmul.f32 1.0, %v1342
  %v1344 = vrcp.pop %v1341
  %v1345 = vmul.f32 1.0, %v1344
  %v1346 = vmul.f32 %v1343, 2.0
  %v1347 = vmul.f32 %v1345, 2.0
  %v1348 = vsub.f32 %v1346, 1.0
  %v1349 = vsub.f32 %v1347, 1.0
  %v1350 = vmul.f32 %v1343, %v1203
  %v1351 = vmul.f32 %v1345, %v1204
  %1354 = vrot.lane.b32.xlu0 %v1348, 64
  %v1355 = vpop.permute.xlu0 %1354
  %1356 = vrot.lane.b32.xlu0 %v1349, 64
  %v1357 = vpop.permute.xlu0 %1356
  %v1360 = vmul.f32 %v1343, %v1355
  %v1361 = vmul.f32 %v1345, %v1357
  %1364 = vrot.lane.b32.xlu0 %v1360, 32
  %v1365 = vpop.permute.xlu0 %1364
  %1366 = vrot.lane.b32.xlu0 %v1361, 32
  %v1367 = vpop.permute.xlu0 %1366
  %v1370 = vadd.f32 %v1350, %v1365
  %v1371 = vadd.f32 %v1351, %v1367
  %v1372 = vtanh.pop %v1370
  %v1373 = vtanh.pop %v1371
  %1376 = vrot.lane.b32.xlu0 %v1372, 64
  %v1377 = vpop.permute.xlu0 %1376
  %1378 = vrot.lane.b32.xlu0 %v1373, 64
  %v1379 = vpop.permute.xlu0 %1378
  %v1382 = vmul.f32 %v1343, %v1377
  %v1383 = vmul.f32 %v1345, %v1379
  %1386 = vrot.lane.b32.xlu0 %v1332, 32
  %v1387 = vpop.permute.xlu0 %1386
  %1388 = vrot.lane.b32.xlu0 %v1333, 32
  %v1389 = vpop.permute.xlu0 %1388
  %1394 = vrot.lane.b32.xlu0 %v1382, 64
  %v1395 = vpop.permute.xlu0 %1394
  %1396 = vrot.lane.b32.xlu0 %v1383, 64
  %v1397 = vpop.permute.xlu0 %1396
  %v1400 = vsel %vm397, %v1387, %v1395
  %v1401 = vsel %vm397, %v1389, %v1397
  %v1402 = vpack.c.bf16 %v1401, %v1400
  %v1404 = vsel %vm292, %v1402, 0
  %1406 = vmatprep.subr.bf16.mxu0 %v277
  %1407 = vmatpush1.bf16.msra.mxu0 %v276
  %1408 = vmatprep.subr.bf16.mxu0 %v279
  %1409 = vmatpush1.bf16.msra.mxu0 %v278
  %1410 = vmatprep.subr.bf16.mxu0 %v281
  %1411 = vmatpush1.bf16.msra.mxu0 %v280
  %1412 = vmatprep.subr.bf16.mxu0 %v283
  %1413 = vmatpush1.bf16.msra.mxu0 %v282
  %1414 = vmatprep.subr.bf16.mxu0 0
  %1415 = vmatpush1.bf16.msra.mxu0 0
  %1416 = vmatprep.subr.bf16.mxu0 0
  %1417 = vmatpush1.bf16.msra.mxu0 0
  %1418 = vmatprep.subr.bf16.mxu0 0
  %1419 = vmatpush1.bf16.msra.mxu0 0
  %1420 = vmatprep.subr.bf16.mxu0 0
  %1421 = vmatpush1.bf16.msra.mxu0 0
  %1422 = vmatprep.subr.bf16.mxu0 0
  %1423 = vmatpush1.bf16.msra.mxu0 0
  %1424 = vmatprep.subr.bf16.mxu0 0
  %1425 = vmatpush1.bf16.msra.mxu0 0
  %1426 = vmatprep.subr.bf16.mxu0 0
  %1427 = vmatpush1.bf16.msra.mxu0 0
  %1428 = vmatprep.subr.bf16.mxu0 0
  %1429 = vmatpush1.bf16.msra.mxu0 0
  %1430 = vmatprep.subr.bf16.mxu0 0
  %1431 = vmatpush1.bf16.msra.mxu0 0
  %1432 = vmatprep.subr.bf16.mxu0 0
  %1433 = vmatpush1.bf16.msra.mxu0 0
  %1434 = vmatprep.subr.bf16.mxu0 0
  %1435 = vmatpush1.bf16.msra.mxu0 0
  %1436 = vmatprep.subr.bf16.mxu0 0
  %1437 = vmatpush1.bf16.msra.mxu0 0
  %1438 = vmatprep.mubr.bf16.mxu0 0
  %1439 = vmatmul.mubr.bf16.gmra.mrb[0].mxu0 %v1404
  %v1440 = vpop.f32.mrb[0].mxu0
  %v1441 = vadd.f32 %v245, %v1440
  %v1442 = vpop.f32.mrb[0].mxu0
  %v1443 = vadd.f32 %v249, %v1442
  %v1444 = vpop.f32.mrb[0].mxu0
  %v1445 = vadd.f32 %v245, %v1444
  %v1446 = vpop.f32.mrb[0].mxu0
  %v1447 = vadd.f32 %v249, %v1446
  %1448 = vdwg.mxu0
  %v1449 = vadd.f32 %v1441, %v193
  %v1450 = vadd.f32 %v1445, %v196
  %v1451 = vxor.u32 %v1449, 2147483648
  %v1452 = vxor.u32 %v1450, 2147483648
  %v1453 = vmul.f32 %v1451, 1.442695
  %v1454 = vpow.pop %v1453
  %v1455 = vmul.f32 %v1452, 1.442695
  %v1456 = vpow.pop %v1455
  %v1457 = vadd.f32 %v1454, 1.0
  %v1458 = vadd.f32 %v1456, 1.0
  %v1459 = vrcp.pop %v1457
  %v1460 = vmul.f32 1.0, %v1459
  %v1461 = vrcp.pop %v1458
  %v1462 = vmul.f32 1.0, %v1461
  %v1463 = vmul.f32 %v1460, 2.0
  %v1464 = vmul.f32 %v1462, 2.0
  %v1465 = vsub.f32 %v1463, 1.0
  %v1466 = vsub.f32 %v1464, 1.0
  %v1467 = vmul.f32 %v1460, %v1320
  %v1468 = vmul.f32 %v1462, %v1321
  %1471 = vrot.lane.b32.xlu0 %v1465, 64
  %v1472 = vpop.permute.xlu0 %1471
  %1473 = vrot.lane.b32.xlu0 %v1466, 64
  %v1474 = vpop.permute.xlu0 %1473
  %v1477 = vmul.f32 %v1460, %v1472
  %v1478 = vmul.f32 %v1462, %v1474
  %1481 = vrot.lane.b32.xlu0 %v1477, 32
  %v1482 = vpop.permute.xlu0 %1481
  %1483 = vrot.lane.b32.xlu0 %v1478, 32
  %v1484 = vpop.permute.xlu0 %1483
  %v1487 = vadd.f32 %v1467, %v1482
  %v1488 = vadd.f32 %v1468, %v1484
  %v1489 = vtanh.pop %v1487
  %v1490 = vtanh.pop %v1488
  %1493 = vrot.lane.b32.xlu0 %v1489, 64
  %v1494 = vpop.permute.xlu0 %1493
  %1495 = vrot.lane.b32.xlu0 %v1490, 64
  %v1496 = vpop.permute.xlu0 %1495
  %v1499 = vmul.f32 %v1460, %v1494
  %v1500 = vmul.f32 %v1462, %v1496
  %v1501 = vxor.u32 %v1443, 2147483648
  %v1502 = vxor.u32 %v1447, 2147483648
  %v1503 = vmul.f32 %v1501, 1.442695
  %v1504 = vpow.pop %v1503
  %v1505 = vmul.f32 %v1502, 1.442695
  %v1506 = vpow.pop %v1505
  %v1507 = vadd.f32 %v1504, 1.0
  %v1508 = vadd.f32 %v1506, 1.0
  %v1509 = vrcp.pop %v1507
  %v1510 = vmul.f32 1.0, %v1509
  %v1511 = vrcp.pop %v1508
  %v1512 = vmul.f32 1.0, %v1511
  %v1513 = vmul.f32 %v1510, 2.0
  %v1514 = vmul.f32 %v1512, 2.0
  %v1515 = vsub.f32 %v1513, 1.0
  %v1516 = vsub.f32 %v1514, 1.0
  %v1517 = vmul.f32 %v1510, %v1370
  %v1518 = vmul.f32 %v1512, %v1371
  %1521 = vrot.lane.b32.xlu0 %v1515, 64
  %v1522 = vpop.permute.xlu0 %1521
  %1523 = vrot.lane.b32.xlu0 %v1516, 64
  %v1524 = vpop.permute.xlu0 %1523
  %v1527 = vmul.f32 %v1510, %v1522
  %v1528 = vmul.f32 %v1512, %v1524
  %1531 = vrot.lane.b32.xlu0 %v1527, 32
  %v1532 = vpop.permute.xlu0 %1531
  %1533 = vrot.lane.b32.xlu0 %v1528, 32
  %v1534 = vpop.permute.xlu0 %1533
  %v1537 = vadd.f32 %v1517, %v1532
  %v1538 = vadd.f32 %v1518, %v1534
  %v1539 = vtanh.pop %v1537
  %v1540 = vtanh.pop %v1538
  %1543 = vrot.lane.b32.xlu0 %v1539, 64
  %v1544 = vpop.permute.xlu0 %1543
  %1545 = vrot.lane.b32.xlu0 %v1540, 64
  %v1546 = vpop.permute.xlu0 %1545
  %v1549 = vmul.f32 %v1510, %v1544
  %v1550 = vmul.f32 %v1512, %v1546
  %1553 = vrot.lane.b32.xlu0 %v1499, 32
  %v1554 = vpop.permute.xlu0 %1553
  %1555 = vrot.lane.b32.xlu0 %v1500, 32
  %v1556 = vpop.permute.xlu0 %1555
  %1561 = vrot.lane.b32.xlu0 %v1549, 64
  %v1562 = vpop.permute.xlu0 %1561
  %1563 = vrot.lane.b32.xlu0 %v1550, 64
  %v1564 = vpop.permute.xlu0 %1563
  %v1567 = vsel %vm397, %v1554, %v1562
  %v1568 = vsel %vm397, %v1556, %v1564
  %v1569 = vpack.c.bf16 %v1568, %v1567
  %v1571 = vsel %vm292, %v1569, 0
  %1573 = vmatprep.subr.bf16.mxu0 %v277
  %1574 = vmatpush1.bf16.msra.mxu0 %v276
  %1575 = vmatprep.subr.bf16.mxu0 %v279
  %1576 = vmatpush1.bf16.msra.mxu0 %v278
  %1577 = vmatprep.subr.bf16.mxu0 %v281
  %1578 = vmatpush1.bf16.msra.mxu0 %v280
  %1579 = vmatprep.subr.bf16.mxu0 %v283
  %1580 = vmatpush1.bf16.msra.mxu0 %v282
  %1581 = vmatprep.subr.bf16.mxu0 0
  %1582 = vmatpush1.bf16.msra.mxu0 0
  %1583 = vmatprep.subr.bf16.mxu0 0
  %1584 = vmatpush1.bf16.msra.mxu0 0
  %1585 = vmatprep.subr.bf16.mxu0 0
  %1586 = vmatpush1.bf16.msra.mxu0 0
  %1587 = vmatprep.subr.bf16.mxu0 0
  %1588 = vmatpush1.bf16.msra.mxu0 0
  %1589 = vmatprep.subr.bf16.mxu0 0
  %1590 = vmatpush1.bf16.msra.mxu0 0
  %1591 = vmatprep.subr.bf16.mxu0 0
  %1592 = vmatpush1.bf16.msra.mxu0 0
  %1593 = vmatprep.subr.bf16.mxu0 0
  %1594 = vmatpush1.bf16.msra.mxu0 0
  %1595 = vmatprep.subr.bf16.mxu0 0
  %1596 = vmatpush1.bf16.msra.mxu0 0
  %1597 = vmatprep.subr.bf16.mxu0 0
  %1598 = vmatpush1.bf16.msra.mxu0 0
  %1599 = vmatprep.subr.bf16.mxu0 0
  %1600 = vmatpush1.bf16.msra.mxu0 0
  %1601 = vmatprep.subr.bf16.mxu0 0
  %1602 = vmatpush1.bf16.msra.mxu0 0
  %1603 = vmatprep.subr.bf16.mxu0 0
  %1604 = vmatpush1.bf16.msra.mxu0 0
  %1605 = vmatprep.mubr.bf16.mxu0 0
  %1606 = vmatmul.mubr.bf16.gmra.mrb[0].mxu0 %v1571
  %v1607 = vpop.f32.mrb[0].mxu0
  %v1608 = vadd.f32 %v245, %v1607
  %v1609 = vpop.f32.mrb[0].mxu0
  %v1610 = vadd.f32 %v249, %v1609
  %v1611 = vpop.f32.mrb[0].mxu0
  %v1612 = vadd.f32 %v245, %v1611
  %v1613 = vpop.f32.mrb[0].mxu0
  %v1614 = vadd.f32 %v249, %v1613
  %1615 = vdwg.mxu0
  %v1616 = vadd.f32 %v1608, %v201
  %v1617 = vadd.f32 %v1612, %v204
  %v1618 = vxor.u32 %v1616, 2147483648
  %v1619 = vxor.u32 %v1617, 2147483648
  %v1620 = vmul.f32 %v1618, 1.442695
  %v1621 = vpow.pop %v1620
  %v1622 = vmul.f32 %v1619, 1.442695
  %v1623 = vpow.pop %v1622
  %v1624 = vadd.f32 %v1621, 1.0
  %v1625 = vadd.f32 %v1623, 1.0
  %v1626 = vrcp.pop %v1624
  %v1627 = vmul.f32 1.0, %v1626
  %v1628 = vrcp.pop %v1625
  %v1629 = vmul.f32 1.0, %v1628
  %v1630 = vmul.f32 %v1627, 2.0
  %v1631 = vmul.f32 %v1629, 2.0
  %v1632 = vsub.f32 %v1630, 1.0
  %v1633 = vsub.f32 %v1631, 1.0
  %v1634 = vmul.f32 %v1627, %v1487
  %v1635 = vmul.f32 %v1629, %v1488
  %1638 = vrot.lane.b32.xlu0 %v1632, 64
  %v1639 = vpop.permute.xlu0 %1638
  %1640 = vrot.lane.b32.xlu0 %v1633, 64
  %v1641 = vpop.permute.xlu0 %1640
  %v1644 = vmul.f32 %v1627, %v1639
  %v1645 = vmul.f32 %v1629, %v1641
  %1648 = vrot.lane.b32.xlu0 %v1644, 32
  %v1649 = vpop.permute.xlu0 %1648
  %1650 = vrot.lane.b32.xlu0 %v1645, 32
  %v1651 = vpop.permute.xlu0 %1650
  %v1654 = vadd.f32 %v1634, %v1649
  %v1655 = vadd.f32 %v1635, %v1651
  %v1656 = vtanh.pop %v1654
  %v1657 = vtanh.pop %v1655
  %1660 = vrot.lane.b32.xlu0 %v1656, 64
  %v1661 = vpop.permute.xlu0 %1660
  %1662 = vrot.lane.b32.xlu0 %v1657, 64
  %v1663 = vpop.permute.xlu0 %1662
  %v1666 = vmul.f32 %v1627, %v1661
  %v1667 = vmul.f32 %v1629, %v1663
  %v1668 = vxor.u32 %v1610, 2147483648
  %v1669 = vxor.u32 %v1614, 2147483648
  %v1670 = vmul.f32 %v1668, 1.442695
  %v1671 = vpow.pop %v1670
  %v1672 = vmul.f32 %v1669, 1.442695
  %v1673 = vpow.pop %v1672
  %v1674 = vadd.f32 %v1671, 1.0
  %v1675 = vadd.f32 %v1673, 1.0
  %v1676 = vrcp.pop %v1674
  %v1677 = vmul.f32 1.0, %v1676
  %v1678 = vrcp.pop %v1675
  %v1679 = vmul.f32 1.0, %v1678
  %v1680 = vmul.f32 %v1677, 2.0
  %v1681 = vmul.f32 %v1679, 2.0
  %v1682 = vsub.f32 %v1680, 1.0
  %v1683 = vsub.f32 %v1681, 1.0
  %v1684 = vmul.f32 %v1677, %v1537
  %v1685 = vmul.f32 %v1679, %v1538
  %1688 = vrot.lane.b32.xlu0 %v1682, 64
  %v1689 = vpop.permute.xlu0 %1688
  %1690 = vrot.lane.b32.xlu0 %v1683, 64
  %v1691 = vpop.permute.xlu0 %1690
  %v1694 = vmul.f32 %v1677, %v1689
  %v1695 = vmul.f32 %v1679, %v1691
  %1698 = vrot.lane.b32.xlu0 %v1694, 32
  %v1699 = vpop.permute.xlu0 %1698
  %1700 = vrot.lane.b32.xlu0 %v1695, 32
  %v1701 = vpop.permute.xlu0 %1700
  %v1704 = vadd.f32 %v1684, %v1699
  %v1705 = vadd.f32 %v1685, %v1701
  %v1706 = vtanh.pop %v1704
  %v1707 = vtanh.pop %v1705
  %1710 = vrot.lane.b32.xlu0 %v1706, 64
  %v1711 = vpop.permute.xlu0 %1710
  %1712 = vrot.lane.b32.xlu0 %v1707, 64
  %v1713 = vpop.permute.xlu0 %1712
  %v1716 = vmul.f32 %v1677, %v1711
  %v1717 = vmul.f32 %v1679, %v1713
  %1720 = vrot.lane.b32.xlu0 %v1666, 32
  %v1721 = vpop.permute.xlu0 %1720
  %1722 = vrot.lane.b32.xlu0 %v1667, 32
  %v1723 = vpop.permute.xlu0 %1722
  %1728 = vrot.lane.b32.xlu0 %v1716, 64
  %v1729 = vpop.permute.xlu0 %1728
  %1730 = vrot.lane.b32.xlu0 %v1717, 64
  %v1731 = vpop.permute.xlu0 %1730
  %v1734 = vsel %vm397, %v1721, %v1729
  %v1735 = vsel %vm397, %v1723, %v1731
  %v1736 = vpack.c.bf16 %v1735, %v1734
  %v1738 = vsel %vm292, %v1736, 0
  %1740 = vmatprep.subr.bf16.mxu0 %v277
  %1741 = vmatpush1.bf16.msra.mxu0 %v276
  %1742 = vmatprep.subr.bf16.mxu0 %v279
  %1743 = vmatpush1.bf16.msra.mxu0 %v278
  %1744 = vmatprep.subr.bf16.mxu0 %v281
  %1745 = vmatpush1.bf16.msra.mxu0 %v280
  %1746 = vmatprep.subr.bf16.mxu0 %v283
  %1747 = vmatpush1.bf16.msra.mxu0 %v282
  %1748 = vmatprep.subr.bf16.mxu0 0
  %1749 = vmatpush1.bf16.msra.mxu0 0
  %1750 = vmatprep.subr.bf16.mxu0 0
  %1751 = vmatpush1.bf16.msra.mxu0 0
  %1752 = vmatprep.subr.bf16.mxu0 0
  %1753 = vmatpush1.bf16.msra.mxu0 0
  %1754 = vmatprep.subr.bf16.mxu0 0
  %1755 = vmatpush1.bf16.msra.mxu0 0
  %1756 = vmatprep.subr.bf16.mxu0 0
  %1757 = vmatpush1.bf16.msra.mxu0 0
  %1758 = vmatprep.subr.bf16.mxu0 0
  %1759 = vmatpush1.bf16.msra.mxu0 0
  %1760 = vmatprep.subr.bf16.mxu0 0
  %1761 = vmatpush1.bf16.msra.mxu0 0
  %1762 = vmatprep.subr.bf16.mxu0 0
  %1763 = vmatpush1.bf16.msra.mxu0 0
  %1764 = vmatprep.subr.bf16.mxu0 0
  %1765 = vmatpush1.bf16.msra.mxu0 0
  %1766 = vmatprep.subr.bf16.mxu0 0
  %1767 = vmatpush1.bf16.msra.mxu0 0
  %1768 = vmatprep.subr.bf16.mxu0 0
  %1769 = vmatpush1.bf16.msra.mxu0 0
  %1770 = vmatprep.subr.bf16.mxu0 0
  %1771 = vmatpush1.bf16.msra.mxu0 0
  %1772 = vmatprep.mubr.bf16.mxu0 0
  %1773 = vmatmul.mubr.bf16.gmra.mrb[0].mxu0 %v1738
  %v1774 = vpop.f32.mrb[0].mxu0
  %v1775 = vadd.f32 %v245, %v1774
  %v1776 = vpop.f32.mrb[0].mxu0
  %v1777 = vadd.f32 %v249, %v1776
  %v1778 = vpop.f32.mrb[0].mxu0
  %v1779 = vadd.f32 %v245, %v1778
  %v1780 = vpop.f32.mrb[0].mxu0
  %v1781 = vadd.f32 %v249, %v1780
  %1782 = vdwg.mxu0
  %v1783 = vadd.f32 %v1775, %v209
  %v1784 = vadd.f32 %v1779, %v212
  %v1785 = vxor.u32 %v1783, 2147483648
  %v1786 = vxor.u32 %v1784, 2147483648
  %v1787 = vmul.f32 %v1785, 1.442695
  %v1788 = vpow.pop %v1787
  %v1789 = vmul.f32 %v1786, 1.442695
  %v1790 = vpow.pop %v1789
  %v1791 = vadd.f32 %v1788, 1.0
  %v1792 = vadd.f32 %v1790, 1.0
  %v1793 = vrcp.pop %v1791
  %v1794 = vmul.f32 1.0, %v1793
  %v1795 = vrcp.pop %v1792
  %v1796 = vmul.f32 1.0, %v1795
  %v1797 = vmul.f32 %v1794, 2.0
  %v1798 = vmul.f32 %v1796, 2.0
  %v1799 = vsub.f32 %v1797, 1.0
  %v1800 = vsub.f32 %v1798, 1.0
  %v1801 = vmul.f32 %v1794, %v1654
  %v1802 = vmul.f32 %v1796, %v1655
  %1805 = vrot.lane.b32.xlu0 %v1799, 64
  %v1806 = vpop.permute.xlu0 %1805
  %1807 = vrot.lane.b32.xlu0 %v1800, 64
  %v1808 = vpop.permute.xlu0 %1807
  %v1811 = vmul.f32 %v1794, %v1806
  %v1812 = vmul.f32 %v1796, %v1808
  %1815 = vrot.lane.b32.xlu0 %v1811, 32
  %v1816 = vpop.permute.xlu0 %1815
  %1817 = vrot.lane.b32.xlu0 %v1812, 32
  %v1818 = vpop.permute.xlu0 %1817
  %v1821 = vadd.f32 %v1801, %v1816
  %v1822 = vadd.f32 %v1802, %v1818
  %v1823 = vtanh.pop %v1821
  %v1824 = vtanh.pop %v1822
  %1827 = vrot.lane.b32.xlu0 %v1823, 64
  %v1828 = vpop.permute.xlu0 %1827
  %1829 = vrot.lane.b32.xlu0 %v1824, 64
  %v1830 = vpop.permute.xlu0 %1829
  %v1833 = vmul.f32 %v1794, %v1828
  %v1834 = vmul.f32 %v1796, %v1830
  %v1835 = vxor.u32 %v1777, 2147483648
  %v1836 = vxor.u32 %v1781, 2147483648
  %v1837 = vmul.f32 %v1835, 1.442695
  %v1838 = vpow.pop %v1837
  %v1839 = vmul.f32 %v1836, 1.442695
  %v1840 = vpow.pop %v1839
  %v1841 = vadd.f32 %v1838, 1.0
  %v1842 = vadd.f32 %v1840, 1.0
  %v1843 = vrcp.pop %v1841
  %v1844 = vmul.f32 1.0, %v1843
  %v1845 = vrcp.pop %v1842
  %v1846 = vmul.f32 1.0, %v1845
  %v1847 = vmul.f32 %v1844, 2.0
  %v1848 = vmul.f32 %v1846, 2.0
  %v1849 = vsub.f32 %v1847, 1.0
  %v1850 = vsub.f32 %v1848, 1.0
  %v1851 = vmul.f32 %v1844, %v1704
  %v1852 = vmul.f32 %v1846, %v1705
  %1855 = vrot.lane.b32.xlu0 %v1849, 64
  %v1856 = vpop.permute.xlu0 %1855
  %1857 = vrot.lane.b32.xlu0 %v1850, 64
  %v1858 = vpop.permute.xlu0 %1857
  %v1861 = vmul.f32 %v1844, %v1856
  %v1862 = vmul.f32 %v1846, %v1858
  %1865 = vrot.lane.b32.xlu0 %v1861, 32
  %v1866 = vpop.permute.xlu0 %1865
  %1867 = vrot.lane.b32.xlu0 %v1862, 32
  %v1868 = vpop.permute.xlu0 %1867
  %v1871 = vadd.f32 %v1851, %v1866
  %v1872 = vadd.f32 %v1852, %v1868
  %v1873 = vtanh.pop %v1871
  %v1874 = vtanh.pop %v1872
  %1877 = vrot.lane.b32.xlu0 %v1873, 64
  %v1878 = vpop.permute.xlu0 %1877
  %1879 = vrot.lane.b32.xlu0 %v1874, 64
  %v1880 = vpop.permute.xlu0 %1879
  %v1883 = vmul.f32 %v1844, %v1878
  %v1884 = vmul.f32 %v1846, %v1880
  %1887 = vrot.lane.b32.xlu0 %v1833, 32
  %v1888 = vpop.permute.xlu0 %1887
  %1889 = vrot.lane.b32.xlu0 %v1834, 32
  %v1890 = vpop.permute.xlu0 %1889
  %1895 = vrot.lane.b32.xlu0 %v1883, 64
  %v1896 = vpop.permute.xlu0 %1895
  %1897 = vrot.lane.b32.xlu0 %v1884, 64
  %v1898 = vpop.permute.xlu0 %1897
  %v1901 = vsel %vm397, %v1888, %v1896
  %v1902 = vsel %vm397, %v1890, %v1898
  %v1903 = vpack.c.bf16 %v1902, %v1901
  %v1905 = vsel %vm292, %v1903, 0
  %1907 = vmatprep.subr.bf16.mxu0 %v277
  %1908 = vmatpush1.bf16.msra.mxu0 %v276
  %1909 = vmatprep.subr.bf16.mxu0 %v279
  %1910 = vmatpush1.bf16.msra.mxu0 %v278
  %1911 = vmatprep.subr.bf16.mxu0 %v281
  %1912 = vmatpush1.bf16.msra.mxu0 %v280
  %1913 = vmatprep.subr.bf16.mxu0 %v283
  %1914 = vmatpush1.bf16.msra.mxu0 %v282
  %1915 = vmatprep.subr.bf16.mxu0 0
  %1916 = vmatpush1.bf16.msra.mxu0 0
  %1917 = vmatprep.subr.bf16.mxu0 0
  %1918 = vmatpush1.bf16.msra.mxu0 0
  %1919 = vmatprep.subr.bf16.mxu0 0
  %1920 = vmatpush1.bf16.msra.mxu0 0
  %1921 = vmatprep.subr.bf16.mxu0 0
  %1922 = vmatpush1.bf16.msra.mxu0 0
  %1923 = vmatprep.subr.bf16.mxu0 0
  %1924 = vmatpush1.bf16.msra.mxu0 0
  %1925 = vmatprep.subr.bf16.mxu0 0
  %1926 = vmatpush1.bf16.msra.mxu0 0
  %1927 = vmatprep.subr.bf16.mxu0 0
  %1928 = vmatpush1.bf16.msra.mxu0 0
  %1929 = vmatprep.subr.bf16.mxu0 0
  %1930 = vmatpush1.bf16.msra.mxu0 0
  %1931 = vmatprep.subr.bf16.mxu0 0
  %1932 = vmatpush1.bf16.msra.mxu0 0
  %1933 = vmatprep.subr.bf16.mxu0 0
  %1934 = vmatpush1.bf16.msra.mxu0 0
  %1935 = vmatprep.subr.bf16.mxu0 0
  %1936 = vmatpush1.bf16.msra.mxu0 0
  %1937 = vmatprep.subr.bf16.mxu0 0
  %1938 = vmatpush1.bf16.msra.mxu0 0
  %1939 = vmatprep.mubr.bf16.mxu0 0
  %1940 = vmatmul.mubr.bf16.gmra.mrb[0].mxu0 %v1905
  %v1941 = vpop.f32.mrb[0].mxu0
  %v1942 = vadd.f32 %v245, %v1941
  %v1943 = vpop.f32.mrb[0].mxu0
  %v1944 = vadd.f32 %v249, %v1943
  %v1945 = vpop.f32.mrb[0].mxu0
  %v1946 = vadd.f32 %v245, %v1945
  %v1947 = vpop.f32.mrb[0].mxu0
  %v1948 = vadd.f32 %v249, %v1947
  %1949 = vdwg.mxu0
  %v1950 = vadd.f32 %v1942, %v217
  %v1951 = vadd.f32 %v1946, %v220
  %v1952 = vxor.u32 %v1950, 2147483648
  %v1953 = vxor.u32 %v1951, 2147483648
  %v1954 = vmul.f32 %v1952, 1.442695
  %v1955 = vpow.pop %v1954
  %v1956 = vmul.f32 %v1953, 1.442695
  %v1957 = vpow.pop %v1956
  %v1958 = vadd.f32 %v1955, 1.0
  %v1959 = vadd.f32 %v1957, 1.0
  %v1960 = vrcp.pop %v1958
  %v1961 = vmul.f32 1.0, %v1960
  %v1962 = vrcp.pop %v1959
  %v1963 = vmul.f32 1.0, %v1962
  %v1964 = vmul.f32 %v1961, 2.0
  %v1965 = vmul.f32 %v1963, 2.0
  %v1966 = vsub.f32 %v1964, 1.0
  %v1967 = vsub.f32 %v1965, 1.0
  %v1968 = vmul.f32 %v1961, %v1821
  %v1969 = vmul.f32 %v1963, %v1822
  %1972 = vrot.lane.b32.xlu0 %v1966, 64
  %v1973 = vpop.permute.xlu0 %1972
  %1974 = vrot.lane.b32.xlu0 %v1967, 64
  %v1975 = vpop.permute.xlu0 %1974
  %v1978 = vmul.f32 %v1961, %v1973
  %v1979 = vmul.f32 %v1963, %v1975
  %1982 = vrot.lane.b32.xlu0 %v1978, 32
  %v1983 = vpop.permute.xlu0 %1982
  %1984 = vrot.lane.b32.xlu0 %v1979, 32
  %v1985 = vpop.permute.xlu0 %1984
  %v1988 = vadd.f32 %v1968, %v1983
  %v1989 = vadd.f32 %v1969, %v1985
  %v1990 = vtanh.pop %v1988
  %v1991 = vtanh.pop %v1989
  %1994 = vrot.lane.b32.xlu0 %v1990, 64
  %v1995 = vpop.permute.xlu0 %1994
  %1996 = vrot.lane.b32.xlu0 %v1991, 64
  %v1997 = vpop.permute.xlu0 %1996
  %v2000 = vmul.f32 %v1961, %v1995
  %v2001 = vmul.f32 %v1963, %v1997
  %v2002 = vxor.u32 %v1944, 2147483648
  %v2003 = vxor.u32 %v1948, 2147483648
  %v2004 = vmul.f32 %v2002, 1.442695
  %v2005 = vpow.pop %v2004
  %v2006 = vmul.f32 %v2003, 1.442695
  %v2007 = vpow.pop %v2006
  %v2008 = vadd.f32 %v2005, 1.0
  %v2009 = vadd.f32 %v2007, 1.0
  %v2010 = vrcp.pop %v2008
  %v2011 = vmul.f32 1.0, %v2010
  %v2012 = vrcp.pop %v2009
  %v2013 = vmul.f32 1.0, %v2012
  %v2014 = vmul.f32 %v2011, 2.0
  %v2015 = vmul.f32 %v2013, 2.0
  %v2016 = vsub.f32 %v2014, 1.0
  %v2017 = vsub.f32 %v2015, 1.0
  %v2018 = vmul.f32 %v2011, %v1871
  %v2019 = vmul.f32 %v2013, %v1872
  %2022 = vrot.lane.b32.xlu0 %v2016, 64
  %v2023 = vpop.permute.xlu0 %2022
  %2024 = vrot.lane.b32.xlu0 %v2017, 64
  %v2025 = vpop.permute.xlu0 %2024
  %v2028 = vmul.f32 %v2011, %v2023
  %v2029 = vmul.f32 %v2013, %v2025
  %2032 = vrot.lane.b32.xlu0 %v2028, 32
  %v2033 = vpop.permute.xlu0 %2032
  %2034 = vrot.lane.b32.xlu0 %v2029, 32
  %v2035 = vpop.permute.xlu0 %2034
  %v2038 = vadd.f32 %v2018, %v2033
  %v2039 = vadd.f32 %v2019, %v2035
  %v2040 = vtanh.pop %v2038
  %v2041 = vtanh.pop %v2039
  %2044 = vrot.lane.b32.xlu0 %v2040, 64
  %v2045 = vpop.permute.xlu0 %2044
  %2046 = vrot.lane.b32.xlu0 %v2041, 64
  %v2047 = vpop.permute.xlu0 %2046
  %v2050 = vmul.f32 %v2011, %v2045
  %v2051 = vmul.f32 %v2013, %v2047
  %2054 = vrot.lane.b32.xlu0 %v2000, 32
  %v2055 = vpop.permute.xlu0 %2054
  %2056 = vrot.lane.b32.xlu0 %v2001, 32
  %v2057 = vpop.permute.xlu0 %2056
  %2062 = vrot.lane.b32.xlu0 %v2050, 64
  %v2063 = vpop.permute.xlu0 %2062
  %2064 = vrot.lane.b32.xlu0 %v2051, 64
  %v2065 = vpop.permute.xlu0 %2064
  %v2068 = vsel %vm397, %v2055, %v2063
  %v2069 = vsel %vm397, %v2057, %v2065
  %v2070 = vpack.c.bf16 %v2069, %v2068
  %v2072 = vsel %vm292, %v2070, 0
  %2074 = vmatprep.subr.bf16.mxu0 %v277
  %2075 = vmatpush1.bf16.msra.mxu0 %v276
  %2076 = vmatprep.subr.bf16.mxu0 %v279
  %2077 = vmatpush1.bf16.msra.mxu0 %v278
  %2078 = vmatprep.subr.bf16.mxu0 %v281
  %2079 = vmatpush1.bf16.msra.mxu0 %v280
  %2080 = vmatprep.subr.bf16.mxu0 %v283
  %2081 = vmatpush1.bf16.msra.mxu0 %v282
  %2082 = vmatprep.subr.bf16.mxu0 0
  %2083 = vmatpush1.bf16.msra.mxu0 0
  %2084 = vmatprep.subr.bf16.mxu0 0
  %2085 = vmatpush1.bf16.msra.mxu0 0
  %2086 = vmatprep.subr.bf16.mxu0 0
  %2087 = vmatpush1.bf16.msra.mxu0 0
  %2088 = vmatprep.subr.bf16.mxu0 0
  %2089 = vmatpush1.bf16.msra.mxu0 0
  %2090 = vmatprep.subr.bf16.mxu0 0
  %2091 = vmatpush1.bf16.msra.mxu0 0
  %2092 = vmatprep.subr.bf16.mxu0 0
  %2093 = vmatpush1.bf16.msra.mxu0 0
  %2094 = vmatprep.subr.bf16.mxu0 0
  %2095 = vmatpush1.bf16.msra.mxu0 0
  %2096 = vmatprep.subr.bf16.mxu0 0
  %2097 = vmatpush1.bf16.msra.mxu0 0
  %2098 = vmatprep.subr.bf16.mxu0 0
  %2099 = vmatpush1.bf16.msra.mxu0 0
  %2100 = vmatprep.subr.bf16.mxu0 0
  %2101 = vmatpush1.bf16.msra.mxu0 0
  %2102 = vmatprep.subr.bf16.mxu0 0
  %2103 = vmatpush1.bf16.msra.mxu0 0
  %2104 = vmatprep.subr.bf16.mxu0 0
  %2105 = vmatpush1.bf16.msra.mxu0 0
  %2106 = vmatprep.mubr.bf16.mxu0 0
  %2107 = vmatmul.mubr.bf16.gmra.mrb[0].mxu0 %v2072
  %v2108 = vpop.f32.mrb[0].mxu0
  %v2109 = vadd.f32 %v245, %v2108
  %v2110 = vpop.f32.mrb[0].mxu0
  %v2111 = vadd.f32 %v249, %v2110
  %v2112 = vpop.f32.mrb[0].mxu0
  %v2113 = vadd.f32 %v245, %v2112
  %v2114 = vpop.f32.mrb[0].mxu0
  %v2115 = vadd.f32 %v249, %v2114
  %2116 = vdwg.mxu0
  %v2117 = vadd.f32 %v2109, %v225
  %v2118 = vadd.f32 %v2113, %v228
  %v2119 = vxor.u32 %v2117, 2147483648
  %v2120 = vxor.u32 %v2118, 2147483648
  %v2121 = vmul.f32 %v2119, 1.442695
  %v2122 = vpow.pop %v2121
  %v2123 = vmul.f32 %v2120, 1.442695
  %v2124 = vpow.pop %v2123
  %v2125 = vadd.f32 %v2122, 1.0
  %v2126 = vadd.f32 %v2124, 1.0
  %v2127 = vrcp.pop %v2125
  %v2128 = vmul.f32 1.0, %v2127
  %v2129 = vrcp.pop %v2126
  %v2130 = vmul.f32 1.0, %v2129
  %v2131 = vmul.f32 %v2128, 2.0
  %v2132 = vmul.f32 %v2130, 2.0
  %v2133 = vsub.f32 %v2131, 1.0
  %v2134 = vsub.f32 %v2132, 1.0
  %v2135 = vmul.f32 %v2128, %v1988
  %v2136 = vmul.f32 %v2130, %v1989
  %2139 = vrot.lane.b32.xlu0 %v2133, 64
  %v2140 = vpop.permute.xlu0 %2139
  %2141 = vrot.lane.b32.xlu0 %v2134, 64
  %v2142 = vpop.permute.xlu0 %2141
  %v2145 = vmul.f32 %v2128, %v2140
  %v2146 = vmul.f32 %v2130, %v2142
  %2149 = vrot.lane.b32.xlu0 %v2145, 32
  %v2150 = vpop.permute.xlu0 %2149
  %2151 = vrot.lane.b32.xlu0 %v2146, 32
  %v2152 = vpop.permute.xlu0 %2151
  %v2155 = vadd.f32 %v2135, %v2150
  %v2156 = vadd.f32 %v2136, %v2152
  %v2157 = vtanh.pop %v2155
  %v2158 = vtanh.pop %v2156
  %2161 = vrot.lane.b32.xlu0 %v2157, 64
  %v2162 = vpop.permute.xlu0 %2161
  %2163 = vrot.lane.b32.xlu0 %v2158, 64
  %v2164 = vpop.permute.xlu0 %2163
  %v2167 = vmul.f32 %v2128, %v2162
  %v2168 = vmul.f32 %v2130, %v2164
  %v2169 = vxor.u32 %v2111, 2147483648
  %v2170 = vxor.u32 %v2115, 2147483648
  %v2171 = vmul.f32 %v2169, 1.442695
  %v2172 = vpow.pop %v2171
  %v2173 = vmul.f32 %v2170, 1.442695
  %v2174 = vpow.pop %v2173
  %v2175 = vadd.f32 %v2172, 1.0
  %v2176 = vadd.f32 %v2174, 1.0
  %v2177 = vrcp.pop %v2175
  %v2178 = vmul.f32 1.0, %v2177
  %v2179 = vrcp.pop %v2176
  %v2180 = vmul.f32 1.0, %v2179
  %v2181 = vmul.f32 %v2178, 2.0
  %v2182 = vmul.f32 %v2180, 2.0
  %v2183 = vsub.f32 %v2181, 1.0
  %v2184 = vsub.f32 %v2182, 1.0
  %v2185 = vmul.f32 %v2178, %v2038
  %v2186 = vmul.f32 %v2180, %v2039
  %2189 = vrot.lane.b32.xlu0 %v2183, 64
  %v2190 = vpop.permute.xlu0 %2189
  %2191 = vrot.lane.b32.xlu0 %v2184, 64
  %v2192 = vpop.permute.xlu0 %2191
  %v2195 = vmul.f32 %v2178, %v2190
  %v2196 = vmul.f32 %v2180, %v2192
  %2199 = vrot.lane.b32.xlu0 %v2195, 32
  %v2200 = vpop.permute.xlu0 %2199
  %2201 = vrot.lane.b32.xlu0 %v2196, 32
  %v2202 = vpop.permute.xlu0 %2201
  %v2205 = vadd.f32 %v2185, %v2200
  %v2206 = vadd.f32 %v2186, %v2202
  %v2207 = vtanh.pop %v2205
  %v2208 = vtanh.pop %v2206
  %2211 = vrot.lane.b32.xlu0 %v2207, 64
  %v2212 = vpop.permute.xlu0 %2211
  %2213 = vrot.lane.b32.xlu0 %v2208, 64
  %v2214 = vpop.permute.xlu0 %2213
  %v2217 = vmul.f32 %v2178, %v2212
  %v2218 = vmul.f32 %v2180, %v2214
  %2221 = vrot.lane.b32.xlu0 %v2167, 32
  %v2222 = vpop.permute.xlu0 %2221
  %2223 = vrot.lane.b32.xlu0 %v2168, 32
  %v2224 = vpop.permute.xlu0 %2223
  %2229 = vrot.lane.b32.xlu0 %v2217, 64
  %v2230 = vpop.permute.xlu0 %2229
  %2231 = vrot.lane.b32.xlu0 %v2218, 64
  %v2232 = vpop.permute.xlu0 %2231
  %v2235 = vsel %vm397, %v2222, %v2230
  %v2236 = vsel %vm397, %v2224, %v2232
  %v2237 = vpack.c.bf16 %v2236, %v2235
  %v2239 = vsel %vm292, %v2237, 0
  %2241 = vmatprep.subr.bf16.mxu0 %v277
  %2242 = vmatpush1.bf16.msra.mxu0 %v276
  %2243 = vmatprep.subr.bf16.mxu0 %v279
  %2244 = vmatpush1.bf16.msra.mxu0 %v278
  %2245 = vmatprep.subr.bf16.mxu0 %v281
  %2246 = vmatpush1.bf16.msra.mxu0 %v280
  %2247 = vmatprep.subr.bf16.mxu0 %v283
  %2248 = vmatpush1.bf16.msra.mxu0 %v282
  %2249 = vmatprep.subr.bf16.mxu0 0
  %2250 = vmatpush1.bf16.msra.mxu0 0
  %2251 = vmatprep.subr.bf16.mxu0 0
  %2252 = vmatpush1.bf16.msra.mxu0 0
  %2253 = vmatprep.subr.bf16.mxu0 0
  %2254 = vmatpush1.bf16.msra.mxu0 0
  %2255 = vmatprep.subr.bf16.mxu0 0
  %2256 = vmatpush1.bf16.msra.mxu0 0
  %2257 = vmatprep.subr.bf16.mxu0 0
  %2258 = vmatpush1.bf16.msra.mxu0 0
  %2259 = vmatprep.subr.bf16.mxu0 0
  %2260 = vmatpush1.bf16.msra.mxu0 0
  %2261 = vmatprep.subr.bf16.mxu0 0
  %2262 = vmatpush1.bf16.msra.mxu0 0
  %2263 = vmatprep.subr.bf16.mxu0 0
  %2264 = vmatpush1.bf16.msra.mxu0 0
  %2265 = vmatprep.subr.bf16.mxu0 0
  %2266 = vmatpush1.bf16.msra.mxu0 0
  %2267 = vmatprep.subr.bf16.mxu0 0
  %2268 = vmatpush1.bf16.msra.mxu0 0
  %2269 = vmatprep.subr.bf16.mxu0 0
  %2270 = vmatpush1.bf16.msra.mxu0 0
  %2271 = vmatprep.subr.bf16.mxu0 0
  %2272 = vmatpush1.bf16.msra.mxu0 0
  %2273 = vmatprep.mubr.bf16.mxu0 0
  %2274 = vmatmul.mubr.bf16.gmra.mrb[0].mxu0 %v2239
  %v2275 = vpop.f32.mrb[0].mxu0
  %v2276 = vpop.f32.mrb[0].mxu0
  %v2277 = vadd.f32 %v249, %v2276
  %v2278 = vpop.f32.mrb[0].mxu0
  %v2279 = vpop.f32.mrb[0].mxu0
  %v2280 = vadd.f32 %v249, %v2279
  %2281 = vdwg.mxu0
  %v2282 = vxor.u32 %v2277, 2147483648
  %v2283 = vxor.u32 %v2280, 2147483648
  %v2284 = vmul.f32 %v2282, 1.442695
  %v2285 = vpow.pop %v2284
  %v2286 = vmul.f32 %v2283, 1.442695
  %v2287 = vpow.pop %v2286
  %v2288 = vadd.f32 %v2285, 1.0
  %v2289 = vadd.f32 %v2287, 1.0
  %v2290 = vrcp.pop %v2288
  %v2291 = vmul.f32 1.0, %v2290
  %v2292 = vrcp.pop %v2289
  %v2293 = vmul.f32 1.0, %v2292
  %v2294 = vmul.f32 %v2291, 2.0
  %v2295 = vmul.f32 %v2293, 2.0
  %v2296 = vsub.f32 %v2294, 1.0
  %v2297 = vsub.f32 %v2295, 1.0
  %v2298 = vmul.f32 %v2291, %v2205
  %v2299 = vmul.f32 %v2293, %v2206
  %2302 = vrot.lane.b32.xlu0 %v2296, 64
  %v2303 = vpop.permute.xlu0 %2302
  %2304 = vrot.lane.b32.xlu0 %v2297, 64
  %v2305 = vpop.permute.xlu0 %2304
  %v2308 = vmul.f32 %v2291, %v2303
  %v2309 = vmul.f32 %v2293, %v2305
  %2312 = vrot.lane.b32.xlu0 %v2308, 32
  %v2313 = vpop.permute.xlu0 %2312
  %2314 = vrot.lane.b32.xlu0 %v2309, 32
  %v2315 = vpop.permute.xlu0 %2314
  %v2318 = vadd.f32 %v2298, %v2313
  %v2319 = vadd.f32 %v2299, %v2315
  %v2320 = vtanh.pop %v2318
  %v2321 = vtanh.pop %v2319
  %2324 = vrot.lane.b32.xlu0 %v2320, 64
  %v2325 = vpop.permute.xlu0 %2324
  %2326 = vrot.lane.b32.xlu0 %v2321, 64
  %v2327 = vpop.permute.xlu0 %2326
  %v2330 = vmul.f32 %v2291, %v2325
  %v2331 = vmul.f32 %v2293, %v2327
  %v2332 = vpack.c.bf16 %v1884, %v1883
  %v2333 = vpack.c.bf16 %v2051, %v2050
  %v2334 = vpack.c.bf16 %v2218, %v2217
  %v2335 = vpack.c.bf16 %v2331, %v2330
  %v2336 = vld [vmem:[%s4] sm:$0xf]
  %v2337 = vld [vmem:[%s4 + $0x4] sm:$0xf]
  %v2338 = vld [vmem:[%s4 + $0x8] sm:$0xf]
  %v2339 = vld [vmem:[%s4 + $0xc] sm:$0xf]
  %v2340 = vld [vmem:[%s5] sm:$0x1]
  %v2342 = vlaneseq
  %v2343 = vshrl.u32 %v2342, 7
  %v2344 = vsub.s32 0, %v2343
  %v2345 = vrot.slane %v2340, %v2344
  %2351 = vrot.lane.b32.xlu0 %v2332, 32
  %v2352 = vpop.permute.xlu0 %2351
  %2353 = vrot.lane.b32.xlu0 %v2333, 32
  %v2354 = vpop.permute.xlu0 %2353
  %2355 = vrot.lane.b32.xlu0 %v2334, 32
  %v2356 = vpop.permute.xlu0 %2355
  %2357 = vrot.lane.b32.xlu0 %v2335, 32
  %v2358 = vpop.permute.xlu0 %2357
  %v2363 = vunpack.c.l.b16 %v2336
  %v2364 = vunpack.c.l.b16 %v2337
  %v2365 = vunpack.c.l.b16 %v2338
  %v2366 = vunpack.c.l.b16 %v2339
  %v2367 = vpack.c.b16 %v2364, %v2363
  %v2368 = vpack.c.b16 %v2366, %v2365
  %v2372 = vsel %vm397, %v2352, 0
  %v2375 = vsel %vm397, %v2354, 0
  %v2378 = vsel %vm397, %v2356, 0
  %v2381 = vsel %vm397, %v2358, 0
  %2383 = vmatprep.subr.bf16.mxu0 0
  %2384 = vmatpush1.bf16.msra.mxu0 %v2367
  %2385 = vmatprep.subr.bf16.mxu0 0
  %2386 = vmatpush1.bf16.msra.mxu0 %v2368
  %2387 = vmatprep.subr.bf16.mxu0 0
  %2388 = vmatpush1.bf16.msra.mxu0 0
  %2389 = vmatprep.subr.bf16.mxu0 0
  %2390 = vmatpush1.bf16.msra.mxu0 0
  %2391 = vmatprep.subr.bf16.mxu0 0
  %2392 = vmatpush1.bf16.msra.mxu0 0
  %2393 = vmatprep.subr.bf16.mxu0 0
  %2394 = vmatpush1.bf16.msra.mxu0 0
  %2395 = vmatprep.subr.bf16.mxu0 0
  %2396 = vmatpush1.bf16.msra.mxu0 0
  %2397 = vmatprep.subr.bf16.mxu0 0
  %2398 = vmatpush1.bf16.msra.mxu0 0
  %2399 = vmatprep.subr.bf16.mxu0 0
  %2400 = vmatpush1.bf16.msra.mxu0 0
  %2401 = vmatprep.subr.bf16.mxu0 0
  %2402 = vmatpush1.bf16.msra.mxu0 0
  %2403 = vmatprep.subr.bf16.mxu0 0
  %2404 = vmatpush1.bf16.msra.mxu0 0
  %2405 = vmatprep.subr.bf16.mxu0 0
  %2406 = vmatpush1.bf16.msra.mxu0 0
  %2407 = vmatprep.subr.bf16.mxu0 0
  %2408 = vmatpush1.bf16.msra.mxu0 0
  %2409 = vmatprep.subr.bf16.mxu0 0
  %2410 = vmatpush1.bf16.msra.mxu0 0
  %2411 = vmatprep.subr.bf16.mxu0 0
  %2412 = vmatpush1.bf16.msra.mxu0 0
  %2413 = vmatprep.subr.bf16.mxu0 0
  %2414 = vmatpush1.bf16.msra.mxu0 0
  %2415 = vmatprep.mubr.bf16.mxu0 0
  %2416 = vmatmul.mubr.bf16.gmra.mrb[0].mxu0 %v2372
  %v2417 = vpop.f32.mrb[0].mxu0
  %v2418 = vadd.f32 %v2345, %v2417
  %v2419 = vpop.f32.mrb[0].mxu0
  %v2420 = vpop.f32.mrb[0].mxu0
  %v2421 = vadd.f32 %v2345, %v2420
  %v2422 = vpop.f32.mrb[0].mxu0
  %2423 = vmatprep.mubr.bf16.mxu0 0
  %2424 = vmatmul.mubr.bf16.gmra.mrb[0].mxu0 %v2375
  %v2425 = vpop.f32.mrb[0].mxu0
  %v2426 = vadd.f32 %v2345, %v2425
  %v2427 = vpop.f32.mrb[0].mxu0
  %v2428 = vpop.f32.mrb[0].mxu0
  %v2429 = vadd.f32 %v2345, %v2428
  %v2430 = vpop.f32.mrb[0].mxu0
  %2431 = vmatprep.mubr.bf16.mxu0 0
  %2432 = vmatmul.mubr.bf16.gmra.mrb[0].mxu0 %v2378
  %v2433 = vpop.f32.mrb[0].mxu0
  %v2434 = vadd.f32 %v2345, %v2433
  %v2435 = vpop.f32.mrb[0].mxu0
  %v2436 = vpop.f32.mrb[0].mxu0
  %v2437 = vadd.f32 %v2345, %v2436
  %v2438 = vpop.f32.mrb[0].mxu0
  %2439 = vmatprep.mubr.bf16.mxu0 0
  %2440 = vmatmul.mubr.bf16.gmra.mrb[0].mxu0 %v2381
  %v2441 = vpop.f32.mrb[0].mxu0
  %v2442 = vadd.f32 %v2345, %v2441
  %v2443 = vpop.f32.mrb[0].mxu0
  %v2444 = vpop.f32.mrb[0].mxu0
  %v2445 = vadd.f32 %v2345, %v2444
  %v2446 = vpop.f32.mrb[0].mxu0
  %2447 = vdwg.mxu0
  %2448 = vst.msk [vmem:[%s6] sm:$0xff] %vm61, %v2418
  %2449 = vst.msk [vmem:[%s6 + $0x8] sm:$0xff] %vm61, %v2421
  %2450 = vst.msk [vmem:[%s6 + $0x10] sm:$0xff] %vm61, %v2426
  %2451 = vst.msk [vmem:[%s6 + $0x18] sm:$0xff] %vm61, %v2429
  %2452 = vst.msk [vmem:[%s6 + $0x20] sm:$0xff] %vm61, %v2434
  %2453 = vst.msk [vmem:[%s6 + $0x28] sm:$0xff] %vm61, %v2437
  %2454 = vst.msk [vmem:[%s6 + $0x30] sm:$0xff] %vm61, %v2442
  %2455 = vst.msk [vmem:[%s6 + $0x38] sm:$0xff] %vm61, %v2445
  // Predicated region
  $region26: #{tpu_custom_call.1} parent=0 // pred_check
    _
  $region27: #{tpu_custom_call.1} parent=0 // pred_check_branch
    %2457 = sbr.rel (0) target = $region29
  $region28: #{tpu_custom_call.1} parent=0 // pred_region
    _
  $region29: #{tpu_custom_call.1} parent=0 // pred_fallthru
    _
  // Predicated region
  $region30: #{tpu_custom_call.1} parent=0 // pred_check
    _
  $region31: #{tpu_custom_call.1} parent=0 // pred_check_branch
    %2459 = sbr.rel (0) target = $region33
  $region32: #{tpu_custom_call.1} parent=0 // pred_region
    _
  $region33: #{tpu_custom_call.1} parent=0 // pred_fallthru
    _

</llo_original>
